<compile_context>
chip_gen: v5e
topology: v5e:2x2
jax: 0.10.0
libtpu: 0.0.40
codegen_flags: <defaults>
</compile_context>

<pallas_src>
import jax
import jax.numpy as jnp
from jax.experimental import pallas as pl

# ----------------------------- model config ---------------------------------
VOCAB = 100
TYPE_VOCAB = 2
MAX_POS = 16
HIDDEN = 32
HEADS = 4
HEAD_DIM = HIDDEN // HEADS
FFN = 64
LAYERS = 2
LN_EPS = 1e-12

# padded (lane-dense) layout
H_PAD = 128                 # hidden padded to one full lane tile
F_PAD = 128                 # FFN padded to one full lane tile
HEAD_PAD = 128              # each head gets its own 128-lane block
HS = HEADS * HEAD_PAD       # 512 lanes for all heads of one projection


# ------------------------------ kernel body ----------------------------------
def _masked_layernorm(x, gamma, beta, lane_mask):
    """LayerNorm over the real HIDDEN lanes of a lane-padded activation.

    Padded lanes of `x` are zero by construction; gamma/beta are zero-padded,
    so padded output lanes stay exactly zero.
    """
    mean = jnp.sum(x * lane_mask, axis=-1, keepdims=True) * (1.0 / HIDDEN)
    d = (x - mean) * lane_mask
    var = jnp.sum(d * d, axis=-1, keepdims=True) * (1.0 / HIDDEN)
    return d * jax.lax.rsqrt(var + LN_EPS) * gamma + beta


def _build_fused_kernel(batch, seq):
    """Fused kernel: embeddings-LN + all encoder layers + BERT pooler."""

    def kernel(emb_ref, mask_ref, emb_g_ref, emb_b_ref,
               wqkv_ref, bqkv_ref, wo_ref, bo_ref,
               ln1_g_ref, ln1_b_ref, w1_ref, b1_ref, w2_ref, b2_ref,
               ln2_g_ref, ln2_b_ref, wp_ref, bp_ref,
               seq_out_ref, pooled_ref):
        # lane mask selecting the real HIDDEN features of the padded layout
        lane_ids = jax.lax.broadcasted_iota(jnp.int32, (1, H_PAD), 1)
        lane_mask = (lane_ids < HIDDEN).astype(jnp.float32)

        # embeddings LayerNorm (emb_ref = word + pos + type, already summed)
        x = _masked_layernorm(emb_ref[...], emb_g_ref[...], emb_b_ref[...],
                              lane_mask)                       # (B*S, H_PAD)

        # additive attention bias computed in-kernel from the raw mask
        attn_bias = (1.0 - mask_ref[...]) * -10000.0           # (B, S)
        scale = 1.0 / (float(HEAD_DIM) ** 0.5)

        for l in range(LAYERS):                                # static unroll
            # fused QKV projection: (B*S, H_PAD) @ (H_PAD, 3*HS)
            qkv = jnp.dot(x, wqkv_ref[l],
                          preferred_element_type=jnp.float32) + bqkv_ref[l]
            q = qkv[:, 0 * HS:1 * HS]                          # (B*S, HS)
            k = qkv[:, 1 * HS:2 * HS]
            v = qkv[:, 2 * HS:3 * HS]

            # attention: per batch element, heads live in 128-lane aligned
            # blocks, so every slice is tile aligned (no relayouts).
            ctx_rows = []
            for b in range(batch):
                rows = slice(b * seq, (b + 1) * seq)
                bias_b = attn_bias[b:b + 1, :]                 # (1, S)
                head_ctx = []
                for h in range(HEADS):
                    cols = slice(h * HEAD_PAD, (h + 1) * HEAD_PAD)
                    qh = q[rows, cols]                         # (S, 128)
                    kh = k[rows, cols]
                    vh = v[rows, cols]
                    # qh @ kh^T via dot_general (contract lane dims)
                    scores = jax.lax.dot_general(
                        qh, kh, (((1,), (1,)), ((), ())),
                        preferred_element_type=jnp.float32) * scale  # (S, S)
                    scores = scores + bias_b
                    scores = scores - jnp.max(scores, axis=-1, keepdims=True)
                    p = jnp.exp(scores)
                    p = p / jnp.sum(p, axis=-1, keepdims=True)
                    head_ctx.append(
                        jnp.dot(p, vh, preferred_element_type=jnp.float32))
                ctx_rows.append(jnp.concatenate(head_ctx, axis=-1))  # (S, HS)
            ctx = jnp.concatenate(ctx_rows, axis=0)            # (B*S, HS)

            attn_out = jnp.dot(ctx, wo_ref[l],
                               preferred_element_type=jnp.float32) + bo_ref[l]
            h1 = _masked_layernorm(x + attn_out,
                                   ln1_g_ref[l], ln1_b_ref[l], lane_mask)

            ffn = jnp.dot(h1, w1_ref[l],
                          preferred_element_type=jnp.float32) + b1_ref[l]
            # TODO(synk): PyTorch BERT uses the exact erf GELU; the tanh
            # approximation is used here since erf lowering is not guaranteed
            # in Mosaic.
            ffn = jax.nn.gelu(ffn, approximate=True)
            ffn = jnp.dot(ffn, w2_ref[l],
                          preferred_element_type=jnp.float32) + b2_ref[l]
            x = _masked_layernorm(h1 + ffn,
                                  ln2_g_ref[l], ln2_b_ref[l], lane_mask)

        # per-token language features (lane-dense (B*S, 128) store)
        seq_out_ref[...] = x

        # BERT pooler on the CLS rows (row b*seq of each batch element)
        cls = jnp.concatenate(
            [x[b * seq:b * seq + 1, :] for b in range(batch)], axis=0)  # (B, H_PAD)
        pooled_ref[...] = jnp.tanh(
            jnp.dot(cls, wp_ref[...], preferred_element_type=jnp.float32)
            + bp_ref[...])

    return kernel


# ------------------------------ parameters -----------------------------------
def init_params(key):
    """Deterministic parameters, stored directly in the packed kernel layout."""

    def normal(k, shape):
        return (jax.random.normal(k, shape) * 0.02).astype(jnp.float32)

    def pad_to(x, rows, cols):
        return jnp.pad(x, ((0, rows - x.shape[0]), (0, cols - x.shape[1])))

    def spread_cols(w):
        # (n, HEADS*HEAD_DIM) -> (n, HEADS*HEAD_PAD): head h dim d -> lane h*128+d
        n = w.shape[0]
        w = w.reshape(n, HEADS, HEAD_DIM)
        w = jnp.pad(w, ((0, 0), (0, 0), (0, HEAD_PAD - HEAD_DIM)))
        return w.reshape(n, HEADS * HEAD_PAD)

    def spread_rows(w):
        # (HEADS*HEAD_DIM, m) -> (HEADS*HEAD_PAD, m)
        m = w.shape[1]
        w = w.reshape(HEADS, HEAD_DIM, m)
        w = jnp.pad(w, ((0, 0), (0, HEAD_PAD - HEAD_DIM), (0, 0)))
        return w.reshape(HEADS * HEAD_PAD, m)

    keys = iter(jax.random.split(key, 3 + LAYERS * 6 + 1))

    params = {
        'word_emb': pad_to(normal(next(keys), (VOCAB, HIDDEN)), VOCAB, H_PAD),
        'pos_emb': pad_to(normal(next(keys), (MAX_POS, HIDDEN)), MAX_POS, H_PAD),
        'type_emb': pad_to(normal(next(keys), (TYPE_VOCAB, HIDDEN)),
                           TYPE_VOCAB, H_PAD),
        # gamma/beta zero-padded beyond HIDDEN so padded lanes stay zero
        'emb_ln_g': pad_to(jnp.ones((1, HIDDEN), jnp.float32), 1, H_PAD),
        'emb_ln_b': jnp.zeros((1, H_PAD), jnp.float32),
    }

    wqkv, bqkv, wo, bo = [], [], [], []
    ln1_g, ln1_b, w1, b1 = [], [], [], []
    w2, b2, ln2_g, ln2_b = [], [], [], []
    for _ in range(LAYERS):
        wq = normal(next(keys), (HIDDEN, HIDDEN))
        wk = normal(next(keys), (HIDDEN, HIDDEN))
        wv = normal(next(keys), (HIDDEN, HIDDEN))
        wo_l = normal(next(keys), (HIDDEN, HIDDEN))
        w1_l = normal(next(keys), (HIDDEN, FFN))
        w2_l = normal(next(keys), (FFN, HIDDEN))

        wqkv.append(jnp.concatenate(
            [pad_to(spread_cols(wq), H_PAD, HS),
             pad_to(spread_cols(wk), H_PAD, HS),
             pad_to(spread_cols(wv), H_PAD, HS)], axis=1))      # (H_PAD, 3*HS)
        bqkv.append(jnp.zeros((1, 3 * HS), jnp.float32))
        wo.append(pad_to(spread_rows(wo_l), HS, H_PAD))          # (HS, H_PAD)
        bo.append(jnp.zeros((1, H_PAD), jnp.float32))
        ln1_g.append(pad_to(jnp.ones((1, HIDDEN), jnp.float32), 1, H_PAD))
        ln1_b.append(jnp.zeros((1, H_PAD), jnp.float32))
        w1.append(pad_to(w1_l, H_PAD, F_PAD))                    # (H_PAD, F_PAD)
        b1.append(jnp.zeros((1, F_PAD), jnp.float32))
        w2.append(pad_to(w2_l, F_PAD, H_PAD))                    # (F_PAD, H_PAD)
        b2.append(jnp.zeros((1, H_PAD), jnp.float32))
        ln2_g.append(pad_to(jnp.ones((1, HIDDEN), jnp.float32), 1, H_PAD))
        ln2_b.append(jnp.zeros((1, H_PAD), jnp.float32))

    params.update({
        'wqkv': jnp.stack(wqkv), 'bqkv': jnp.stack(bqkv),
        'wo': jnp.stack(wo), 'bo': jnp.stack(bo),
        'ln1_g': jnp.stack(ln1_g), 'ln1_b': jnp.stack(ln1_b),
        'w1': jnp.stack(w1), 'b1': jnp.stack(b1),
        'w2': jnp.stack(w2), 'b2': jnp.stack(b2),
        'ln2_g': jnp.stack(ln2_g), 'ln2_b': jnp.stack(ln2_b),
        'pooler_w': pad_to(normal(next(keys), (HIDDEN, HIDDEN)), H_PAD, H_PAD),
        'pooler_b': jnp.zeros((1, H_PAD), jnp.float32),
    })
    return params


# ------------------------------ forward --------------------------------------
def lang_encoder_forward(params, observations=None, lang_masks=None,
                         lang_feats=None, lang_token_type_ids=None,
                         headings=None, cand_rgb=None, cand_depth=None,
                         cand_direction=None, cand_mask=None, masks=None,
                         lang_feat_type='language'):
    """Mirrors Lang_Encoder_by_VLN_BERT.forward for the language branch.

    lang_feats:          (B, S) int32 token ids
    lang_token_type_ids: (B, S) int32
    lang_masks:          (B, S) 1.0 = valid token, 0.0 = padding
    Returns (h_t, encoded_lang_feats) = ((B, HIDDEN), (B, S, HIDDEN)).
    """
    B, S = lang_feats.shape
    assert S <= MAX_POS, "sequence length exceeds position-embedding table"

    # glue: embedding-table gathers have no clean rectangular-BlockSpec form
    word_e = jnp.take(params['word_emb'], lang_feats, axis=0)            # (B,S,HP)
    type_e = jnp.take(params['type_emb'], lang_token_type_ids, axis=0)   # (B,S,HP)
    pos_e = params['pos_emb'][:S]                                        # (S,HP)
    emb = (word_e + type_e + pos_e[None, :, :]).reshape(B * S, H_PAD)
    mask = lang_masks.astype(jnp.float32)

    kernel = _build_fused_kernel(B, S)
    seq_flat, pooled = pl.pallas_call(
        kernel,
        out_shape=(jax.ShapeDtypeStruct((B * S, H_PAD), jnp.float32),
                   jax.ShapeDtypeStruct((B, H_PAD), jnp.float32)),
    )(emb, mask,
      params['emb_ln_g'], params['emb_ln_b'],
      params['wqkv'], params['bqkv'], params['wo'], params['bo'],
      params['ln1_g'], params['ln1_b'], params['w1'], params['b1'],
      params['w2'], params['b2'], params['ln2_g'], params['ln2_b'],
      params['pooler_w'], params['pooler_b'])

    h_t = pooled[:, :HIDDEN]
    lang_out = seq_flat.reshape(B, S, H_PAD)[:, :, :HIDDEN]
    return h_t, lang_out


# ------------------------------ demo ------------------------------------------
if __name__ == "__main__":
    key = jax.random.PRNGKey(0)
    pkey, dkey = jax.random.split(key)
    params = init_params(pkey)

    B, S = 2, 8
    k_tok, _ = jax.random.split(dkey)
    token_ids = jax.random.randint(k_tok, (B, S), 0, VOCAB, dtype=jnp.int32)
    token_type_ids = jnp.zeros((B, S), jnp.int32)
    # second sequence has two padding tokens at the end
    lang_masks = jnp.ones((B, S), jnp.float32).at[1, 6:].set(0.0)

    h_t, lang_feats_enc = lang_encoder_forward(
        params,
        lang_feats=token_ids,
        lang_masks=lang_masks,
        lang_token_type_ids=token_type_ids,
        lang_feat_type='language')

    jax.block_until_ready((h_t, lang_feats_enc))
    assert h_t.shape == (B, HIDDEN)
    assert lang_feats_enc.shape == (B, S, HIDDEN)
    print("KERNEL_OK")
</pallas_src>

<mosaic_0001>
module attributes {stable_mosaic.version = 11 : i64} {
  func.func @kernel(%arg0: memref<16x128xf32, #tpu.memory_space<vmem>>, %arg1: memref<2x8xf32, #tpu.memory_space<vmem>>, %arg2: memref<1x128xf32, #tpu.memory_space<vmem>>, %arg3: memref<1x128xf32, #tpu.memory_space<vmem>>, %arg4: memref<2x128x1536xf32, #tpu.memory_space<vmem>>, %arg5: memref<2x1x1536xf32, #tpu.memory_space<vmem>>, %arg6: memref<2x512x128xf32, #tpu.memory_space<vmem>>, %arg7: memref<2x1x128xf32, #tpu.memory_space<vmem>>, %arg8: memref<2x1x128xf32, #tpu.memory_space<vmem>>, %arg9: memref<2x1x128xf32, #tpu.memory_space<vmem>>, %arg10: memref<2x128x128xf32, #tpu.memory_space<vmem>>, %arg11: memref<2x1x128xf32, #tpu.memory_space<vmem>>, %arg12: memref<2x128x128xf32, #tpu.memory_space<vmem>>, %arg13: memref<2x1x128xf32, #tpu.memory_space<vmem>>, %arg14: memref<2x1x128xf32, #tpu.memory_space<vmem>>, %arg15: memref<2x1x128xf32, #tpu.memory_space<vmem>>, %arg16: memref<128x128xf32, #tpu.memory_space<vmem>>, %arg17: memref<1x128xf32, #tpu.memory_space<vmem>>, %arg18: memref<16x128xf32, #tpu.memory_space<vmem>>, %arg19: memref<2x128xf32, #tpu.memory_space<vmem>>) attributes {dimension_semantics = [], scalar_prefetch = 0 : i64, scratch_operands = 0 : i64, tpu.core_type = #tpu.core_type<tc>} {
    %0 = tpu.iota {dimensions = array<i32: 1>} : vector<1x128xi32>
    %c32_i32 = arith.constant 32 : i32
    %1 = vector.broadcast %c32_i32 : i32 to vector<1x128xi32>
    %2 = arith.cmpi slt, %0, %1 : vector<1x128xi32>
    %3 = arith.extui %2 : vector<1x128xi1> to vector<1x128xi32>
    %4 = arith.sitofp %3 : vector<1x128xi32> to vector<1x128xf32>
    %c0 = arith.constant 0 : index
    %c0_0 = arith.constant 0 : index
    %5 = vector.load %arg0[%c0, %c0_0] : memref<16x128xf32, #tpu.memory_space<vmem>>, vector<16x128xf32>
    %c0_1 = arith.constant 0 : index
    %c0_2 = arith.constant 0 : index
    %6 = vector.load %arg2[%c0_1, %c0_2] : memref<1x128xf32, #tpu.memory_space<vmem>>, vector<1x128xf32>
    %c0_3 = arith.constant 0 : index
    %c0_4 = arith.constant 0 : index
    %7 = vector.load %arg3[%c0_3, %c0_4] : memref<1x128xf32, #tpu.memory_space<vmem>>, vector<1x128xf32>
    %8 = vector.broadcast %4 : vector<1x128xf32> to vector<16x128xf32>
    %9 = arith.mulf %5, %8 : vector<16x128xf32>
    %cst = arith.constant dense<0.000000e+00> : vector<16xf32>
    %10 = vector.multi_reduction <add>, %9, %cst [1] : vector<16x128xf32> to vector<16xf32>
    %11 = vector.shape_cast %10 : vector<16xf32> to vector<16x1xf32>
    %cst_5 = arith.constant 3.125000e-02 : f32
    %12 = vector.broadcast %cst_5 : f32 to vector<16x1xf32>
    %13 = arith.mulf %11, %12 : vector<16x1xf32>
    %14 = vector.broadcast %13 : vector<16x1xf32> to vector<16x128xf32>
    %15 = arith.subf %5, %14 : vector<16x128xf32>
    %16 = vector.broadcast %4 : vector<1x128xf32> to vector<16x128xf32>
    %17 = arith.mulf %15, %16 : vector<16x128xf32>
    %18 = arith.mulf %17, %17 : vector<16x128xf32>
    %cst_6 = arith.constant dense<0.000000e+00> : vector<16xf32>
    %19 = vector.multi_reduction <add>, %18, %cst_6 [1] : vector<16x128xf32> to vector<16xf32>
    %20 = vector.shape_cast %19 : vector<16xf32> to vector<16x1xf32>
    %cst_7 = arith.constant 3.125000e-02 : f32
    %21 = vector.broadcast %cst_7 : f32 to vector<16x1xf32>
    %22 = arith.mulf %20, %21 : vector<16x1xf32>
    %cst_8 = arith.constant 9.99999996E-13 : f32
    %23 = vector.broadcast %cst_8 : f32 to vector<16x1xf32>
    %24 = arith.addf %22, %23 : vector<16x1xf32>
    %25 = math.rsqrt %24 : vector<16x1xf32>
    %26 = vector.broadcast %25 : vector<16x1xf32> to vector<16x128xf32>
    %27 = arith.mulf %17, %26 : vector<16x128xf32>
    %28 = vector.broadcast %6 : vector<1x128xf32> to vector<16x128xf32>
    %29 = arith.mulf %27, %28 : vector<16x128xf32>
    %30 = vector.broadcast %7 : vector<1x128xf32> to vector<16x128xf32>
    %31 = arith.addf %29, %30 : vector<16x128xf32>
    %c0_9 = arith.constant 0 : index
    %c0_10 = arith.constant 0 : index
    %32 = vector.load %arg1[%c0_9, %c0_10] : memref<2x8xf32, #tpu.memory_space<vmem>>, vector<2x8xf32>
    %cst_11 = arith.constant 1.000000e+00 : f32
    %33 = vector.broadcast %cst_11 : f32 to vector<2x8xf32>
    %34 = arith.subf %33, %32 : vector<2x8xf32>
    %cst_12 = arith.constant -1.000000e+04 : f32
    %35 = vector.broadcast %cst_12 : f32 to vector<2x8xf32>
    %36 = arith.mulf %34, %35 : vector<2x8xf32>
    %c0_13 = arith.constant 0 : index
    %c0_14 = arith.constant 0 : index
    %c0_15 = arith.constant 0 : index
    %37 = vector.load %arg4[%c0_13, %c0_14, %c0_15] : memref<2x128x1536xf32, #tpu.memory_space<vmem>>, vector<1x128x1536xf32>
    %38 = vector.shape_cast %37 : vector<1x128x1536xf32> to vector<128x1536xf32>
    %cst_16 = arith.constant dense<0.000000e+00> : vector<16x1536xf32>
    %39 = tpu.matmul %31, %38, %cst_16 {dimension_numbers = #tpu.dot_dimension_numbers<[1], [0], [0], [1], [0, 0, 1, 1], [], []>} : vector<16x128xf32>, vector<128x1536xf32>, vector<16x1536xf32> -> vector<16x1536xf32>
    %c0_17 = arith.constant 0 : index
    %c0_18 = arith.constant 0 : index
    %c0_19 = arith.constant 0 : index
    %40 = vector.load %arg5[%c0_17, %c0_18, %c0_19] : memref<2x1x1536xf32, #tpu.memory_space<vmem>>, vector<1x1x1536xf32>
    %41 = vector.shape_cast %40 : vector<1x1x1536xf32> to vector<1x1536xf32>
    %42 = vector.broadcast %41 : vector<1x1536xf32> to vector<16x1536xf32>
    %43 = arith.addf %39, %42 : vector<16x1536xf32>
    %44 = vector.extract_strided_slice %43 {offsets = [0, 0], sizes = [16, 512], strides = [1, 1]} : vector<16x1536xf32> to vector<16x512xf32>
    %45 = vector.extract_strided_slice %43 {offsets = [0, 512], sizes = [16, 512], strides = [1, 1]} : vector<16x1536xf32> to vector<16x512xf32>
    %46 = vector.extract_strided_slice %43 {offsets = [0, 1024], sizes = [16, 512], strides = [1, 1]} : vector<16x1536xf32> to vector<16x512xf32>
    %47 = vector.extract_strided_slice %36 {offsets = [0, 0], sizes = [1, 8], strides = [1, 1]} : vector<2x8xf32> to vector<1x8xf32>
    %48 = vector.extract_strided_slice %44 {offsets = [0, 0], sizes = [8, 128], strides = [1, 1]} : vector<16x512xf32> to vector<8x128xf32>
    %49 = vector.extract_strided_slice %45 {offsets = [0, 0], sizes = [8, 128], strides = [1, 1]} : vector<16x512xf32> to vector<8x128xf32>
    %50 = vector.extract_strided_slice %46 {offsets = [0, 0], sizes = [8, 128], strides = [1, 1]} : vector<16x512xf32> to vector<8x128xf32>
    %cst_20 = arith.constant dense<0.000000e+00> : vector<8x8xf32>
    %51 = tpu.matmul %48, %49, %cst_20 {dimension_numbers = #tpu.dot_dimension_numbers<[1], [1], [0], [0], [0, 0, 1, 0], [], []>} : vector<8x128xf32>, vector<8x128xf32>, vector<8x8xf32> -> vector<8x8xf32>
    %cst_21 = arith.constant 0.353553385 : f32
    %52 = vector.broadcast %cst_21 : f32 to vector<8x8xf32>
    %53 = arith.mulf %51, %52 : vector<8x8xf32>
    %54 = vector.broadcast %47 : vector<1x8xf32> to vector<8x8xf32>
    %55 = arith.addf %53, %54 : vector<8x8xf32>
    %cst_22 = arith.constant dense<0xFF800000> : vector<8xf32>
    %56 = vector.multi_reduction <maximumf>, %55, %cst_22 [1] : vector<8x8xf32> to vector<8xf32>
    %57 = vector.shape_cast %56 : vector<8xf32> to vector<8x1xf32>
    %58 = vector.broadcast %57 : vector<8x1xf32> to vector<8x8xf32>
    %59 = arith.subf %55, %58 : vector<8x8xf32>
    %60 = math.exp %59 : vector<8x8xf32>
    %cst_23 = arith.constant dense<0.000000e+00> : vector<8xf32>
    %61 = vector.multi_reduction <add>, %60, %cst_23 [1] : vector<8x8xf32> to vector<8xf32>
    %62 = vector.shape_cast %61 : vector<8xf32> to vector<8x1xf32>
    %63 = vector.broadcast %62 : vector<8x1xf32> to vector<8x8xf32>
    %64 = arith.divf %60, %63 : vector<8x8xf32>
    %cst_24 = arith.constant dense<0.000000e+00> : vector<8x128xf32>
    %65 = tpu.matmul %64, %50, %cst_24 {dimension_numbers = #tpu.dot_dimension_numbers<[1], [0], [0], [1], [0, 0, 1, 1], [], []>} : vector<8x8xf32>, vector<8x128xf32>, vector<8x128xf32> -> vector<8x128xf32>
    %66 = vector.extract_strided_slice %44 {offsets = [0, 128], sizes = [8, 128], strides = [1, 1]} : vector<16x512xf32> to vector<8x128xf32>
    %67 = vector.extract_strided_slice %45 {offsets = [0, 128], sizes = [8, 128], strides = [1, 1]} : vector<16x512xf32> to vector<8x128xf32>
    %68 = vector.extract_strided_slice %46 {offsets = [0, 128], sizes = [8, 128], strides = [1, 1]} : vector<16x512xf32> to vector<8x128xf32>
    %cst_25 = arith.constant dense<0.000000e+00> : vector<8x8xf32>
    %69 = tpu.matmul %66, %67, %cst_25 {dimension_numbers = #tpu.dot_dimension_numbers<[1], [1], [0], [0], [0, 0, 1, 0], [], []>} : vector<8x128xf32>, vector<8x128xf32>, vector<8x8xf32> -> vector<8x8xf32>
    %cst_26 = arith.constant 0.353553385 : f32
    %70 = vector.broadcast %cst_26 : f32 to vector<8x8xf32>
    %71 = arith.mulf %69, %70 : vector<8x8xf32>
    %72 = vector.broadcast %47 : vector<1x8xf32> to vector<8x8xf32>
    %73 = arith.addf %71, %72 : vector<8x8xf32>
    %cst_27 = arith.constant dense<0xFF800000> : vector<8xf32>
    %74 = vector.multi_reduction <maximumf>, %73, %cst_27 [1] : vector<8x8xf32> to vector<8xf32>
    %75 = vector.shape_cast %74 : vector<8xf32> to vector<8x1xf32>
    %76 = vector.broadcast %75 : vector<8x1xf32> to vector<8x8xf32>
    %77 = arith.subf %73, %76 : vector<8x8xf32>
    %78 = math.exp %77 : vector<8x8xf32>
    %cst_28 = arith.constant dense<0.000000e+00> : vector<8xf32>
    %79 = vector.multi_reduction <add>, %78, %cst_28 [1] : vector<8x8xf32> to vector<8xf32>
    %80 = vector.shape_cast %79 : vector<8xf32> to vector<8x1xf32>
    %81 = vector.broadcast %80 : vector<8x1xf32> to vector<8x8xf32>
    %82 = arith.divf %78, %81 : vector<8x8xf32>
    %cst_29 = arith.constant dense<0.000000e+00> : vector<8x128xf32>
    %83 = tpu.matmul %82, %68, %cst_29 {dimension_numbers = #tpu.dot_dimension_numbers<[1], [0], [0], [1], [0, 0, 1, 1], [], []>} : vector<8x8xf32>, vector<8x128xf32>, vector<8x128xf32> -> vector<8x128xf32>
    %84 = vector.extract_strided_slice %44 {offsets = [0, 256], sizes = [8, 128], strides = [1, 1]} : vector<16x512xf32> to vector<8x128xf32>
    %85 = vector.extract_strided_slice %45 {offsets = [0, 256], sizes = [8, 128], strides = [1, 1]} : vector<16x512xf32> to vector<8x128xf32>
    %86 = vector.extract_strided_slice %46 {offsets = [0, 256], sizes = [8, 128], strides = [1, 1]} : vector<16x512xf32> to vector<8x128xf32>
    %cst_30 = arith.constant dense<0.000000e+00> : vector<8x8xf32>
    %87 = tpu.matmul %84, %85, %cst_30 {dimension_numbers = #tpu.dot_dimension_numbers<[1], [1], [0], [0], [0, 0, 1, 0], [], []>} : vector<8x128xf32>, vector<8x128xf32>, vector<8x8xf32> -> vector<8x8xf32>
    %cst_31 = arith.constant 0.353553385 : f32
    %88 = vector.broadcast %cst_31 : f32 to vector<8x8xf32>
    %89 = arith.mulf %87, %88 : vector<8x8xf32>
    %90 = vector.broadcast %47 : vector<1x8xf32> to vector<8x8xf32>
    %91 = arith.addf %89, %90 : vector<8x8xf32>
    %cst_32 = arith.constant dense<0xFF800000> : vector<8xf32>
    %92 = vector.multi_reduction <maximumf>, %91, %cst_32 [1] : vector<8x8xf32> to vector<8xf32>
    %93 = vector.shape_cast %92 : vector<8xf32> to vector<8x1xf32>
    %94 = vector.broadcast %93 : vector<8x1xf32> to vector<8x8xf32>
    %95 = arith.subf %91, %94 : vector<8x8xf32>
    %96 = math.exp %95 : vector<8x8xf32>
    %cst_33 = arith.constant dense<0.000000e+00> : vector<8xf32>
    %97 = vector.multi_reduction <add>, %96, %cst_33 [1] : vector<8x8xf32> to vector<8xf32>
    %98 = vector.shape_cast %97 : vector<8xf32> to vector<8x1xf32>
    %99 = vector.broadcast %98 : vector<8x1xf32> to vector<8x8xf32>
    %100 = arith.divf %96, %99 : vector<8x8xf32>
    %cst_34 = arith.constant dense<0.000000e+00> : vector<8x128xf32>
    %101 = tpu.matmul %100, %86, %cst_34 {dimension_numbers = #tpu.dot_dimension_numbers<[1], [0], [0], [1], [0, 0, 1, 1], [], []>} : vector<8x8xf32>, vector<8x128xf32>, vector<8x128xf32> -> vector<8x128xf32>
    %102 = vector.extract_strided_slice %44 {offsets = [0, 384], sizes = [8, 128], strides = [1, 1]} : vector<16x512xf32> to vector<8x128xf32>
    %103 = vector.extract_strided_slice %45 {offsets = [0, 384], sizes = [8, 128], strides = [1, 1]} : vector<16x512xf32> to vector<8x128xf32>
    %104 = vector.extract_strided_slice %46 {offsets = [0, 384], sizes = [8, 128], strides = [1, 1]} : vector<16x512xf32> to vector<8x128xf32>
    %cst_35 = arith.constant dense<0.000000e+00> : vector<8x8xf32>
    %105 = tpu.matmul %102, %103, %cst_35 {dimension_numbers = #tpu.dot_dimension_numbers<[1], [1], [0], [0], [0, 0, 1, 0], [], []>} : vector<8x128xf32>, vector<8x128xf32>, vector<8x8xf32> -> vector<8x8xf32>
    %cst_36 = arith.constant 0.353553385 : f32
    %106 = vector.broadcast %cst_36 : f32 to vector<8x8xf32>
    %107 = arith.mulf %105, %106 : vector<8x8xf32>
    %108 = vector.broadcast %47 : vector<1x8xf32> to vector<8x8xf32>
    %109 = arith.addf %107, %108 : vector<8x8xf32>
    %cst_37 = arith.constant dense<0xFF800000> : vector<8xf32>
    %110 = vector.multi_reduction <maximumf>, %109, %cst_37 [1] : vector<8x8xf32> to vector<8xf32>
    %111 = vector.shape_cast %110 : vector<8xf32> to vector<8x1xf32>
    %112 = vector.broadcast %111 : vector<8x1xf32> to vector<8x8xf32>
    %113 = arith.subf %109, %112 : vector<8x8xf32>
    %114 = math.exp %113 : vector<8x8xf32>
    %cst_38 = arith.constant dense<0.000000e+00> : vector<8xf32>
    %115 = vector.multi_reduction <add>, %114, %cst_38 [1] : vector<8x8xf32> to vector<8xf32>
    %116 = vector.shape_cast %115 : vector<8xf32> to vector<8x1xf32>
    %117 = vector.broadcast %116 : vector<8x1xf32> to vector<8x8xf32>
    %118 = arith.divf %114, %117 : vector<8x8xf32>
    %cst_39 = arith.constant dense<0.000000e+00> : vector<8x128xf32>
    %119 = tpu.matmul %118, %104, %cst_39 {dimension_numbers = #tpu.dot_dimension_numbers<[1], [0], [0], [1], [0, 0, 1, 1], [], []>} : vector<8x8xf32>, vector<8x128xf32>, vector<8x128xf32> -> vector<8x128xf32>
    %120 = tpu.concatenate %65, %83, %101, %119 in 1 : vector<8x128xf32>, vector<8x128xf32>, vector<8x128xf32>, vector<8x128xf32> -> vector<8x512xf32>
    %121 = vector.extract_strided_slice %36 {offsets = [1, 0], sizes = [1, 8], strides = [1, 1]} : vector<2x8xf32> to vector<1x8xf32>
    %122 = vector.extract_strided_slice %44 {offsets = [8, 0], sizes = [8, 128], strides = [1, 1]} : vector<16x512xf32> to vector<8x128xf32>
    %123 = vector.extract_strided_slice %45 {offsets = [8, 0], sizes = [8, 128], strides = [1, 1]} : vector<16x512xf32> to vector<8x128xf32>
    %124 = vector.extract_strided_slice %46 {offsets = [8, 0], sizes = [8, 128], strides = [1, 1]} : vector<16x512xf32> to vector<8x128xf32>
    %cst_40 = arith.constant dense<0.000000e+00> : vector<8x8xf32>
    %125 = tpu.matmul %122, %123, %cst_40 {dimension_numbers = #tpu.dot_dimension_numbers<[1], [1], [0], [0], [0, 0, 1, 0], [], []>} : vector<8x128xf32>, vector<8x128xf32>, vector<8x8xf32> -> vector<8x8xf32>
    %cst_41 = arith.constant 0.353553385 : f32
    %126 = vector.broadcast %cst_41 : f32 to vector<8x8xf32>
    %127 = arith.mulf %125, %126 : vector<8x8xf32>
    %128 = vector.broadcast %121 : vector<1x8xf32> to vector<8x8xf32>
    %129 = arith.addf %127, %128 : vector<8x8xf32>
    %cst_42 = arith.constant dense<0xFF800000> : vector<8xf32>
    %130 = vector.multi_reduction <maximumf>, %129, %cst_42 [1] : vector<8x8xf32> to vector<8xf32>
    %131 = vector.shape_cast %130 : vector<8xf32> to vector<8x1xf32>
    %132 = vector.broadcast %131 : vector<8x1xf32> to vector<8x8xf32>
    %133 = arith.subf %129, %132 : vector<8x8xf32>
    %134 = math.exp %133 : vector<8x8xf32>
    %cst_43 = arith.constant dense<0.000000e+00> : vector<8xf32>
    %135 = vector.multi_reduction <add>, %134, %cst_43 [1] : vector<8x8xf32> to vector<8xf32>
    %136 = vector.shape_cast %135 : vector<8xf32> to vector<8x1xf32>
    %137 = vector.broadcast %136 : vector<8x1xf32> to vector<8x8xf32>
    %138 = arith.divf %134, %137 : vector<8x8xf32>
    %cst_44 = arith.constant dense<0.000000e+00> : vector<8x128xf32>
    %139 = tpu.matmul %138, %124, %cst_44 {dimension_numbers = #tpu.dot_dimension_numbers<[1], [0], [0], [1], [0, 0, 1, 1], [], []>} : vector<8x8xf32>, vector<8x128xf32>, vector<8x128xf32> -> vector<8x128xf32>
    %140 = vector.extract_strided_slice %44 {offsets = [8, 128], sizes = [8, 128], strides = [1, 1]} : vector<16x512xf32> to vector<8x128xf32>
    %141 = vector.extract_strided_slice %45 {offsets = [8, 128], sizes = [8, 128], strides = [1, 1]} : vector<16x512xf32> to vector<8x128xf32>
    %142 = vector.extract_strided_slice %46 {offsets = [8, 128], sizes = [8, 128], strides = [1, 1]} : vector<16x512xf32> to vector<8x128xf32>
    %cst_45 = arith.constant dense<0.000000e+00> : vector<8x8xf32>
    %143 = tpu.matmul %140, %141, %cst_45 {dimension_numbers = #tpu.dot_dimension_numbers<[1], [1], [0], [0], [0, 0, 1, 0], [], []>} : vector<8x128xf32>, vector<8x128xf32>, vector<8x8xf32> -> vector<8x8xf32>
    %cst_46 = arith.constant 0.353553385 : f32
    %144 = vector.broadcast %cst_46 : f32 to vector<8x8xf32>
    %145 = arith.mulf %143, %144 : vector<8x8xf32>
    %146 = vector.broadcast %121 : vector<1x8xf32> to vector<8x8xf32>
    %147 = arith.addf %145, %146 : vector<8x8xf32>
    %cst_47 = arith.constant dense<0xFF800000> : vector<8xf32>
    %148 = vector.multi_reduction <maximumf>, %147, %cst_47 [1] : vector<8x8xf32> to vector<8xf32>
    %149 = vector.shape_cast %148 : vector<8xf32> to vector<8x1xf32>
    %150 = vector.broadcast %149 : vector<8x1xf32> to vector<8x8xf32>
    %151 = arith.subf %147, %150 : vector<8x8xf32>
    %152 = math.exp %151 : vector<8x8xf32>
    %cst_48 = arith.constant dense<0.000000e+00> : vector<8xf32>
    %153 = vector.multi_reduction <add>, %152, %cst_48 [1] : vector<8x8xf32> to vector<8xf32>
    %154 = vector.shape_cast %153 : vector<8xf32> to vector<8x1xf32>
    %155 = vector.broadcast %154 : vector<8x1xf32> to vector<8x8xf32>
    %156 = arith.divf %152, %155 : vector<8x8xf32>
    %cst_49 = arith.constant dense<0.000000e+00> : vector<8x128xf32>
    %157 = tpu.matmul %156, %142, %cst_49 {dimension_numbers = #tpu.dot_dimension_numbers<[1], [0], [0], [1], [0, 0, 1, 1], [], []>} : vector<8x8xf32>, vector<8x128xf32>, vector<8x128xf32> -> vector<8x128xf32>
    %158 = vector.extract_strided_slice %44 {offsets = [8, 256], sizes = [8, 128], strides = [1, 1]} : vector<16x512xf32> to vector<8x128xf32>
    %159 = vector.extract_strided_slice %45 {offsets = [8, 256], sizes = [8, 128], strides = [1, 1]} : vector<16x512xf32> to vector<8x128xf32>
    %160 = vector.extract_strided_slice %46 {offsets = [8, 256], sizes = [8, 128], strides = [1, 1]} : vector<16x512xf32> to vector<8x128xf32>
    %cst_50 = arith.constant dense<0.000000e+00> : vector<8x8xf32>
    %161 = tpu.matmul %158, %159, %cst_50 {dimension_numbers = #tpu.dot_dimension_numbers<[1], [1], [0], [0], [0, 0, 1, 0], [], []>} : vector<8x128xf32>, vector<8x128xf32>, vector<8x8xf32> -> vector<8x8xf32>
    %cst_51 = arith.constant 0.353553385 : f32
    %162 = vector.broadcast %cst_51 : f32 to vector<8x8xf32>
    %163 = arith.mulf %161, %162 : vector<8x8xf32>
    %164 = vector.broadcast %121 : vector<1x8xf32> to vector<8x8xf32>
    %165 = arith.addf %163, %164 : vector<8x8xf32>
    %cst_52 = arith.constant dense<0xFF800000> : vector<8xf32>
    %166 = vector.multi_reduction <maximumf>, %165, %cst_52 [1] : vector<8x8xf32> to vector<8xf32>
    %167 = vector.shape_cast %166 : vector<8xf32> to vector<8x1xf32>
    %168 = vector.broadcast %167 : vector<8x1xf32> to vector<8x8xf32>
    %169 = arith.subf %165, %168 : vector<8x8xf32>
    %170 = math.exp %169 : vector<8x8xf32>
    %cst_53 = arith.constant dense<0.000000e+00> : vector<8xf32>
    %171 = vector.multi_reduction <add>, %170, %cst_53 [1] : vector<8x8xf32> to vector<8xf32>
    %172 = vector.shape_cast %171 : vector<8xf32> to vector<8x1xf32>
    %173 = vector.broadcast %172 : vector<8x1xf32> to vector<8x8xf32>
    %174 = arith.divf %170, %173 : vector<8x8xf32>
    %cst_54 = arith.constant dense<0.000000e+00> : vector<8x128xf32>
    %175 = tpu.matmul %174, %160, %cst_54 {dimension_numbers = #tpu.dot_dimension_numbers<[1], [0], [0], [1], [0, 0, 1, 1], [], []>} : vector<8x8xf32>, vector<8x128xf32>, vector<8x128xf32> -> vector<8x128xf32>
    %176 = vector.extract_strided_slice %44 {offsets = [8, 384], sizes = [8, 128], strides = [1, 1]} : vector<16x512xf32> to vector<8x128xf32>
    %177 = vector.extract_strided_slice %45 {offsets = [8, 384], sizes = [8, 128], strides = [1, 1]} : vector<16x512xf32> to vector<8x128xf32>
    %178 = vector.extract_strided_slice %46 {offsets = [8, 384], sizes = [8, 128], strides = [1, 1]} : vector<16x512xf32> to vector<8x128xf32>
    %cst_55 = arith.constant dense<0.000000e+00> : vector<8x8xf32>
    %179 = tpu.matmul %176, %177, %cst_55 {dimension_numbers = #tpu.dot_dimension_numbers<[1], [1], [0], [0], [0, 0, 1, 0], [], []>} : vector<8x128xf32>, vector<8x128xf32>, vector<8x8xf32> -> vector<8x8xf32>
    %cst_56 = arith.constant 0.353553385 : f32
    %180 = vector.broadcast %cst_56 : f32 to vector<8x8xf32>
    %181 = arith.mulf %179, %180 : vector<8x8xf32>
    %182 = vector.broadcast %121 : vector<1x8xf32> to vector<8x8xf32>
    %183 = arith.addf %181, %182 : vector<8x8xf32>
    %cst_57 = arith.constant dense<0xFF800000> : vector<8xf32>
    %184 = vector.multi_reduction <maximumf>, %183, %cst_57 [1] : vector<8x8xf32> to vector<8xf32>
    %185 = vector.shape_cast %184 : vector<8xf32> to vector<8x1xf32>
    %186 = vector.broadcast %185 : vector<8x1xf32> to vector<8x8xf32>
    %187 = arith.subf %183, %186 : vector<8x8xf32>
    %188 = math.exp %187 : vector<8x8xf32>
    %cst_58 = arith.constant dense<0.000000e+00> : vector<8xf32>
    %189 = vector.multi_reduction <add>, %188, %cst_58 [1] : vector<8x8xf32> to vector<8xf32>
    %190 = vector.shape_cast %189 : vector<8xf32> to vector<8x1xf32>
    %191 = vector.broadcast %190 : vector<8x1xf32> to vector<8x8xf32>
    %192 = arith.divf %188, %191 : vector<8x8xf32>
    %cst_59 = arith.constant dense<0.000000e+00> : vector<8x128xf32>
    %193 = tpu.matmul %192, %178, %cst_59 {dimension_numbers = #tpu.dot_dimension_numbers<[1], [0], [0], [1], [0, 0, 1, 1], [], []>} : vector<8x8xf32>, vector<8x128xf32>, vector<8x128xf32> -> vector<8x128xf32>
    %194 = tpu.concatenate %139, %157, %175, %193 in 1 : vector<8x128xf32>, vector<8x128xf32>, vector<8x128xf32>, vector<8x128xf32> -> vector<8x512xf32>
    %195 = tpu.concatenate %120, %194 in 0 : vector<8x512xf32>, vector<8x512xf32> -> vector<16x512xf32>
    %c0_60 = arith.constant 0 : index
    %c0_61 = arith.constant 0 : index
    %c0_62 = arith.constant 0 : index
    %196 = vector.load %arg6[%c0_60, %c0_61, %c0_62] : memref<2x512x128xf32, #tpu.memory_space<vmem>>, vector<1x512x128xf32>
    %197 = vector.shape_cast %196 : vector<1x512x128xf32> to vector<512x128xf32>
    %cst_63 = arith.constant dense<0.000000e+00> : vector<16x128xf32>
    %198 = tpu.matmul %195, %197, %cst_63 {dimension_numbers = #tpu.dot_dimension_numbers<[1], [0], [0], [1], [0, 0, 1, 1], [], []>} : vector<16x512xf32>, vector<512x128xf32>, vector<16x128xf32> -> vector<16x128xf32>
    %c0_64 = arith.constant 0 : index
    %c0_65 = arith.constant 0 : index
    %c0_66 = arith.constant 0 : index
    %199 = vector.load %arg7[%c0_64, %c0_65, %c0_66] : memref<2x1x128xf32, #tpu.memory_space<vmem>>, vector<1x1x128xf32>
    %200 = vector.shape_cast %199 : vector<1x1x128xf32> to vector<1x128xf32>
    %201 = vector.broadcast %200 : vector<1x128xf32> to vector<16x128xf32>
    %202 = arith.addf %198, %201 : vector<16x128xf32>
    %203 = arith.addf %31, %202 : vector<16x128xf32>
    %c0_67 = arith.constant 0 : index
    %c0_68 = arith.constant 0 : index
    %c0_69 = arith.constant 0 : index
    %204 = vector.load %arg8[%c0_67, %c0_68, %c0_69] : memref<2x1x128xf32, #tpu.memory_space<vmem>>, vector<1x1x128xf32>
    %205 = vector.shape_cast %204 : vector<1x1x128xf32> to vector<1x128xf32>
    %c0_70 = arith.constant 0 : index
    %c0_71 = arith.constant 0 : index
    %c0_72 = arith.constant 0 : index
    %206 = vector.load %arg9[%c0_70, %c0_71, %c0_72] : memref<2x1x128xf32, #tpu.memory_space<vmem>>, vector<1x1x128xf32>
    %207 = vector.shape_cast %206 : vector<1x1x128xf32> to vector<1x128xf32>
    %208 = vector.broadcast %4 : vector<1x128xf32> to vector<16x128xf32>
    %209 = arith.mulf %203, %208 : vector<16x128xf32>
    %cst_73 = arith.constant dense<0.000000e+00> : vector<16xf32>
    %210 = vector.multi_reduction <add>, %209, %cst_73 [1] : vector<16x128xf32> to vector<16xf32>
    %211 = vector.shape_cast %210 : vector<16xf32> to vector<16x1xf32>
    %cst_74 = arith.constant 3.125000e-02 : f32
    %212 = vector.broadcast %cst_74 : f32 to vector<16x1xf32>
    %213 = arith.mulf %211, %212 : vector<16x1xf32>
    %214 = vector.broadcast %213 : vector<16x1xf32> to vector<16x128xf32>
    %215 = arith.subf %203, %214 : vector<16x128xf32>
    %216 = vector.broadcast %4 : vector<1x128xf32> to vector<16x128xf32>
    %217 = arith.mulf %215, %216 : vector<16x128xf32>
    %218 = arith.mulf %217, %217 : vector<16x128xf32>
    %cst_75 = arith.constant dense<0.000000e+00> : vector<16xf32>
    %219 = vector.multi_reduction <add>, %218, %cst_75 [1] : vector<16x128xf32> to vector<16xf32>
    %220 = vector.shape_cast %219 : vector<16xf32> to vector<16x1xf32>
    %cst_76 = arith.constant 3.125000e-02 : f32
    %221 = vector.broadcast %cst_76 : f32 to vector<16x1xf32>
    %222 = arith.mulf %220, %221 : vector<16x1xf32>
    %cst_77 = arith.constant 9.99999996E-13 : f32
    %223 = vector.broadcast %cst_77 : f32 to vector<16x1xf32>
    %224 = arith.addf %222, %223 : vector<16x1xf32>
    %225 = math.rsqrt %224 : vector<16x1xf32>
    %226 = vector.broadcast %225 : vector<16x1xf32> to vector<16x128xf32>
    %227 = arith.mulf %217, %226 : vector<16x128xf32>
    %228 = vector.broadcast %205 : vector<1x128xf32> to vector<16x128xf32>
    %229 = arith.mulf %227, %228 : vector<16x128xf32>
    %230 = vector.broadcast %207 : vector<1x128xf32> to vector<16x128xf32>
    %231 = arith.addf %229, %230 : vector<16x128xf32>
    %c0_78 = arith.constant 0 : index
    %c0_79 = arith.constant 0 : index
    %c0_80 = arith.constant 0 : index
    %232 = vector.load %arg10[%c0_78, %c0_79, %c0_80] : memref<2x128x128xf32, #tpu.memory_space<vmem>>, vector<1x128x128xf32>
    %233 = vector.shape_cast %232 : vector<1x128x128xf32> to vector<128x128xf32>
    %cst_81 = arith.constant dense<0.000000e+00> : vector<16x128xf32>
    %234 = tpu.matmul %231, %233, %cst_81 {dimension_numbers = #tpu.dot_dimension_numbers<[1], [0], [0], [1], [0, 0, 1, 1], [], []>} : vector<16x128xf32>, vector<128x128xf32>, vector<16x128xf32> -> vector<16x128xf32>
    %c0_82 = arith.constant 0 : index
    %c0_83 = arith.constant 0 : index
    %c0_84 = arith.constant 0 : index
    %235 = vector.load %arg11[%c0_82, %c0_83, %c0_84] : memref<2x1x128xf32, #tpu.memory_space<vmem>>, vector<1x1x128xf32>
    %236 = vector.shape_cast %235 : vector<1x1x128xf32> to vector<1x128xf32>
    %237 = vector.broadcast %236 : vector<1x128xf32> to vector<16x128xf32>
    %238 = arith.addf %234, %237 : vector<16x128xf32>
    %239 = arith.mulf %238, %238 : vector<16x128xf32>
    %240 = arith.mulf %238, %239 : vector<16x128xf32>
    %cst_85 = arith.constant 4.471500e-02 : f32
    %241 = vector.broadcast %cst_85 : f32 to vector<16x128xf32>
    %242 = arith.mulf %241, %240 : vector<16x128xf32>
    %243 = arith.addf %238, %242 : vector<16x128xf32>
    %cst_86 = arith.constant 0.797884583 : f32
    %244 = vector.broadcast %cst_86 : f32 to vector<16x128xf32>
    %245 = arith.mulf %244, %243 : vector<16x128xf32>
    %246 = math.tanh %245 : vector<16x128xf32>
    %cst_87 = arith.constant 1.000000e+00 : f32
    %247 = vector.broadcast %cst_87 : f32 to vector<16x128xf32>
    %248 = arith.addf %247, %246 : vector<16x128xf32>
    %cst_88 = arith.constant 5.000000e-01 : f32
    %249 = vector.broadcast %cst_88 : f32 to vector<16x128xf32>
    %250 = arith.mulf %249, %248 : vector<16x128xf32>
    %251 = arith.mulf %238, %250 : vector<16x128xf32>
    %c0_89 = arith.constant 0 : index
    %c0_90 = arith.constant 0 : index
    %c0_91 = arith.constant 0 : index
    %252 = vector.load %arg12[%c0_89, %c0_90, %c0_91] : memref<2x128x128xf32, #tpu.memory_space<vmem>>, vector<1x128x128xf32>
    %253 = vector.shape_cast %252 : vector<1x128x128xf32> to vector<128x128xf32>
    %cst_92 = arith.constant dense<0.000000e+00> : vector<16x128xf32>
    %254 = tpu.matmul %251, %253, %cst_92 {dimension_numbers = #tpu.dot_dimension_numbers<[1], [0], [0], [1], [0, 0, 1, 1], [], []>} : vector<16x128xf32>, vector<128x128xf32>, vector<16x128xf32> -> vector<16x128xf32>
    %c0_93 = arith.constant 0 : index
    %c0_94 = arith.constant 0 : index
    %c0_95 = arith.constant 0 : index
    %255 = vector.load %arg13[%c0_93, %c0_94, %c0_95] : memref<2x1x128xf32, #tpu.memory_space<vmem>>, vector<1x1x128xf32>
    %256 = vector.shape_cast %255 : vector<1x1x128xf32> to vector<1x128xf32>
    %257 = vector.broadcast %256 : vector<1x128xf32> to vector<16x128xf32>
    %258 = arith.addf %254, %257 : vector<16x128xf32>
    %259 = arith.addf %231, %258 : vector<16x128xf32>
    %c0_96 = arith.constant 0 : index
    %c0_97 = arith.constant 0 : index
    %c0_98 = arith.constant 0 : index
    %260 = vector.load %arg14[%c0_96, %c0_97, %c0_98] : memref<2x1x128xf32, #tpu.memory_space<vmem>>, vector<1x1x128xf32>
    %261 = vector.shape_cast %260 : vector<1x1x128xf32> to vector<1x128xf32>
    %c0_99 = arith.constant 0 : index
    %c0_100 = arith.constant 0 : index
    %c0_101 = arith.constant 0 : index
    %262 = vector.load %arg15[%c0_99, %c0_100, %c0_101] : memref<2x1x128xf32, #tpu.memory_space<vmem>>, vector<1x1x128xf32>
    %263 = vector.shape_cast %262 : vector<1x1x128xf32> to vector<1x128xf32>
    %264 = vector.broadcast %4 : vector<1x128xf32> to vector<16x128xf32>
    %265 = arith.mulf %259, %264 : vector<16x128xf32>
    %cst_102 = arith.constant dense<0.000000e+00> : vector<16xf32>
    %266 = vector.multi_reduction <add>, %265, %cst_102 [1] : vector<16x128xf32> to vector<16xf32>
    %267 = vector.shape_cast %266 : vector<16xf32> to vector<16x1xf32>
    %cst_103 = arith.constant 3.125000e-02 : f32
    %268 = vector.broadcast %cst_103 : f32 to vector<16x1xf32>
    %269 = arith.mulf %267, %268 : vector<16x1xf32>
    %270 = vector.broadcast %269 : vector<16x1xf32> to vector<16x128xf32>
    %271 = arith.subf %259, %270 : vector<16x128xf32>
    %272 = vector.broadcast %4 : vector<1x128xf32> to vector<16x128xf32>
    %273 = arith.mulf %271, %272 : vector<16x128xf32>
    %274 = arith.mulf %273, %273 : vector<16x128xf32>
    %cst_104 = arith.constant dense<0.000000e+00> : vector<16xf32>
    %275 = vector.multi_reduction <add>, %274, %cst_104 [1] : vector<16x128xf32> to vector<16xf32>
    %276 = vector.shape_cast %275 : vector<16xf32> to vector<16x1xf32>
    %cst_105 = arith.constant 3.125000e-02 : f32
    %277 = vector.broadcast %cst_105 : f32 to vector<16x1xf32>
    %278 = arith.mulf %276, %277 : vector<16x1xf32>
    %cst_106 = arith.constant 9.99999996E-13 : f32
    %279 = vector.broadcast %cst_106 : f32 to vector<16x1xf32>
    %280 = arith.addf %278, %279 : vector<16x1xf32>
    %281 = math.rsqrt %280 : vector<16x1xf32>
    %282 = vector.broadcast %281 : vector<16x1xf32> to vector<16x128xf32>
    %283 = arith.mulf %273, %282 : vector<16x128xf32>
    %284 = vector.broadcast %261 : vector<1x128xf32> to vector<16x128xf32>
    %285 = arith.mulf %283, %284 : vector<16x128xf32>
    %286 = vector.broadcast %263 : vector<1x128xf32> to vector<16x128xf32>
    %287 = arith.addf %285, %286 : vector<16x128xf32>
    %c1 = arith.constant 1 : index
    %c0_107 = arith.constant 0 : index
    %c0_108 = arith.constant 0 : index
    %288 = vector.load %arg4[%c1, %c0_107, %c0_108] : memref<2x128x1536xf32, #tpu.memory_space<vmem>>, vector<1x128x1536xf32>
    %289 = vector.shape_cast %288 : vector<1x128x1536xf32> to vector<128x1536xf32>
    %cst_109 = arith.constant dense<0.000000e+00> : vector<16x1536xf32>
    %290 = tpu.matmul %287, %289, %cst_109 {dimension_numbers = #tpu.dot_dimension_numbers<[1], [0], [0], [1], [0, 0, 1, 1], [], []>} : vector<16x128xf32>, vector<128x1536xf32>, vector<16x1536xf32> -> vector<16x1536xf32>
    %c1_110 = arith.constant 1 : index
    %c0_111 = arith.constant 0 : index
    %c0_112 = arith.constant 0 : index
    %291 = vector.load %arg5[%c1_110, %c0_111, %c0_112] : memref<2x1x1536xf32, #tpu.memory_space<vmem>>, vector<1x1x1536xf32>
    %292 = vector.shape_cast %291 : vector<1x1x1536xf32> to vector<1x1536xf32>
    %293 = vector.broadcast %292 : vector<1x1536xf32> to vector<16x1536xf32>
    %294 = arith.addf %290, %293 : vector<16x1536xf32>
    %295 = vector.extract_strided_slice %294 {offsets = [0, 0], sizes = [16, 512], strides = [1, 1]} : vector<16x1536xf32> to vector<16x512xf32>
    %296 = vector.extract_strided_slice %294 {offsets = [0, 512], sizes = [16, 512], strides = [1, 1]} : vector<16x1536xf32> to vector<16x512xf32>
    %297 = vector.extract_strided_slice %294 {offsets = [0, 1024], sizes = [16, 512], strides = [1, 1]} : vector<16x1536xf32> to vector<16x512xf32>
    %298 = vector.extract_strided_slice %36 {offsets = [0, 0], sizes = [1, 8], strides = [1, 1]} : vector<2x8xf32> to vector<1x8xf32>
    %299 = vector.extract_strided_slice %295 {offsets = [0, 0], sizes = [8, 128], strides = [1, 1]} : vector<16x512xf32> to vector<8x128xf32>
    %300 = vector.extract_strided_slice %296 {offsets = [0, 0], sizes = [8, 128], strides = [1, 1]} : vector<16x512xf32> to vector<8x128xf32>
    %301 = vector.extract_strided_slice %297 {offsets = [0, 0], sizes = [8, 128], strides = [1, 1]} : vector<16x512xf32> to vector<8x128xf32>
    %cst_113 = arith.constant dense<0.000000e+00> : vector<8x8xf32>
    %302 = tpu.matmul %299, %300, %cst_113 {dimension_numbers = #tpu.dot_dimension_numbers<[1], [1], [0], [0], [0, 0, 1, 0], [], []>} : vector<8x128xf32>, vector<8x128xf32>, vector<8x8xf32> -> vector<8x8xf32>
    %cst_114 = arith.constant 0.353553385 : f32
    %303 = vector.broadcast %cst_114 : f32 to vector<8x8xf32>
    %304 = arith.mulf %302, %303 : vector<8x8xf32>
    %305 = vector.broadcast %298 : vector<1x8xf32> to vector<8x8xf32>
    %306 = arith.addf %304, %305 : vector<8x8xf32>
    %cst_115 = arith.constant dense<0xFF800000> : vector<8xf32>
    %307 = vector.multi_reduction <maximumf>, %306, %cst_115 [1] : vector<8x8xf32> to vector<8xf32>
    %308 = vector.shape_cast %307 : vector<8xf32> to vector<8x1xf32>
    %309 = vector.broadcast %308 : vector<8x1xf32> to vector<8x8xf32>
    %310 = arith.subf %306, %309 : vector<8x8xf32>
    %311 = math.exp %310 : vector<8x8xf32>
    %cst_116 = arith.constant dense<0.000000e+00> : vector<8xf32>
    %312 = vector.multi_reduction <add>, %311, %cst_116 [1] : vector<8x8xf32> to vector<8xf32>
    %313 = vector.shape_cast %312 : vector<8xf32> to vector<8x1xf32>
    %314 = vector.broadcast %313 : vector<8x1xf32> to vector<8x8xf32>
    %315 = arith.divf %311, %314 : vector<8x8xf32>
    %cst_117 = arith.constant dense<0.000000e+00> : vector<8x128xf32>
    %316 = tpu.matmul %315, %301, %cst_117 {dimension_numbers = #tpu.dot_dimension_numbers<[1], [0], [0], [1], [0, 0, 1, 1], [], []>} : vector<8x8xf32>, vector<8x128xf32>, vector<8x128xf32> -> vector<8x128xf32>
    %317 = vector.extract_strided_slice %295 {offsets = [0, 128], sizes = [8, 128], strides = [1, 1]} : vector<16x512xf32> to vector<8x128xf32>
    %318 = vector.extract_strided_slice %296 {offsets = [0, 128], sizes = [8, 128], strides = [1, 1]} : vector<16x512xf32> to vector<8x128xf32>
    %319 = vector.extract_strided_slice %297 {offsets = [0, 128], sizes = [8, 128], strides = [1, 1]} : vector<16x512xf32> to vector<8x128xf32>
    %cst_118 = arith.constant dense<0.000000e+00> : vector<8x8xf32>
    %320 = tpu.matmul %317, %318, %cst_118 {dimension_numbers = #tpu.dot_dimension_numbers<[1], [1], [0], [0], [0, 0, 1, 0], [], []>} : vector<8x128xf32>, vector<8x128xf32>, vector<8x8xf32> -> vector<8x8xf32>
    %cst_119 = arith.constant 0.353553385 : f32
    %321 = vector.broadcast %cst_119 : f32 to vector<8x8xf32>
    %322 = arith.mulf %320, %321 : vector<8x8xf32>
    %323 = vector.broadcast %298 : vector<1x8xf32> to vector<8x8xf32>
    %324 = arith.addf %322, %323 : vector<8x8xf32>
    %cst_120 = arith.constant dense<0xFF800000> : vector<8xf32>
    %325 = vector.multi_reduction <maximumf>, %324, %cst_120 [1] : vector<8x8xf32> to vector<8xf32>
    %326 = vector.shape_cast %325 : vector<8xf32> to vector<8x1xf32>
    %327 = vector.broadcast %326 : vector<8x1xf32> to vector<8x8xf32>
    %328 = arith.subf %324, %327 : vector<8x8xf32>
    %329 = math.exp %328 : vector<8x8xf32>
    %cst_121 = arith.constant dense<0.000000e+00> : vector<8xf32>
    %330 = vector.multi_reduction <add>, %329, %cst_121 [1] : vector<8x8xf32> to vector<8xf32>
    %331 = vector.shape_cast %330 : vector<8xf32> to vector<8x1xf32>
    %332 = vector.broadcast %331 : vector<8x1xf32> to vector<8x8xf32>
    %333 = arith.divf %329, %332 : vector<8x8xf32>
    %cst_122 = arith.constant dense<0.000000e+00> : vector<8x128xf32>
    %334 = tpu.matmul %333, %319, %cst_122 {dimension_numbers = #tpu.dot_dimension_numbers<[1], [0], [0], [1], [0, 0, 1, 1], [], []>} : vector<8x8xf32>, vector<8x128xf32>, vector<8x128xf32> -> vector<8x128xf32>
    %335 = vector.extract_strided_slice %295 {offsets = [0, 256], sizes = [8, 128], strides = [1, 1]} : vector<16x512xf32> to vector<8x128xf32>
    %336 = vector.extract_strided_slice %296 {offsets = [0, 256], sizes = [8, 128], strides = [1, 1]} : vector<16x512xf32> to vector<8x128xf32>
    %337 = vector.extract_strided_slice %297 {offsets = [0, 256], sizes = [8, 128], strides = [1, 1]} : vector<16x512xf32> to vector<8x128xf32>
    %cst_123 = arith.constant dense<0.000000e+00> : vector<8x8xf32>
    %338 = tpu.matmul %335, %336, %cst_123 {dimension_numbers = #tpu.dot_dimension_numbers<[1], [1], [0], [0], [0, 0, 1, 0], [], []>} : vector<8x128xf32>, vector<8x128xf32>, vector<8x8xf32> -> vector<8x8xf32>
    %cst_124 = arith.constant 0.353553385 : f32
    %339 = vector.broadcast %cst_124 : f32 to vector<8x8xf32>
    %340 = arith.mulf %338, %339 : vector<8x8xf32>
    %341 = vector.broadcast %298 : vector<1x8xf32> to vector<8x8xf32>
    %342 = arith.addf %340, %341 : vector<8x8xf32>
    %cst_125 = arith.constant dense<0xFF800000> : vector<8xf32>
    %343 = vector.multi_reduction <maximumf>, %342, %cst_125 [1] : vector<8x8xf32> to vector<8xf32>
    %344 = vector.shape_cast %343 : vector<8xf32> to vector<8x1xf32>
    %345 = vector.broadcast %344 : vector<8x1xf32> to vector<8x8xf32>
    %346 = arith.subf %342, %345 : vector<8x8xf32>
    %347 = math.exp %346 : vector<8x8xf32>
    %cst_126 = arith.constant dense<0.000000e+00> : vector<8xf32>
    %348 = vector.multi_reduction <add>, %347, %cst_126 [1] : vector<8x8xf32> to vector<8xf32>
    %349 = vector.shape_cast %348 : vector<8xf32> to vector<8x1xf32>
    %350 = vector.broadcast %349 : vector<8x1xf32> to vector<8x8xf32>
    %351 = arith.divf %347, %350 : vector<8x8xf32>
    %cst_127 = arith.constant dense<0.000000e+00> : vector<8x128xf32>
    %352 = tpu.matmul %351, %337, %cst_127 {dimension_numbers = #tpu.dot_dimension_numbers<[1], [0], [0], [1], [0, 0, 1, 1], [], []>} : vector<8x8xf32>, vector<8x128xf32>, vector<8x128xf32> -> vector<8x128xf32>
    %353 = vector.extract_strided_slice %295 {offsets = [0, 384], sizes = [8, 128], strides = [1, 1]} : vector<16x512xf32> to vector<8x128xf32>
    %354 = vector.extract_strided_slice %296 {offsets = [0, 384], sizes = [8, 128], strides = [1, 1]} : vector<16x512xf32> to vector<8x128xf32>
    %355 = vector.extract_strided_slice %297 {offsets = [0, 384], sizes = [8, 128], strides = [1, 1]} : vector<16x512xf32> to vector<8x128xf32>
    %cst_128 = arith.constant dense<0.000000e+00> : vector<8x8xf32>
    %356 = tpu.matmul %353, %354, %cst_128 {dimension_numbers = #tpu.dot_dimension_numbers<[1], [1], [0], [0], [0, 0, 1, 0], [], []>} : vector<8x128xf32>, vector<8x128xf32>, vector<8x8xf32> -> vector<8x8xf32>
    %cst_129 = arith.constant 0.353553385 : f32
    %357 = vector.broadcast %cst_129 : f32 to vector<8x8xf32>
    %358 = arith.mulf %356, %357 : vector<8x8xf32>
    %359 = vector.broadcast %298 : vector<1x8xf32> to vector<8x8xf32>
    %360 = arith.addf %358, %359 : vector<8x8xf32>
    %cst_130 = arith.constant dense<0xFF800000> : vector<8xf32>
    %361 = vector.multi_reduction <maximumf>, %360, %cst_130 [1] : vector<8x8xf32> to vector<8xf32>
    %362 = vector.shape_cast %361 : vector<8xf32> to vector<8x1xf32>
    %363 = vector.broadcast %362 : vector<8x1xf32> to vector<8x8xf32>
    %364 = arith.subf %360, %363 : vector<8x8xf32>
    %365 = math.exp %364 : vector<8x8xf32>
    %cst_131 = arith.constant dense<0.000000e+00> : vector<8xf32>
    %366 = vector.multi_reduction <add>, %365, %cst_131 [1] : vector<8x8xf32> to vector<8xf32>
    %367 = vector.shape_cast %366 : vector<8xf32> to vector<8x1xf32>
    %368 = vector.broadcast %367 : vector<8x1xf32> to vector<8x8xf32>
    %369 = arith.divf %365, %368 : vector<8x8xf32>
    %cst_132 = arith.constant dense<0.000000e+00> : vector<8x128xf32>
    %370 = tpu.matmul %369, %355, %cst_132 {dimension_numbers = #tpu.dot_dimension_numbers<[1], [0], [0], [1], [0, 0, 1, 1], [], []>} : vector<8x8xf32>, vector<8x128xf32>, vector<8x128xf32> -> vector<8x128xf32>
    %371 = tpu.concatenate %316, %334, %352, %370 in 1 : vector<8x128xf32>, vector<8x128xf32>, vector<8x128xf32>, vector<8x128xf32> -> vector<8x512xf32>
    %372 = vector.extract_strided_slice %36 {offsets = [1, 0], sizes = [1, 8], strides = [1, 1]} : vector<2x8xf32> to vector<1x8xf32>
    %373 = vector.extract_strided_slice %295 {offsets = [8, 0], sizes = [8, 128], strides = [1, 1]} : vector<16x512xf32> to vector<8x128xf32>
    %374 = vector.extract_strided_slice %296 {offsets = [8, 0], sizes = [8, 128], strides = [1, 1]} : vector<16x512xf32> to vector<8x128xf32>
    %375 = vector.extract_strided_slice %297 {offsets = [8, 0], sizes = [8, 128], strides = [1, 1]} : vector<16x512xf32> to vector<8x128xf32>
    %cst_133 = arith.constant dense<0.000000e+00> : vector<8x8xf32>
    %376 = tpu.matmul %373, %374, %cst_133 {dimension_numbers = #tpu.dot_dimension_numbers<[1], [1], [0], [0], [0, 0, 1, 0], [], []>} : vector<8x128xf32>, vector<8x128xf32>, vector<8x8xf32> -> vector<8x8xf32>
    %cst_134 = arith.constant 0.353553385 : f32
    %377 = vector.broadcast %cst_134 : f32 to vector<8x8xf32>
    %378 = arith.mulf %376, %377 : vector<8x8xf32>
    %379 = vector.broadcast %372 : vector<1x8xf32> to vector<8x8xf32>
    %380 = arith.addf %378, %379 : vector<8x8xf32>
    %cst_135 = arith.constant dense<0xFF800000> : vector<8xf32>
    %381 = vector.multi_reduction <maximumf>, %380, %cst_135 [1] : vector<8x8xf32> to vector<8xf32>
    %382 = vector.shape_cast %381 : vector<8xf32> to vector<8x1xf32>
    %383 = vector.broadcast %382 : vector<8x1xf32> to vector<8x8xf32>
    %384 = arith.subf %380, %383 : vector<8x8xf32>
    %385 = math.exp %384 : vector<8x8xf32>
    %cst_136 = arith.constant dense<0.000000e+00> : vector<8xf32>
    %386 = vector.multi_reduction <add>, %385, %cst_136 [1] : vector<8x8xf32> to vector<8xf32>
    %387 = vector.shape_cast %386 : vector<8xf32> to vector<8x1xf32>
    %388 = vector.broadcast %387 : vector<8x1xf32> to vector<8x8xf32>
    %389 = arith.divf %385, %388 : vector<8x8xf32>
    %cst_137 = arith.constant dense<0.000000e+00> : vector<8x128xf32>
    %390 = tpu.matmul %389, %375, %cst_137 {dimension_numbers = #tpu.dot_dimension_numbers<[1], [0], [0], [1], [0, 0, 1, 1], [], []>} : vector<8x8xf32>, vector<8x128xf32>, vector<8x128xf32> -> vector<8x128xf32>
    %391 = vector.extract_strided_slice %295 {offsets = [8, 128], sizes = [8, 128], strides = [1, 1]} : vector<16x512xf32> to vector<8x128xf32>
    %392 = vector.extract_strided_slice %296 {offsets = [8, 128], sizes = [8, 128], strides = [1, 1]} : vector<16x512xf32> to vector<8x128xf32>
    %393 = vector.extract_strided_slice %297 {offsets = [8, 128], sizes = [8, 128], strides = [1, 1]} : vector<16x512xf32> to vector<8x128xf32>
    %cst_138 = arith.constant dense<0.000000e+00> : vector<8x8xf32>
    %394 = tpu.matmul %391, %392, %cst_138 {dimension_numbers = #tpu.dot_dimension_numbers<[1], [1], [0], [0], [0, 0, 1, 0], [], []>} : vector<8x128xf32>, vector<8x128xf32>, vector<8x8xf32> -> vector<8x8xf32>
    %cst_139 = arith.constant 0.353553385 : f32
    %395 = vector.broadcast %cst_139 : f32 to vector<8x8xf32>
    %396 = arith.mulf %394, %395 : vector<8x8xf32>
    %397 = vector.broadcast %372 : vector<1x8xf32> to vector<8x8xf32>
    %398 = arith.addf %396, %397 : vector<8x8xf32>
    %cst_140 = arith.constant dense<0xFF800000> : vector<8xf32>
    %399 = vector.multi_reduction <maximumf>, %398, %cst_140 [1] : vector<8x8xf32> to vector<8xf32>
    %400 = vector.shape_cast %399 : vector<8xf32> to vector<8x1xf32>
    %401 = vector.broadcast %400 : vector<8x1xf32> to vector<8x8xf32>
    %402 = arith.subf %398, %401 : vector<8x8xf32>
    %403 = math.exp %402 : vector<8x8xf32>
    %cst_141 = arith.constant dense<0.000000e+00> : vector<8xf32>
    %404 = vector.multi_reduction <add>, %403, %cst_141 [1] : vector<8x8xf32> to vector<8xf32>
    %405 = vector.shape_cast %404 : vector<8xf32> to vector<8x1xf32>
    %406 = vector.broadcast %405 : vector<8x1xf32> to vector<8x8xf32>
    %407 = arith.divf %403, %406 : vector<8x8xf32>
    %cst_142 = arith.constant dense<0.000000e+00> : vector<8x128xf32>
    %408 = tpu.matmul %407, %393, %cst_142 {dimension_numbers = #tpu.dot_dimension_numbers<[1], [0], [0], [1], [0, 0, 1, 1], [], []>} : vector<8x8xf32>, vector<8x128xf32>, vector<8x128xf32> -> vector<8x128xf32>
    %409 = vector.extract_strided_slice %295 {offsets = [8, 256], sizes = [8, 128], strides = [1, 1]} : vector<16x512xf32> to vector<8x128xf32>
    %410 = vector.extract_strided_slice %296 {offsets = [8, 256], sizes = [8, 128], strides = [1, 1]} : vector<16x512xf32> to vector<8x128xf32>
    %411 = vector.extract_strided_slice %297 {offsets = [8, 256], sizes = [8, 128], strides = [1, 1]} : vector<16x512xf32> to vector<8x128xf32>
    %cst_143 = arith.constant dense<0.000000e+00> : vector<8x8xf32>
    %412 = tpu.matmul %409, %410, %cst_143 {dimension_numbers = #tpu.dot_dimension_numbers<[1], [1], [0], [0], [0, 0, 1, 0], [], []>} : vector<8x128xf32>, vector<8x128xf32>, vector<8x8xf32> -> vector<8x8xf32>
    %cst_144 = arith.constant 0.353553385 : f32
    %413 = vector.broadcast %cst_144 : f32 to vector<8x8xf32>
    %414 = arith.mulf %412, %413 : vector<8x8xf32>
    %415 = vector.broadcast %372 : vector<1x8xf32> to vector<8x8xf32>
    %416 = arith.addf %414, %415 : vector<8x8xf32>
    %cst_145 = arith.constant dense<0xFF800000> : vector<8xf32>
    %417 = vector.multi_reduction <maximumf>, %416, %cst_145 [1] : vector<8x8xf32> to vector<8xf32>
    %418 = vector.shape_cast %417 : vector<8xf32> to vector<8x1xf32>
    %419 = vector.broadcast %418 : vector<8x1xf32> to vector<8x8xf32>
    %420 = arith.subf %416, %419 : vector<8x8xf32>
    %421 = math.exp %420 : vector<8x8xf32>
    %cst_146 = arith.constant dense<0.000000e+00> : vector<8xf32>
    %422 = vector.multi_reduction <add>, %421, %cst_146 [1] : vector<8x8xf32> to vector<8xf32>
    %423 = vector.shape_cast %422 : vector<8xf32> to vector<8x1xf32>
    %424 = vector.broadcast %423 : vector<8x1xf32> to vector<8x8xf32>
    %425 = arith.divf %421, %424 : vector<8x8xf32>
    %cst_147 = arith.constant dense<0.000000e+00> : vector<8x128xf32>
    %426 = tpu.matmul %425, %411, %cst_147 {dimension_numbers = #tpu.dot_dimension_numbers<[1], [0], [0], [1], [0, 0, 1, 1], [], []>} : vector<8x8xf32>, vector<8x128xf32>, vector<8x128xf32> -> vector<8x128xf32>
    %427 = vector.extract_strided_slice %295 {offsets = [8, 384], sizes = [8, 128], strides = [1, 1]} : vector<16x512xf32> to vector<8x128xf32>
    %428 = vector.extract_strided_slice %296 {offsets = [8, 384], sizes = [8, 128], strides = [1, 1]} : vector<16x512xf32> to vector<8x128xf32>
    %429 = vector.extract_strided_slice %297 {offsets = [8, 384], sizes = [8, 128], strides = [1, 1]} : vector<16x512xf32> to vector<8x128xf32>
    %cst_148 = arith.constant dense<0.000000e+00> : vector<8x8xf32>
    %430 = tpu.matmul %427, %428, %cst_148 {dimension_numbers = #tpu.dot_dimension_numbers<[1], [1], [0], [0], [0, 0, 1, 0], [], []>} : vector<8x128xf32>, vector<8x128xf32>, vector<8x8xf32> -> vector<8x8xf32>
    %cst_149 = arith.constant 0.353553385 : f32
    %431 = vector.broadcast %cst_149 : f32 to vector<8x8xf32>
    %432 = arith.mulf %430, %431 : vector<8x8xf32>
    %433 = vector.broadcast %372 : vector<1x8xf32> to vector<8x8xf32>
    %434 = arith.addf %432, %433 : vector<8x8xf32>
    %cst_150 = arith.constant dense<0xFF800000> : vector<8xf32>
    %435 = vector.multi_reduction <maximumf>, %434, %cst_150 [1] : vector<8x8xf32> to vector<8xf32>
    %436 = vector.shape_cast %435 : vector<8xf32> to vector<8x1xf32>
    %437 = vector.broadcast %436 : vector<8x1xf32> to vector<8x8xf32>
    %438 = arith.subf %434, %437 : vector<8x8xf32>
    %439 = math.exp %438 : vector<8x8xf32>
    %cst_151 = arith.constant dense<0.000000e+00> : vector<8xf32>
    %440 = vector.multi_reduction <add>, %439, %cst_151 [1] : vector<8x8xf32> to vector<8xf32>
    %441 = vector.shape_cast %440 : vector<8xf32> to vector<8x1xf32>
    %442 = vector.broadcast %441 : vector<8x1xf32> to vector<8x8xf32>
    %443 = arith.divf %439, %442 : vector<8x8xf32>
    %cst_152 = arith.constant dense<0.000000e+00> : vector<8x128xf32>
    %444 = tpu.matmul %443, %429, %cst_152 {dimension_numbers = #tpu.dot_dimension_numbers<[1], [0], [0], [1], [0, 0, 1, 1], [], []>} : vector<8x8xf32>, vector<8x128xf32>, vector<8x128xf32> -> vector<8x128xf32>
    %445 = tpu.concatenate %390, %408, %426, %444 in 1 : vector<8x128xf32>, vector<8x128xf32>, vector<8x128xf32>, vector<8x128xf32> -> vector<8x512xf32>
    %446 = tpu.concatenate %371, %445 in 0 : vector<8x512xf32>, vector<8x512xf32> -> vector<16x512xf32>
    %c1_153 = arith.constant 1 : index
    %c0_154 = arith.constant 0 : index
    %c0_155 = arith.constant 0 : index
    %447 = vector.load %arg6[%c1_153, %c0_154, %c0_155] : memref<2x512x128xf32, #tpu.memory_space<vmem>>, vector<1x512x128xf32>
    %448 = vector.shape_cast %447 : vector<1x512x128xf32> to vector<512x128xf32>
    %cst_156 = arith.constant dense<0.000000e+00> : vector<16x128xf32>
    %449 = tpu.matmul %446, %448, %cst_156 {dimension_numbers = #tpu.dot_dimension_numbers<[1], [0], [0], [1], [0, 0, 1, 1], [], []>} : vector<16x512xf32>, vector<512x128xf32>, vector<16x128xf32> -> vector<16x128xf32>
    %c1_157 = arith.constant 1 : index
    %c0_158 = arith.constant 0 : index
    %c0_159 = arith.constant 0 : index
    %450 = vector.load %arg7[%c1_157, %c0_158, %c0_159] : memref<2x1x128xf32, #tpu.memory_space<vmem>>, vector<1x1x128xf32>
    %451 = vector.shape_cast %450 : vector<1x1x128xf32> to vector<1x128xf32>
    %452 = vector.broadcast %451 : vector<1x128xf32> to vector<16x128xf32>
    %453 = arith.addf %449, %452 : vector<16x128xf32>
    %454 = arith.addf %287, %453 : vector<16x128xf32>
    %c1_160 = arith.constant 1 : index
    %c0_161 = arith.constant 0 : index
    %c0_162 = arith.constant 0 : index
    %455 = vector.load %arg8[%c1_160, %c0_161, %c0_162] : memref<2x1x128xf32, #tpu.memory_space<vmem>>, vector<1x1x128xf32>
    %456 = vector.shape_cast %455 : vector<1x1x128xf32> to vector<1x128xf32>
    %c1_163 = arith.constant 1 : index
    %c0_164 = arith.constant 0 : index
    %c0_165 = arith.constant 0 : index
    %457 = vector.load %arg9[%c1_163, %c0_164, %c0_165] : memref<2x1x128xf32, #tpu.memory_space<vmem>>, vector<1x1x128xf32>
    %458 = vector.shape_cast %457 : vector<1x1x128xf32> to vector<1x128xf32>
    %459 = vector.broadcast %4 : vector<1x128xf32> to vector<16x128xf32>
    %460 = arith.mulf %454, %459 : vector<16x128xf32>
    %cst_166 = arith.constant dense<0.000000e+00> : vector<16xf32>
    %461 = vector.multi_reduction <add>, %460, %cst_166 [1] : vector<16x128xf32> to vector<16xf32>
    %462 = vector.shape_cast %461 : vector<16xf32> to vector<16x1xf32>
    %cst_167 = arith.constant 3.125000e-02 : f32
    %463 = vector.broadcast %cst_167 : f32 to vector<16x1xf32>
    %464 = arith.mulf %462, %463 : vector<16x1xf32>
    %465 = vector.broadcast %464 : vector<16x1xf32> to vector<16x128xf32>
    %466 = arith.subf %454, %465 : vector<16x128xf32>
    %467 = vector.broadcast %4 : vector<1x128xf32> to vector<16x128xf32>
    %468 = arith.mulf %466, %467 : vector<16x128xf32>
    %469 = arith.mulf %468, %468 : vector<16x128xf32>
    %cst_168 = arith.constant dense<0.000000e+00> : vector<16xf32>
    %470 = vector.multi_reduction <add>, %469, %cst_168 [1] : vector<16x128xf32> to vector<16xf32>
    %471 = vector.shape_cast %470 : vector<16xf32> to vector<16x1xf32>
    %cst_169 = arith.constant 3.125000e-02 : f32
    %472 = vector.broadcast %cst_169 : f32 to vector<16x1xf32>
    %473 = arith.mulf %471, %472 : vector<16x1xf32>
    %cst_170 = arith.constant 9.99999996E-13 : f32
    %474 = vector.broadcast %cst_170 : f32 to vector<16x1xf32>
    %475 = arith.addf %473, %474 : vector<16x1xf32>
    %476 = math.rsqrt %475 : vector<16x1xf32>
    %477 = vector.broadcast %476 : vector<16x1xf32> to vector<16x128xf32>
    %478 = arith.mulf %468, %477 : vector<16x128xf32>
    %479 = vector.broadcast %456 : vector<1x128xf32> to vector<16x128xf32>
    %480 = arith.mulf %478, %479 : vector<16x128xf32>
    %481 = vector.broadcast %458 : vector<1x128xf32> to vector<16x128xf32>
    %482 = arith.addf %480, %481 : vector<16x128xf32>
    %c1_171 = arith.constant 1 : index
    %c0_172 = arith.constant 0 : index
    %c0_173 = arith.constant 0 : index
    %483 = vector.load %arg10[%c1_171, %c0_172, %c0_173] : memref<2x128x128xf32, #tpu.memory_space<vmem>>, vector<1x128x128xf32>
    %484 = vector.shape_cast %483 : vector<1x128x128xf32> to vector<128x128xf32>
    %cst_174 = arith.constant dense<0.000000e+00> : vector<16x128xf32>
    %485 = tpu.matmul %482, %484, %cst_174 {dimension_numbers = #tpu.dot_dimension_numbers<[1], [0], [0], [1], [0, 0, 1, 1], [], []>} : vector<16x128xf32>, vector<128x128xf32>, vector<16x128xf32> -> vector<16x128xf32>
    %c1_175 = arith.constant 1 : index
    %c0_176 = arith.constant 0 : index
    %c0_177 = arith.constant 0 : index
    %486 = vector.load %arg11[%c1_175, %c0_176, %c0_177] : memref<2x1x128xf32, #tpu.memory_space<vmem>>, vector<1x1x128xf32>
    %487 = vector.shape_cast %486 : vector<1x1x128xf32> to vector<1x128xf32>
    %488 = vector.broadcast %487 : vector<1x128xf32> to vector<16x128xf32>
    %489 = arith.addf %485, %488 : vector<16x128xf32>
    %490 = arith.mulf %489, %489 : vector<16x128xf32>
    %491 = arith.mulf %489, %490 : vector<16x128xf32>
    %cst_178 = arith.constant 4.471500e-02 : f32
    %492 = vector.broadcast %cst_178 : f32 to vector<16x128xf32>
    %493 = arith.mulf %492, %491 : vector<16x128xf32>
    %494 = arith.addf %489, %493 : vector<16x128xf32>
    %cst_179 = arith.constant 0.797884583 : f32
    %495 = vector.broadcast %cst_179 : f32 to vector<16x128xf32>
    %496 = arith.mulf %495, %494 : vector<16x128xf32>
    %497 = math.tanh %496 : vector<16x128xf32>
    %cst_180 = arith.constant 1.000000e+00 : f32
    %498 = vector.broadcast %cst_180 : f32 to vector<16x128xf32>
    %499 = arith.addf %498, %497 : vector<16x128xf32>
    %cst_181 = arith.constant 5.000000e-01 : f32
    %500 = vector.broadcast %cst_181 : f32 to vector<16x128xf32>
    %501 = arith.mulf %500, %499 : vector<16x128xf32>
    %502 = arith.mulf %489, %501 : vector<16x128xf32>
    %c1_182 = arith.constant 1 : index
    %c0_183 = arith.constant 0 : index
    %c0_184 = arith.constant 0 : index
    %503 = vector.load %arg12[%c1_182, %c0_183, %c0_184] : memref<2x128x128xf32, #tpu.memory_space<vmem>>, vector<1x128x128xf32>
    %504 = vector.shape_cast %503 : vector<1x128x128xf32> to vector<128x128xf32>
    %cst_185 = arith.constant dense<0.000000e+00> : vector<16x128xf32>
    %505 = tpu.matmul %502, %504, %cst_185 {dimension_numbers = #tpu.dot_dimension_numbers<[1], [0], [0], [1], [0, 0, 1, 1], [], []>} : vector<16x128xf32>, vector<128x128xf32>, vector<16x128xf32> -> vector<16x128xf32>
    %c1_186 = arith.constant 1 : index
    %c0_187 = arith.constant 0 : index
    %c0_188 = arith.constant 0 : index
    %506 = vector.load %arg13[%c1_186, %c0_187, %c0_188] : memref<2x1x128xf32, #tpu.memory_space<vmem>>, vector<1x1x128xf32>
    %507 = vector.shape_cast %506 : vector<1x1x128xf32> to vector<1x128xf32>
    %508 = vector.broadcast %507 : vector<1x128xf32> to vector<16x128xf32>
    %509 = arith.addf %505, %508 : vector<16x128xf32>
    %510 = arith.addf %482, %509 : vector<16x128xf32>
    %c1_189 = arith.constant 1 : index
    %c0_190 = arith.constant 0 : index
    %c0_191 = arith.constant 0 : index
    %511 = vector.load %arg14[%c1_189, %c0_190, %c0_191] : memref<2x1x128xf32, #tpu.memory_space<vmem>>, vector<1x1x128xf32>
    %512 = vector.shape_cast %511 : vector<1x1x128xf32> to vector<1x128xf32>
    %c1_192 = arith.constant 1 : index
    %c0_193 = arith.constant 0 : index
    %c0_194 = arith.constant 0 : index
    %513 = vector.load %arg15[%c1_192, %c0_193, %c0_194] : memref<2x1x128xf32, #tpu.memory_space<vmem>>, vector<1x1x128xf32>
    %514 = vector.shape_cast %513 : vector<1x1x128xf32> to vector<1x128xf32>
    %515 = vector.broadcast %4 : vector<1x128xf32> to vector<16x128xf32>
    %516 = arith.mulf %510, %515 : vector<16x128xf32>
    %cst_195 = arith.constant dense<0.000000e+00> : vector<16xf32>
    %517 = vector.multi_reduction <add>, %516, %cst_195 [1] : vector<16x128xf32> to vector<16xf32>
    %518 = vector.shape_cast %517 : vector<16xf32> to vector<16x1xf32>
    %cst_196 = arith.constant 3.125000e-02 : f32
    %519 = vector.broadcast %cst_196 : f32 to vector<16x1xf32>
    %520 = arith.mulf %518, %519 : vector<16x1xf32>
    %521 = vector.broadcast %520 : vector<16x1xf32> to vector<16x128xf32>
    %522 = arith.subf %510, %521 : vector<16x128xf32>
    %523 = vector.broadcast %4 : vector<1x128xf32> to vector<16x128xf32>
    %524 = arith.mulf %522, %523 : vector<16x128xf32>
    %525 = arith.mulf %524, %524 : vector<16x128xf32>
    %cst_197 = arith.constant dense<0.000000e+00> : vector<16xf32>
    %526 = vector.multi_reduction <add>, %525, %cst_197 [1] : vector<16x128xf32> to vector<16xf32>
    %527 = vector.shape_cast %526 : vector<16xf32> to vector<16x1xf32>
    %cst_198 = arith.constant 3.125000e-02 : f32
    %528 = vector.broadcast %cst_198 : f32 to vector<16x1xf32>
    %529 = arith.mulf %527, %528 : vector<16x1xf32>
    %cst_199 = arith.constant 9.99999996E-13 : f32
    %530 = vector.broadcast %cst_199 : f32 to vector<16x1xf32>
    %531 = arith.addf %529, %530 : vector<16x1xf32>
    %532 = math.rsqrt %531 : vector<16x1xf32>
    %533 = vector.broadcast %532 : vector<16x1xf32> to vector<16x128xf32>
    %534 = arith.mulf %524, %533 : vector<16x128xf32>
    %535 = vector.broadcast %512 : vector<1x128xf32> to vector<16x128xf32>
    %536 = arith.mulf %534, %535 : vector<16x128xf32>
    %537 = vector.broadcast %514 : vector<1x128xf32> to vector<16x128xf32>
    %538 = arith.addf %536, %537 : vector<16x128xf32>
    %c0_200 = arith.constant 0 : index
    %c0_201 = arith.constant 0 : index
    %539 = vector.load %arg18[%c0_200, %c0_201] : memref<16x128xf32, #tpu.memory_space<vmem>>, vector<16x128xf32>
    tpu.vector_store %arg18[%c0_200, %c0_201], %538 {strides = array<i32>} : memref<16x128xf32, #tpu.memory_space<vmem>>, vector<16x128xf32>,
    %540 = vector.extract_strided_slice %538 {offsets = [0, 0], sizes = [1, 128], strides = [1, 1]} : vector<16x128xf32> to vector<1x128xf32>
    %541 = vector.extract_strided_slice %538 {offsets = [8, 0], sizes = [1, 128], strides = [1, 1]} : vector<16x128xf32> to vector<1x128xf32>
    %542 = tpu.concatenate %540, %541 in 0 : vector<1x128xf32>, vector<1x128xf32> -> vector<2x128xf32>
    %c0_202 = arith.constant 0 : index
    %c0_203 = arith.constant 0 : index
    %543 = vector.load %arg16[%c0_202, %c0_203] : memref<128x128xf32, #tpu.memory_space<vmem>>, vector<128x128xf32>
    %cst_204 = arith.constant dense<0.000000e+00> : vector<2x128xf32>
    %544 = tpu.matmul %542, %543, %cst_204 {dimension_numbers = #tpu.dot_dimension_numbers<[1], [0], [0], [1], [0, 0, 1, 1], [], []>} : vector<2x128xf32>, vector<128x128xf32>, vector<2x128xf32> -> vector<2x128xf32>
    %c0_205 = arith.constant 0 : index
    %c0_206 = arith.constant 0 : index
    %545 = vector.load %arg17[%c0_205, %c0_206] : memref<1x128xf32, #tpu.memory_space<vmem>>, vector<1x128xf32>
    %546 = vector.broadcast %545 : vector<1x128xf32> to vector<2x128xf32>
    %547 = arith.addf %544, %546 : vector<2x128xf32>
    %548 = math.tanh %547 : vector<2x128xf32>
    %c0_207 = arith.constant 0 : index
    %c0_208 = arith.constant 0 : index
    %549 = vector.load %arg19[%c0_207, %c0_208] : memref<2x128xf32, #tpu.memory_space<vmem>>, vector<2x128xf32>
    tpu.vector_store %arg19[%c0_207, %c0_208], %548 {strides = array<i32>} : memref<2x128xf32, #tpu.memory_space<vmem>>, vector<2x128xf32>,
    return
  }
}

</mosaic_0001>

<llo_original>
// kernel: tpu_custom_call.1
$region0: #{tpu_custom_call.1}
  #allocation0 [shape = 'u32[]', space=smem, size = 0x4, offset = 0x4, fixed_abs, tag = 'smem constant byte address 0x4 - core index']
  #allocation1 [shape = 'u32[72,128]{1,0:T(1,128)}', space=vmem, size = 0x9000, scoped, tag = 'internal scratch']
  %s0 = inlined_call_operand.hbm [shape: f32[16,128], index: 0, kind: input, shape index: {}]
  %s1 = inlined_call_operand.hbm [shape: f32[2,8], index: 1, kind: input, shape index: {}]
  %s2 = inlined_call_operand.hbm [shape: f32[1,128], index: 2, kind: input, shape index: {}]
  %s3 = inlined_call_operand.hbm [shape: f32[1,128], index: 3, kind: input, shape index: {}]
  %s4 = inlined_call_operand.hbm [shape: f32[2,128,1536], index: 4, kind: input, shape index: {}]
  %s5 = inlined_call_operand.hbm [shape: f32[2,1,1536], index: 5, kind: input, shape index: {}]
  %s6 = inlined_call_operand.hbm [shape: f32[2,512,128], index: 6, kind: input, shape index: {}]
  %s7 = inlined_call_operand.hbm [shape: f32[2,1,128], index: 7, kind: input, shape index: {}]
  %s8 = inlined_call_operand.hbm [shape: f32[2,1,128], index: 8, kind: input, shape index: {}]
  %s9 = inlined_call_operand.hbm [shape: f32[2,1,128], index: 9, kind: input, shape index: {}]
  %s10 = inlined_call_operand.hbm [shape: f32[2,128,128], index: 10, kind: input, shape index: {}]
  %s11 = inlined_call_operand.hbm [shape: f32[2,1,128], index: 11, kind: input, shape index: {}]
  %s12 = inlined_call_operand.hbm [shape: f32[2,128,128], index: 12, kind: input, shape index: {}]
  %s13 = inlined_call_operand.hbm [shape: f32[2,1,128], index: 13, kind: input, shape index: {}]
  %s14 = inlined_call_operand.hbm [shape: f32[2,1,128], index: 14, kind: input, shape index: {}]
  %s15 = inlined_call_operand.hbm [shape: f32[2,1,128], index: 15, kind: input, shape index: {}]
  %s16 = inlined_call_operand.hbm [shape: f32[128,128], index: 16, kind: input, shape index: {}]
  %s17 = inlined_call_operand.hbm [shape: f32[1,128], index: 17, kind: input, shape index: {}]
  %s18 = inlined_call_operand.hbm [shape: f32[16,128], index: 18, kind: output, shape index: {0}]
  %s19 = inlined_call_operand.hbm [shape: f32[2,128], index: 19, kind: output, shape index: {1}]
  %20 = xla_tuple %s18, %s19
  %s21 = sld [smem:[#allocation0]]
  $region162: #{tpu_custom_call.1} parent=0
    _
  %s23 = ssub.s32 1, %s21
  %s24 = scalar_select 0, %s23, %s21
  $region1: #{tpu_custom_call.1} parent=0
    #allocation2 [shape = 'u8[8192]{0}', space=vmem, size = 0x2000, scoped, tag = 'input window, operand 0, single buffered']
    #allocation3 [shape = 's32[1]{0}', space=sflag, size = 0x4, scoped, tag = 'scoped memory for tpu_custom_call.1']
    #allocation4 [shape = 's32[1]{0}', space=sflag, size = 0x4, scoped, tag = 'scoped memory for tpu_custom_call.1']
    #allocation5 [shape = 'u8[1024]{0}', space=vmem, size = 0x400, scoped, tag = 'input window, operand 1, single buffered']
    #allocation6 [shape = 's32[1]{0}', space=sflag, size = 0x4, scoped, tag = 'scoped memory for tpu_custom_call.1']
    #allocation7 [shape = 'u8[512]{0}', space=vmem, size = 0x400, scoped, tag = 'input window, operand 2, single buffered']
    #allocation8 [shape = 'u8[512]{0}', space=vmem, size = 0x400, scoped, tag = 'input window, operand 3, single buffered']
    #allocation9 [shape = 's32[1]{0}', space=sflag, size = 0x4, scoped, tag = 'scoped memory for tpu_custom_call.1']
    #allocation10 [shape = 'u8[1572864]{0}', space=vmem, size = 0x180000, scoped, tag = 'input window, operand 4, single buffered']
    #allocation11 [shape = 'u8[12288]{0}', space=vmem, size = 0x3000, scoped, tag = 'input window, operand 5, single buffered']
    #allocation12 [shape = 's32[1]{0}', space=sflag, size = 0x4, scoped, tag = 'scoped memory for tpu_custom_call.1']
    #allocation13 [shape = 'u8[524288]{0}', space=vmem, size = 0x80000, scoped, tag = 'input window, operand 6, single buffered']
    #allocation14 [shape = 'u8[1024]{0}', space=vmem, size = 0x400, scoped, tag = 'input window, operand 7, single buffered']
    #allocation15 [shape = 's32[1]{0}', space=sflag, size = 0x4, scoped, tag = 'scoped memory for tpu_custom_call.1']
    #allocation16 [shape = 'u8[1024]{0}', space=vmem, size = 0x400, scoped, tag = 'input window, operand 8, single buffered']
    #allocation17 [shape = 'u8[1024]{0}', space=vmem, size = 0x400, scoped, tag = 'input window, operand 9, single buffered']
    #allocation18 [shape = 's32[1]{0}', space=sflag, size = 0x4, scoped, tag = 'scoped memory for tpu_custom_call.1']
    #allocation19 [shape = 'u8[131072]{0}', space=vmem, size = 0x20000, scoped, tag = 'input window, operand 10, single buffered']
    #allocation20 [shape = 'u8[1024]{0}', space=vmem, size = 0x400, scoped, tag = 'input window, operand 11, single buffered']
    #allocation21 [shape = 's32[1]{0}', space=sflag, size = 0x4, scoped, tag = 'scoped memory for tpu_custom_call.1']
    #allocation22 [shape = 'u8[131072]{0}', space=vmem, size = 0x20000, scoped, tag = 'input window, operand 12, single buffered']
    #allocation23 [shape = 'u8[1024]{0}', space=vmem, size = 0x400, scoped, tag = 'input window, operand 13, single buffered']
    #allocation24 [shape = 's32[1]{0}', space=sflag, size = 0x4, scoped, tag = 'scoped memory for tpu_custom_call.1']
    #allocation25 [shape = 'u8[1024]{0}', space=vmem, size = 0x400, scoped, tag = 'input window, operand 14, single buffered']
    #allocation26 [shape = 'u8[1024]{0}', space=vmem, size = 0x400, scoped, tag = 'input window, operand 15, single buffered']
    #allocation27 [shape = 's32[1]{0}', space=sflag, size = 0x4, scoped, tag = 'scoped memory for tpu_custom_call.1']
    #allocation28 [shape = 'u8[65536]{0}', space=vmem, size = 0x10000, scoped, tag = 'input window, operand 16, single buffered']
    #allocation29 [shape = 'u8[512]{0}', space=vmem, size = 0x400, scoped, tag = 'input window, operand 17, single buffered']
    #allocation30 [shape = 's32[1]{0}', space=sflag, size = 0x4, scoped, tag = 'scoped memory for tpu_custom_call.1']
    #allocation31 [shape = 'u8[8192]{0}', space=vmem, size = 0x2000, scoped, tag = 'output window, operand 0, single buffered']
    #allocation32 [shape = 'u8[1024]{0}', space=vmem, size = 0x400, scoped, tag = 'output window, operand 1, single buffered']
    #allocation33 [shape = 's32[1]{0}', space=sflag, size = 0x4, scoped, tag = 'scoped memory for tpu_custom_call.1']
    %25 = vsyncpa [#allocation3], 0
    %26 = vsyncpa [#allocation6], 0
    %27 = vsyncpa [#allocation9], 0
    %28 = vsyncpa [#allocation12], 0
    %29 = vsyncpa [#allocation15], 0
    %30 = vsyncpa [#allocation18], 0
    %31 = vsyncpa [#allocation21], 0
    %32 = vsyncpa [#allocation24], 0
    %33 = vsyncpa [#allocation27], 0
    %34 = vsyncpa [#allocation30], 0
    %35 = vsyncpa [#allocation4], 0
    %36 = vsyncpa [#allocation33], 0
    // Predicated region
    $region2: #{tpu_custom_call.1} parent=1 // pred_check
      _
    $region3: #{tpu_custom_call.1} parent=1 // pred_check_branch
      %38 = sbr.rel (0) target = $region5
    $region4: #{tpu_custom_call.1} parent=1 // pred_region
      %40 = vsyncadd [#allocation3], 0
      %s41 = sshll.u32 %s0, 4
      %s42 = int_to_ptr.hbm [resolvable:$true] %s41
      %s43 = sshll.u32 [#allocation2], 4
      %s44 = int_to_ptr.vmem [resolvable:$true] %s43
      %49 = dma.hbm_to_vmem [thread:$0]  %s42, 256, %s44, [#allocation3], 128, 128, 8
    $region5: #{tpu_custom_call.1} parent=1 // pred_fallthru
      _
    // Predicated region
    $region6: #{tpu_custom_call.1} parent=1 // pred_check
      _
    $region7: #{tpu_custom_call.1} parent=1 // pred_check_branch
      %51 = sbr.rel (0) target = $region9
    $region8: #{tpu_custom_call.1} parent=1 // pred_region
      %53 = vsyncadd [#allocation6], 0
      %s55 = sshll.u32 %s1, 4
      %s56 = int_to_ptr.hbm [resolvable:$true] %s55
      %s57 = sshll.u32 [#allocation5], 4
      %s58 = int_to_ptr.vmem [resolvable:$true] %s57
      %60 = dma.hbm_to_vmem [thread:$0]  %s56, 32, %s58, [#allocation6]
    $region9: #{tpu_custom_call.1} parent=1 // pred_fallthru
      _
    // Predicated region
    $region10: #{tpu_custom_call.1} parent=1 // pred_check
      _
    $region11: #{tpu_custom_call.1} parent=1 // pred_check_branch
      %62 = sbr.rel (0) target = $region13
    $region12: #{tpu_custom_call.1} parent=1 // pred_region
      %64 = vsyncadd [#allocation6], 0
      %s66 = sshll.u32 %s2, 4
      %s67 = int_to_ptr.hbm [resolvable:$true] %s66
      %s68 = sshll.u32 [#allocation7], 4
      %s69 = int_to_ptr.vmem [resolvable:$true] %s68
      %71 = dma.hbm_to_vmem [thread:$0]  %s67, 16, %s69, [#allocation6]
    $region13: #{tpu_custom_call.1} parent=1 // pred_fallthru
      _
    // Predicated region
    $region14: #{tpu_custom_call.1} parent=1 // pred_check
      _
    $region15: #{tpu_custom_call.1} parent=1 // pred_check_branch
      %73 = sbr.rel (0) target = $region17
    $region16: #{tpu_custom_call.1} parent=1 // pred_region
      %75 = vsyncadd [#allocation9], 0
      %s77 = sshll.u32 %s3, 4
      %s78 = int_to_ptr.hbm [resolvable:$true] %s77
      %s79 = sshll.u32 [#allocation8], 4
      %s80 = int_to_ptr.vmem [resolvable:$true] %s79
      %82 = dma.hbm_to_vmem [thread:$0]  %s78, 16, %s80, [#allocation9]
    $region17: #{tpu_custom_call.1} parent=1 // pred_fallthru
      _
    // Predicated region
    $region18: #{tpu_custom_call.1} parent=1 // pred_check
      _
    $region19: #{tpu_custom_call.1} parent=1 // pred_check_branch
      %84 = sbr.rel (0) target = $region21
    $region20: #{tpu_custom_call.1} parent=1 // pred_region
      %86 = vsyncadd [#allocation9], 0
      %s87 = sshll.u32 %s4, 4
      %s88 = int_to_ptr.hbm [resolvable:$true] %s87
      %s89 = sshll.u32 [#allocation10], 4
      %s90 = int_to_ptr.vmem [resolvable:$true] %s89
      %95 = dma.hbm_to_vmem [thread:$0]  %s88, 49152, %s90, [#allocation9], 1536, 1536, 96
    $region21: #{tpu_custom_call.1} parent=1 // pred_fallthru
      _
    // Predicated region
    $region22: #{tpu_custom_call.1} parent=1 // pred_check
      _
    $region23: #{tpu_custom_call.1} parent=1 // pred_check_branch
      %97 = sbr.rel (0) target = $region25
    $region24: #{tpu_custom_call.1} parent=1 // pred_region
      %99 = vsyncadd [#allocation12], 0
      %s100 = sshll.u32 %s5, 4
      %s101 = int_to_ptr.hbm [resolvable:$true] %s100
      %s102 = sshll.u32 [#allocation11], 4
      %s103 = int_to_ptr.vmem [resolvable:$true] %s102
      %108 = dma.hbm_to_vmem [thread:$0]  %s101, 384, %s103, [#allocation12], 192, 192, 12
    $region25: #{tpu_custom_call.1} parent=1 // pred_fallthru
      _
    // Predicated region
    $region26: #{tpu_custom_call.1} parent=1 // pred_check
      _
    $region27: #{tpu_custom_call.1} parent=1 // pred_check_branch
      %110 = sbr.rel (0) target = $region29
    $region28: #{tpu_custom_call.1} parent=1 // pred_region
      %112 = vsyncadd [#allocation12], 0
      %s113 = sshll.u32 %s6, 4
      %s114 = int_to_ptr.hbm [resolvable:$true] %s113
      %s115 = sshll.u32 [#allocation13], 4
      %s116 = int_to_ptr.vmem [resolvable:$true] %s115
      %121 = dma.hbm_to_vmem [thread:$0]  %s114, 16384, %s116, [#allocation12], 128, 128, 8
    $region29: #{tpu_custom_call.1} parent=1 // pred_fallthru
      _
    // Predicated region
    $region30: #{tpu_custom_call.1} parent=1 // pred_check
      _
    $region31: #{tpu_custom_call.1} parent=1 // pred_check_branch
      %123 = sbr.rel (0) target = $region33
    $region32: #{tpu_custom_call.1} parent=1 // pred_region
      %125 = vsyncadd [#allocation15], 0
      %s126 = sshll.u32 %s7, 4
      %s127 = int_to_ptr.hbm [resolvable:$true] %s126
      %s128 = sshll.u32 [#allocation14], 4
      %s129 = int_to_ptr.vmem [resolvable:$true] %s128
      %134 = dma.hbm_to_vmem [thread:$0]  %s127, 32, %s129, [#allocation15], 16, 16, 1
    $region33: #{tpu_custom_call.1} parent=1 // pred_fallthru
      _
    // Predicated region
    $region34: #{tpu_custom_call.1} parent=1 // pred_check
      _
    $region35: #{tpu_custom_call.1} parent=1 // pred_check_branch
      %136 = sbr.rel (0) target = $region37
    $region36: #{tpu_custom_call.1} parent=1 // pred_region
      %138 = vsyncadd [#allocation15], 0
      %s139 = sshll.u32 %s8, 4
      %s140 = int_to_ptr.hbm [resolvable:$true] %s139
      %s141 = sshll.u32 [#allocation16], 4
      %s142 = int_to_ptr.vmem [resolvable:$true] %s141
      %147 = dma.hbm_to_vmem [thread:$0]  %s140, 32, %s142, [#allocation15], 16, 16, 1
    $region37: #{tpu_custom_call.1} parent=1 // pred_fallthru
      _
    // Predicated region
    $region38: #{tpu_custom_call.1} parent=1 // pred_check
      _
    $region39: #{tpu_custom_call.1} parent=1 // pred_check_branch
      %149 = sbr.rel (0) target = $region41
    $region40: #{tpu_custom_call.1} parent=1 // pred_region
      %151 = vsyncadd [#allocation18], 0
      %s152 = sshll.u32 %s9, 4
      %s153 = int_to_ptr.hbm [resolvable:$true] %s152
      %s154 = sshll.u32 [#allocation17], 4
      %s155 = int_to_ptr.vmem [resolvable:$true] %s154
      %160 = dma.hbm_to_vmem [thread:$0]  %s153, 32, %s155, [#allocation18], 16, 16, 1
    $region41: #{tpu_custom_call.1} parent=1 // pred_fallthru
      _
    // Predicated region
    $region42: #{tpu_custom_call.1} parent=1 // pred_check
      _
    $region43: #{tpu_custom_call.1} parent=1 // pred_check_branch
      %162 = sbr.rel (0) target = $region45
    $region44: #{tpu_custom_call.1} parent=1 // pred_region
      %164 = vsyncadd [#allocation18], 0
      %s165 = sshll.u32 %s10, 4
      %s166 = int_to_ptr.hbm [resolvable:$true] %s165
      %s167 = sshll.u32 [#allocation19], 4
      %s168 = int_to_ptr.vmem [resolvable:$true] %s167
      %173 = dma.hbm_to_vmem [thread:$0]  %s166, 4096, %s168, [#allocation18], 128, 128, 8
    $region45: #{tpu_custom_call.1} parent=1 // pred_fallthru
      _
    // Predicated region
    $region46: #{tpu_custom_call.1} parent=1 // pred_check
      _
    $region47: #{tpu_custom_call.1} parent=1 // pred_check_branch
      %175 = sbr.rel (0) target = $region49
    $region48: #{tpu_custom_call.1} parent=1 // pred_region
      %177 = vsyncadd [#allocation21], 0
      %s178 = sshll.u32 %s11, 4
      %s179 = int_to_ptr.hbm [resolvable:$true] %s178
      %s180 = sshll.u32 [#allocation20], 4
      %s181 = int_to_ptr.vmem [resolvable:$true] %s180
      %186 = dma.hbm_to_vmem [thread:$0]  %s179, 32, %s181, [#allocation21], 16, 16, 1
    $region49: #{tpu_custom_call.1} parent=1 // pred_fallthru
      _
    // Predicated region
    $region50: #{tpu_custom_call.1} parent=1 // pred_check
      _
    $region51: #{tpu_custom_call.1} parent=1 // pred_check_branch
      %188 = sbr.rel (0) target = $region53
    $region52: #{tpu_custom_call.1} parent=1 // pred_region
      %190 = vsyncadd [#allocation21], 0
      %s191 = sshll.u32 %s12, 4
      %s192 = int_to_ptr.hbm [resolvable:$true] %s191
      %s193 = sshll.u32 [#allocation22], 4
      %s194 = int_to_ptr.vmem [resolvable:$true] %s193
      %199 = dma.hbm_to_vmem [thread:$0]  %s192, 4096, %s194, [#allocation21], 128, 128, 8
    $region53: #{tpu_custom_call.1} parent=1 // pred_fallthru
      _
    // Predicated region
    $region54: #{tpu_custom_call.1} parent=1 // pred_check
      _
    $region55: #{tpu_custom_call.1} parent=1 // pred_check_branch
      %201 = sbr.rel (0) target = $region57
    $region56: #{tpu_custom_call.1} parent=1 // pred_region
      %203 = vsyncadd [#allocation24], 0
      %s204 = sshll.u32 %s13, 4
      %s205 = int_to_ptr.hbm [resolvable:$true] %s204
      %s206 = sshll.u32 [#allocation23], 4
      %s207 = int_to_ptr.vmem [resolvable:$true] %s206
      %212 = dma.hbm_to_vmem [thread:$0]  %s205, 32, %s207, [#allocation24], 16, 16, 1
    $region57: #{tpu_custom_call.1} parent=1 // pred_fallthru
      _
    // Predicated region
    $region58: #{tpu_custom_call.1} parent=1 // pred_check
      _
    $region59: #{tpu_custom_call.1} parent=1 // pred_check_branch
      %214 = sbr.rel (0) target = $region61
    $region60: #{tpu_custom_call.1} parent=1 // pred_region
      %216 = vsyncadd [#allocation24], 0
      %s217 = sshll.u32 %s14, 4
      %s218 = int_to_ptr.hbm [resolvable:$true] %s217
      %s219 = sshll.u32 [#allocation25], 4
      %s220 = int_to_ptr.vmem [resolvable:$true] %s219
      %225 = dma.hbm_to_vmem [thread:$0]  %s218, 32, %s220, [#allocation24], 16, 16, 1
    $region61: #{tpu_custom_call.1} parent=1 // pred_fallthru
      _
    // Predicated region
    $region62: #{tpu_custom_call.1} parent=1 // pred_check
      _
    $region63: #{tpu_custom_call.1} parent=1 // pred_check_branch
      %227 = sbr.rel (0) target = $region65
    $region64: #{tpu_custom_call.1} parent=1 // pred_region
      %229 = vsyncadd [#allocation27], 0
      %s230 = sshll.u32 %s15, 4
      %s231 = int_to_ptr.hbm [resolvable:$true] %s230
      %s232 = sshll.u32 [#allocation26], 4
      %s233 = int_to_ptr.vmem [resolvable:$true] %s232
      %238 = dma.hbm_to_vmem [thread:$0]  %s231, 32, %s233, [#allocation27], 16, 16, 1
    $region65: #{tpu_custom_call.1} parent=1 // pred_fallthru
      _
    // Predicated region
    $region66: #{tpu_custom_call.1} parent=1 // pred_check
      _
    $region67: #{tpu_custom_call.1} parent=1 // pred_check_branch
      %240 = sbr.rel (0) target = $region69
    $region68: #{tpu_custom_call.1} parent=1 // pred_region
      %242 = vsyncadd [#allocation27], 0
      %s243 = sshll.u32 %s16, 4
      %s244 = int_to_ptr.hbm [resolvable:$true] %s243
      %s245 = sshll.u32 [#allocation28], 4
      %s246 = int_to_ptr.vmem [resolvable:$true] %s245
      %251 = dma.hbm_to_vmem [thread:$0]  %s244, 2048, %s246, [#allocation27], 128, 128, 8
    $region69: #{tpu_custom_call.1} parent=1 // pred_fallthru
      _
    // Predicated region
    $region70: #{tpu_custom_call.1} parent=1 // pred_check
      _
    $region71: #{tpu_custom_call.1} parent=1 // pred_check_branch
      %253 = sbr.rel (0) target = $region73
    $region72: #{tpu_custom_call.1} parent=1 // pred_region
      %255 = vsyncadd [#allocation30], 0
      %s257 = sshll.u32 %s17, 4
      %s258 = int_to_ptr.hbm [resolvable:$true] %s257
      %s259 = sshll.u32 [#allocation29], 4
      %s260 = int_to_ptr.vmem [resolvable:$true] %s259
      %262 = dma.hbm_to_vmem [thread:$0]  %s258, 16, %s260, [#allocation30]
    $region73: #{tpu_custom_call.1} parent=1 // pred_fallthru
      _
    // Predicated region
    $region74: #{tpu_custom_call.1} parent=1 // pred_check
      _
    $region75: #{tpu_custom_call.1} parent=1 // pred_check_branch
      %264 = sbr.rel (0) target = $region77
    $region76: #{tpu_custom_call.1} parent=1 // pred_region
      %266 = dma.done [#allocation3], 256
    $region77: #{tpu_custom_call.1} parent=1 // pred_fallthru
      _
    // Predicated region
    $region78: #{tpu_custom_call.1} parent=1 // pred_check
      _
    $region79: #{tpu_custom_call.1} parent=1 // pred_check_branch
      %268 = sbr.rel (0) target = $region81
    $region80: #{tpu_custom_call.1} parent=1 // pred_region
      %270 = dma.done [#allocation6], 32
    $region81: #{tpu_custom_call.1} parent=1 // pred_fallthru
      _
    // Predicated region
    $region82: #{tpu_custom_call.1} parent=1 // pred_check
      _
    $region83: #{tpu_custom_call.1} parent=1 // pred_check_branch
      %272 = sbr.rel (0) target = $region85
    $region84: #{tpu_custom_call.1} parent=1 // pred_region
      %274 = dma.done [#allocation6], 16
    $region85: #{tpu_custom_call.1} parent=1 // pred_fallthru
      _
    // Predicated region
    $region86: #{tpu_custom_call.1} parent=1 // pred_check
      _
    $region87: #{tpu_custom_call.1} parent=1 // pred_check_branch
      %276 = sbr.rel (0) target = $region89
    $region88: #{tpu_custom_call.1} parent=1 // pred_region
      %278 = dma.done [#allocation9], 16
    $region89: #{tpu_custom_call.1} parent=1 // pred_fallthru
      _
    // Predicated region
    $region90: #{tpu_custom_call.1} parent=1 // pred_check
      _
    $region91: #{tpu_custom_call.1} parent=1 // pred_check_branch
      %280 = sbr.rel (0) target = $region93
    $region92: #{tpu_custom_call.1} parent=1 // pred_region
      %282 = dma.done [#allocation9], 49152
    $region93: #{tpu_custom_call.1} parent=1 // pred_fallthru
      _
    // Predicated region
    $region94: #{tpu_custom_call.1} parent=1 // pred_check
      _
    $region95: #{tpu_custom_call.1} parent=1 // pred_check_branch
      %284 = sbr.rel (0) target = $region97
    $region96: #{tpu_custom_call.1} parent=1 // pred_region
      %286 = dma.done [#allocation12], 384
    $region97: #{tpu_custom_call.1} parent=1 // pred_fallthru
      _
    // Predicated region
    $region98: #{tpu_custom_call.1} parent=1 // pred_check
      _
    $region99: #{tpu_custom_call.1} parent=1 // pred_check_branch
      %288 = sbr.rel (0) target = $region101
    $region100: #{tpu_custom_call.1} parent=1 // pred_region
      %290 = dma.done [#allocation12], 16384
    $region101: #{tpu_custom_call.1} parent=1 // pred_fallthru
      _
    // Predicated region
    $region102: #{tpu_custom_call.1} parent=1 // pred_check
      _
    $region103: #{tpu_custom_call.1} parent=1 // pred_check_branch
      %292 = sbr.rel (0) target = $region105
    $region104: #{tpu_custom_call.1} parent=1 // pred_region
      %294 = dma.done [#allocation15], 32
    $region105: #{tpu_custom_call.1} parent=1 // pred_fallthru
      _
    // Predicated region
    $region106: #{tpu_custom_call.1} parent=1 // pred_check
      _
    $region107: #{tpu_custom_call.1} parent=1 // pred_check_branch
      %296 = sbr.rel (0) target = $region109
    $region108: #{tpu_custom_call.1} parent=1 // pred_region
      %298 = dma.done [#allocation15], 32
    $region109: #{tpu_custom_call.1} parent=1 // pred_fallthru
      _
    // Predicated region
    $region110: #{tpu_custom_call.1} parent=1 // pred_check
      _
    $region111: #{tpu_custom_call.1} parent=1 // pred_check_branch
      %300 = sbr.rel (0) target = $region113
    $region112: #{tpu_custom_call.1} parent=1 // pred_region
      %302 = dma.done [#allocation18], 32
    $region113: #{tpu_custom_call.1} parent=1 // pred_fallthru
      _
    // Predicated region
    $region114: #{tpu_custom_call.1} parent=1 // pred_check
      _
    $region115: #{tpu_custom_call.1} parent=1 // pred_check_branch
      %304 = sbr.rel (0) target = $region117
    $region116: #{tpu_custom_call.1} parent=1 // pred_region
      %306 = dma.done [#allocation18], 4096
    $region117: #{tpu_custom_call.1} parent=1 // pred_fallthru
      _
    // Predicated region
    $region118: #{tpu_custom_call.1} parent=1 // pred_check
      _
    $region119: #{tpu_custom_call.1} parent=1 // pred_check_branch
      %308 = sbr.rel (0) target = $region121
    $region120: #{tpu_custom_call.1} parent=1 // pred_region
      %310 = dma.done [#allocation21], 32
    $region121: #{tpu_custom_call.1} parent=1 // pred_fallthru
      _
    // Predicated region
    $region122: #{tpu_custom_call.1} parent=1 // pred_check
      _
    $region123: #{tpu_custom_call.1} parent=1 // pred_check_branch
      %312 = sbr.rel (0) target = $region125
    $region124: #{tpu_custom_call.1} parent=1 // pred_region
      %314 = dma.done [#allocation21], 4096
    $region125: #{tpu_custom_call.1} parent=1 // pred_fallthru
      _
    // Predicated region
    $region126: #{tpu_custom_call.1} parent=1 // pred_check
      _
    $region127: #{tpu_custom_call.1} parent=1 // pred_check_branch
      %316 = sbr.rel (0) target = $region129
    $region128: #{tpu_custom_call.1} parent=1 // pred_region
      %318 = dma.done [#allocation24], 32
    $region129: #{tpu_custom_call.1} parent=1 // pred_fallthru
      _
    // Predicated region
    $region130: #{tpu_custom_call.1} parent=1 // pred_check
      _
    $region131: #{tpu_custom_call.1} parent=1 // pred_check_branch
      %320 = sbr.rel (0) target = $region133
    $region132: #{tpu_custom_call.1} parent=1 // pred_region
      %322 = dma.done [#allocation24], 32
    $region133: #{tpu_custom_call.1} parent=1 // pred_fallthru
      _
    // Predicated region
    $region134: #{tpu_custom_call.1} parent=1 // pred_check
      _
    $region135: #{tpu_custom_call.1} parent=1 // pred_check_branch
      %324 = sbr.rel (0) target = $region137
    $region136: #{tpu_custom_call.1} parent=1 // pred_region
      %326 = dma.done [#allocation27], 32
    $region137: #{tpu_custom_call.1} parent=1 // pred_fallthru
      _
    // Predicated region
    $region138: #{tpu_custom_call.1} parent=1 // pred_check
      _
    $region139: #{tpu_custom_call.1} parent=1 // pred_check_branch
      %328 = sbr.rel (0) target = $region141
    $region140: #{tpu_custom_call.1} parent=1 // pred_region
      %330 = dma.done [#allocation27], 2048
    $region141: #{tpu_custom_call.1} parent=1 // pred_fallthru
      _
    // Predicated region
    $region142: #{tpu_custom_call.1} parent=1 // pred_check
      _
    $region143: #{tpu_custom_call.1} parent=1 // pred_check_branch
      %332 = sbr.rel (0) target = $region145
    $region144: #{tpu_custom_call.1} parent=1 // pred_region
      %334 = dma.done [#allocation30], 16
    $region145: #{tpu_custom_call.1} parent=1 // pred_fallthru
      _
    %v335 = vlaneseq
    %v336 = vand.u32 %v335, 127
    %vm337 = vcmp.lt.s32.totalorder %v336, 32
    %v338 = vsel %vm337, 1, 0
    %v339 = vcvt.s32.f32 %v338
    %v340 = vld [vmem:[#allocation2] sm:$0xff]
    %v341 = vld [vmem:[#allocation2 + $0x8] sm:$0xff]
    %v342 = vld [vmem:[#allocation7] sm:$0x1]
    %v343 = vld [vmem:[#allocation8] sm:$0x1]
    %v344 = vmul.f32 %v340, %v339
    %v345 = vmul.f32 %v341, %v339
    %346 = vadd.xlane.f32.xlu0 %v344
    %v347 = vpop.xlane.xlu0 %346
    %348 = vadd.xlane.f32.xlu0 %v345
    %v349 = vpop.xlane.xlu0 %348
    %v350 = vmul.f32 %v347, 0.03125
    %v351 = vmul.f32 %v349, 0.03125
    %v352 = vsub.f32 %v340, %v350
    %v353 = vsub.f32 %v341, %v351
    %v354 = vmul.f32 %v352, %v339
    %v355 = vmul.f32 %v353, %v339
    %v356 = vmul.f32 %v354, %v354
    %v357 = vmul.f32 %v355, %v355
    %358 = vadd.xlane.f32.xlu0 %v356
    %v359 = vpop.xlane.xlu0 %358
    %360 = vadd.xlane.f32.xlu0 %v357
    %v361 = vpop.xlane.xlu0 %360
    %v362 = vmul.f32 %v359, 0.03125
    %v363 = vmul.f32 %v361, 0.03125
    %v364 = vadd.f32 %v362, 1e-12
    %v365 = vadd.f32 %v363, 1e-12
    %v366 = vrsqrt.pop %v364
    %v367 = vmul.f32 %v366, %v364
    %v368 = vmul.f32 %v367, %v366
    %v369 = vmul.f32 0.5, %v368
    %v370 = vsub.f32 1.5, %v369
    %v371 = vmul.f32 %v366, %v370
    %vm372 = vweird.f32 %v364
    %vm373 = vweird.f32 %v366
    %vm374 = vmor %vm372, %vm373
    %v375 = vsel %vm374, %v366, %v371
    %v376 = vrsqrt.pop %v365
    %v377 = vmul.f32 %v376, %v365
    %v378 = vmul.f32 %v377, %v376
    %v379 = vmul.f32 0.5, %v378
    %v380 = vsub.f32 1.5, %v379
    %v381 = vmul.f32 %v376, %v380
    %vm382 = vweird.f32 %v365
    %vm383 = vweird.f32 %v376
    %vm384 = vmor %vm382, %vm383
    %v385 = vsel %vm384, %v376, %v381
    %v386 = vmul.f32 %v354, %v375
    %v387 = vmul.f32 %v355, %v385
    %v389 = vperm.slane %v342, 0
    %v391 = vmul.f32 %v386, %v389
    %v392 = vmul.f32 %v387, %v389
    %v394 = vperm.slane %v343, 0
    %v396 = vadd.f32 %v391, %v394
    %v397 = vadd.f32 %v392, %v394
    %v398 = vld [vmem:[#allocation5] sm:$0x3]
    %v399 = vsub.f32 1.0, %v398
    %v400 = vmul.f32 %v399, -10000.0
    %v401 = vld [vmem:[#allocation10] sm:$0xff]
    %v402 = vld [vmem:[#allocation10 + $0x8] sm:$0xff]
    %v403 = vld [vmem:[#allocation10 + $0x10] sm:$0xff]
    %v404 = vld [vmem:[#allocation10 + $0x18] sm:$0xff]
    %v405 = vld [vmem:[#allocation10 + $0x20] sm:$0xff]
    %v406 = vld [vmem:[#allocation10 + $0x28] sm:$0xff]
    %v407 = vld [vmem:[#allocation10 + $0x30] sm:$0xff]
    %v408 = vld [vmem:[#allocation10 + $0x38] sm:$0xff]
    %v409 = vld [vmem:[#allocation10 + $0x40] sm:$0xff]
    %v410 = vld [vmem:[#allocation10 + $0x48] sm:$0xff]
    %v411 = vld [vmem:[#allocation10 + $0x50] sm:$0xff]
    %v412 = vld [vmem:[#allocation10 + $0x58] sm:$0xff]
    %v413 = vld [vmem:[#allocation10 + $0x60] sm:$0xff]
    %v414 = vld [vmem:[#allocation10 + $0x68] sm:$0xff]
    %v415 = vld [vmem:[#allocation10 + $0x70] sm:$0xff]
    %v416 = vld [vmem:[#allocation10 + $0x78] sm:$0xff]
    %v417 = vld [vmem:[#allocation10 + $0x80] sm:$0xff]
    %v418 = vld [vmem:[#allocation10 + $0x88] sm:$0xff]
    %v419 = vld [vmem:[#allocation10 + $0x90] sm:$0xff]
    %v420 = vld [vmem:[#allocation10 + $0x98] sm:$0xff]
    %v421 = vld [vmem:[#allocation10 + $0xa0] sm:$0xff]
    %v422 = vld [vmem:[#allocation10 + $0xa8] sm:$0xff]
    %v423 = vld [vmem:[#allocation10 + $0xb0] sm:$0xff]
    %v424 = vld [vmem:[#allocation10 + $0xb8] sm:$0xff]
    %v425 = vld [vmem:[#allocation10 + $0xc0] sm:$0xff]
    %v426 = vld [vmem:[#allocation10 + $0xc8] sm:$0xff]
    %v427 = vld [vmem:[#allocation10 + $0xd0] sm:$0xff]
    %v428 = vld [vmem:[#allocation10 + $0xd8] sm:$0xff]
    %v429 = vld [vmem:[#allocation10 + $0xe0] sm:$0xff]
    %v430 = vld [vmem:[#allocation10 + $0xe8] sm:$0xff]
    %v431 = vld [vmem:[#allocation10 + $0xf0] sm:$0xff]
    %v432 = vld [vmem:[#allocation10 + $0xf8] sm:$0xff]
    %v433 = vld [vmem:[#allocation10 + $0x100] sm:$0xff]
    %v434 = vld [vmem:[#allocation10 + $0x108] sm:$0xff]
    %v435 = vld [vmem:[#allocation10 + $0x110] sm:$0xff]
    %v436 = vld [vmem:[#allocation10 + $0x118] sm:$0xff]
    %v437 = vld [vmem:[#allocation10 + $0x120] sm:$0xff]
    %v438 = vld [vmem:[#allocation10 + $0x128] sm:$0xff]
    %v439 = vld [vmem:[#allocation10 + $0x130] sm:$0xff]
    %v440 = vld [vmem:[#allocation10 + $0x138] sm:$0xff]
    %v441 = vld [vmem:[#allocation10 + $0x140] sm:$0xff]
    %v442 = vld [vmem:[#allocation10 + $0x148] sm:$0xff]
    %v443 = vld [vmem:[#allocation10 + $0x150] sm:$0xff]
    %v444 = vld [vmem:[#allocation10 + $0x158] sm:$0xff]
    %v445 = vld [vmem:[#allocation10 + $0x160] sm:$0xff]
    %v446 = vld [vmem:[#allocation10 + $0x168] sm:$0xff]
    %v447 = vld [vmem:[#allocation10 + $0x170] sm:$0xff]
    %v448 = vld [vmem:[#allocation10 + $0x178] sm:$0xff]
    %v449 = vld [vmem:[#allocation10 + $0x180] sm:$0xff]
    %v450 = vld [vmem:[#allocation10 + $0x188] sm:$0xff]
    %v451 = vld [vmem:[#allocation10 + $0x190] sm:$0xff]
    %v452 = vld [vmem:[#allocation10 + $0x198] sm:$0xff]
    %v453 = vld [vmem:[#allocation10 + $0x1a0] sm:$0xff]
    %v454 = vld [vmem:[#allocation10 + $0x1a8] sm:$0xff]
    %v455 = vld [vmem:[#allocation10 + $0x1b0] sm:$0xff]
    %v456 = vld [vmem:[#allocation10 + $0x1b8] sm:$0xff]
    %v457 = vld [vmem:[#allocation10 + $0x1c0] sm:$0xff]
    %v458 = vld [vmem:[#allocation10 + $0x1c8] sm:$0xff]
    %v459 = vld [vmem:[#allocation10 + $0x1d0] sm:$0xff]
    %v460 = vld [vmem:[#allocation10 + $0x1d8] sm:$0xff]
    %v461 = vld [vmem:[#allocation10 + $0x1e0] sm:$0xff]
    %v462 = vld [vmem:[#allocation10 + $0x1e8] sm:$0xff]
    %v463 = vld [vmem:[#allocation10 + $0x1f0] sm:$0xff]
    %v464 = vld [vmem:[#allocation10 + $0x1f8] sm:$0xff]
    %v465 = vld [vmem:[#allocation10 + $0x200] sm:$0xff]
    %v466 = vld [vmem:[#allocation10 + $0x208] sm:$0xff]
    %v467 = vld [vmem:[#allocation10 + $0x210] sm:$0xff]
    %v468 = vld [vmem:[#allocation10 + $0x218] sm:$0xff]
    %v469 = vld [vmem:[#allocation10 + $0x220] sm:$0xff]
    %v470 = vld [vmem:[#allocation10 + $0x228] sm:$0xff]
    %v471 = vld [vmem:[#allocation10 + $0x230] sm:$0xff]
    %v472 = vld [vmem:[#allocation10 + $0x238] sm:$0xff]
    %v473 = vld [vmem:[#allocation10 + $0x240] sm:$0xff]
    %v474 = vld [vmem:[#allocation10 + $0x248] sm:$0xff]
    %v475 = vld [vmem:[#allocation10 + $0x250] sm:$0xff]
    %v476 = vld [vmem:[#allocation10 + $0x258] sm:$0xff]
    %v477 = vld [vmem:[#allocation10 + $0x260] sm:$0xff]
    %v478 = vld [vmem:[#allocation10 + $0x268] sm:$0xff]
    %v479 = vld [vmem:[#allocation10 + $0x270] sm:$0xff]
    %v480 = vld [vmem:[#allocation10 + $0x278] sm:$0xff]
    %v481 = vld [vmem:[#allocation10 + $0x280] sm:$0xff]
    %v482 = vld [vmem:[#allocation10 + $0x288] sm:$0xff]
    %v483 = vld [vmem:[#allocation10 + $0x290] sm:$0xff]
    %v484 = vld [vmem:[#allocation10 + $0x298] sm:$0xff]
    %v485 = vld [vmem:[#allocation10 + $0x2a0] sm:$0xff]
    %v486 = vld [vmem:[#allocation10 + $0x2a8] sm:$0xff]
    %v487 = vld [vmem:[#allocation10 + $0x2b0] sm:$0xff]
    %v488 = vld [vmem:[#allocation10 + $0x2b8] sm:$0xff]
    %v489 = vld [vmem:[#allocation10 + $0x2c0] sm:$0xff]
    %v490 = vld [vmem:[#allocation10 + $0x2c8] sm:$0xff]
    %v491 = vld [vmem:[#allocation10 + $0x2d0] sm:$0xff]
    %v492 = vld [vmem:[#allocation10 + $0x2d8] sm:$0xff]
    %v493 = vld [vmem:[#allocation10 + $0x2e0] sm:$0xff]
    %v494 = vld [vmem:[#allocation10 + $0x2e8] sm:$0xff]
    %v495 = vld [vmem:[#allocation10 + $0x2f0] sm:$0xff]
    %v496 = vld [vmem:[#allocation10 + $0x2f8] sm:$0xff]
    %v497 = vld [vmem:[#allocation10 + $0x300] sm:$0xff]
    %v498 = vld [vmem:[#allocation10 + $0x308] sm:$0xff]
    %v499 = vld [vmem:[#allocation10 + $0x310] sm:$0xff]
    %v500 = vld [vmem:[#allocation10 + $0x318] sm:$0xff]
    %v501 = vld [vmem:[#allocation10 + $0x320] sm:$0xff]
    %v502 = vld [vmem:[#allocation10 + $0x328] sm:$0xff]
    %v503 = vld [vmem:[#allocation10 + $0x330] sm:$0xff]
    %v504 = vld [vmem:[#allocation10 + $0x338] sm:$0xff]
    %v505 = vld [vmem:[#allocation10 + $0x340] sm:$0xff]
    %v506 = vld [vmem:[#allocation10 + $0x348] sm:$0xff]
    %v507 = vld [vmem:[#allocation10 + $0x350] sm:$0xff]
    %v508 = vld [vmem:[#allocation10 + $0x358] sm:$0xff]
    %v509 = vld [vmem:[#allocation10 + $0x360] sm:$0xff]
    %v510 = vld [vmem:[#allocation10 + $0x368] sm:$0xff]
    %v511 = vld [vmem:[#allocation10 + $0x370] sm:$0xff]
    %v512 = vld [vmem:[#allocation10 + $0x378] sm:$0xff]
    %v513 = vld [vmem:[#allocation10 + $0x380] sm:$0xff]
    %v514 = vld [vmem:[#allocation10 + $0x388] sm:$0xff]
    %v515 = vld [vmem:[#allocation10 + $0x390] sm:$0xff]
    %v516 = vld [vmem:[#allocation10 + $0x398] sm:$0xff]
    %v517 = vld [vmem:[#allocation10 + $0x3a0] sm:$0xff]
    %v518 = vld [vmem:[#allocation10 + $0x3a8] sm:$0xff]
    %v519 = vld [vmem:[#allocation10 + $0x3b0] sm:$0xff]
    %v520 = vld [vmem:[#allocation10 + $0x3b8] sm:$0xff]
    %v521 = vld [vmem:[#allocation10 + $0x3c0] sm:$0xff]
    %v522 = vld [vmem:[#allocation10 + $0x3c8] sm:$0xff]
    %v523 = vld [vmem:[#allocation10 + $0x3d0] sm:$0xff]
    %v524 = vld [vmem:[#allocation10 + $0x3d8] sm:$0xff]
    %v525 = vld [vmem:[#allocation10 + $0x3e0] sm:$0xff]
    %v526 = vld [vmem:[#allocation10 + $0x3e8] sm:$0xff]
    %v527 = vld [vmem:[#allocation10 + $0x3f0] sm:$0xff]
    %v528 = vld [vmem:[#allocation10 + $0x3f8] sm:$0xff]
    %v529 = vld [vmem:[#allocation10 + $0x400] sm:$0xff]
    %v530 = vld [vmem:[#allocation10 + $0x408] sm:$0xff]
    %v531 = vld [vmem:[#allocation10 + $0x410] sm:$0xff]
    %v532 = vld [vmem:[#allocation10 + $0x418] sm:$0xff]
    %v533 = vld [vmem:[#allocation10 + $0x420] sm:$0xff]
    %v534 = vld [vmem:[#allocation10 + $0x428] sm:$0xff]
    %v535 = vld [vmem:[#allocation10 + $0x430] sm:$0xff]
    %v536 = vld [vmem:[#allocation10 + $0x438] sm:$0xff]
    %v537 = vld [vmem:[#allocation10 + $0x440] sm:$0xff]
    %v538 = vld [vmem:[#allocation10 + $0x448] sm:$0xff]
    %v539 = vld [vmem:[#allocation10 + $0x450] sm:$0xff]
    %v540 = vld [vmem:[#allocation10 + $0x458] sm:$0xff]
    %v541 = vld [vmem:[#allocation10 + $0x460] sm:$0xff]
    %v542 = vld [vmem:[#allocation10 + $0x468] sm:$0xff]
    %v543 = vld [vmem:[#allocation10 + $0x470] sm:$0xff]
    %v544 = vld [vmem:[#allocation10 + $0x478] sm:$0xff]
    %v545 = vld [vmem:[#allocation10 + $0x480] sm:$0xff]
    %v546 = vld [vmem:[#allocation10 + $0x488] sm:$0xff]
    %v547 = vld [vmem:[#allocation10 + $0x490] sm:$0xff]
    %v548 = vld [vmem:[#allocation10 + $0x498] sm:$0xff]
    %v549 = vld [vmem:[#allocation10 + $0x4a0] sm:$0xff]
    %v550 = vld [vmem:[#allocation10 + $0x4a8] sm:$0xff]
    %v551 = vld [vmem:[#allocation10 + $0x4b0] sm:$0xff]
    %v552 = vld [vmem:[#allocation10 + $0x4b8] sm:$0xff]
    %v553 = vld [vmem:[#allocation10 + $0x4c0] sm:$0xff]
    %v554 = vld [vmem:[#allocation10 + $0x4c8] sm:$0xff]
    %v555 = vld [vmem:[#allocation10 + $0x4d0] sm:$0xff]
    %v556 = vld [vmem:[#allocation10 + $0x4d8] sm:$0xff]
    %v557 = vld [vmem:[#allocation10 + $0x4e0] sm:$0xff]
    %v558 = vld [vmem:[#allocation10 + $0x4e8] sm:$0xff]
    %v559 = vld [vmem:[#allocation10 + $0x4f0] sm:$0xff]
    %v560 = vld [vmem:[#allocation10 + $0x4f8] sm:$0xff]
    %v561 = vld [vmem:[#allocation10 + $0x500] sm:$0xff]
    %v562 = vld [vmem:[#allocation10 + $0x508] sm:$0xff]
    %v563 = vld [vmem:[#allocation10 + $0x510] sm:$0xff]
    %v564 = vld [vmem:[#allocation10 + $0x518] sm:$0xff]
    %v565 = vld [vmem:[#allocation10 + $0x520] sm:$0xff]
    %v566 = vld [vmem:[#allocation10 + $0x528] sm:$0xff]
    %v567 = vld [vmem:[#allocation10 + $0x530] sm:$0xff]
    %v568 = vld [vmem:[#allocation10 + $0x538] sm:$0xff]
    %v569 = vld [vmem:[#allocation10 + $0x540] sm:$0xff]
    %v570 = vld [vmem:[#allocation10 + $0x548] sm:$0xff]
    %v571 = vld [vmem:[#allocation10 + $0x550] sm:$0xff]
    %v572 = vld [vmem:[#allocation10 + $0x558] sm:$0xff]
    %v573 = vld [vmem:[#allocation10 + $0x560] sm:$0xff]
    %v574 = vld [vmem:[#allocation10 + $0x568] sm:$0xff]
    %v575 = vld [vmem:[#allocation10 + $0x570] sm:$0xff]
    %v576 = vld [vmem:[#allocation10 + $0x578] sm:$0xff]
    %v577 = vld [vmem:[#allocation10 + $0x580] sm:$0xff]
    %v578 = vld [vmem:[#allocation10 + $0x588] sm:$0xff]
    %v579 = vld [vmem:[#allocation10 + $0x590] sm:$0xff]
    %v580 = vld [vmem:[#allocation10 + $0x598] sm:$0xff]
    %v581 = vld [vmem:[#allocation10 + $0x5a0] sm:$0xff]
    %v582 = vld [vmem:[#allocation10 + $0x5a8] sm:$0xff]
    %v583 = vld [vmem:[#allocation10 + $0x5b0] sm:$0xff]
    %v584 = vld [vmem:[#allocation10 + $0x5b8] sm:$0xff]
    %v585 = vld [vmem:[#allocation10 + $0x5c0] sm:$0xff]
    %v586 = vld [vmem:[#allocation10 + $0x5c8] sm:$0xff]
    %v587 = vld [vmem:[#allocation10 + $0x5d0] sm:$0xff]
    %v588 = vld [vmem:[#allocation10 + $0x5d8] sm:$0xff]
    %v589 = vld [vmem:[#allocation10 + $0x5e0] sm:$0xff]
    %v590 = vld [vmem:[#allocation10 + $0x5e8] sm:$0xff]
    %v591 = vld [vmem:[#allocation10 + $0x5f0] sm:$0xff]
    %v592 = vld [vmem:[#allocation10 + $0x5f8] sm:$0xff]
    %v593 = vld [vmem:[#allocation11] sm:$0xff]
    %v594 = vld [vmem:[#allocation11 + $0x8] sm:$0xf]
    %v597 = vperm.slane %v593, 0
    %v598 = vperm.slane %v593, 1
    %v599 = vperm.slane %v593, 2
    %v600 = vperm.slane %v593, 3
    %v601 = vperm.slane %v593, 4
    %v602 = vperm.slane %v593, 5
    %v603 = vperm.slane %v593, 6
    %v604 = vperm.slane %v593, 7
    %v605 = vperm.slane %v594, 0
    %v606 = vperm.slane %v594, 1
    %v607 = vperm.slane %v594, 2
    %v608 = vperm.slane %v594, 3
    %621 = vmatpush.msra.mxu0 %v581
    %622 = vmatpush.msra.mxu0 %v569
    %623 = vmatpush.msra.mxu0 %v557
    %624 = vmatpush.msra.mxu0 %v545
    %625 = vmatpush.msra.mxu0 %v533
    %626 = vmatpush.msra.mxu0 %v521
    %627 = vmatpush.msra.mxu0 %v509
    %628 = vmatpush.msra.mxu0 %v497
    %629 = vmatpush.msra.mxu0 %v485
    %630 = vmatpush.msra.mxu0 %v473
    %631 = vmatpush.msra.mxu0 %v461
    %632 = vmatpush.msra.mxu0 %v449
    %633 = vmatpush.msra.mxu0 %v437
    %634 = vmatpush.msra.mxu0 %v425
    %635 = vmatpush.msra.mxu0 %v413
    %636 = vmatpush.msra.mxu0 %v401
    %637 = vmatmul.f32.gmra.mxu0 %v396
    %v638 = vpop.f32.mrf.mxu0
    %v639 = vadd.f32 %v597, %v638
    %640 = vmatmul.f32.gmra.mxu0 %v397
    %v641 = vpop.f32.mrf.mxu0
    %v642 = vadd.f32 %v597, %v641
    %643 = vdwg.mxu0
    %644 = vmatpush.msra.mxu0 %v582
    %645 = vmatpush.msra.mxu0 %v570
    %646 = vmatpush.msra.mxu0 %v558
    %647 = vmatpush.msra.mxu0 %v546
    %648 = vmatpush.msra.mxu0 %v534
    %649 = vmatpush.msra.mxu0 %v522
    %650 = vmatpush.msra.mxu0 %v510
    %651 = vmatpush.msra.mxu0 %v498
    %652 = vmatpush.msra.mxu0 %v486
    %653 = vmatpush.msra.mxu0 %v474
    %654 = vmatpush.msra.mxu0 %v462
    %655 = vmatpush.msra.mxu0 %v450
    %656 = vmatpush.msra.mxu0 %v438
    %657 = vmatpush.msra.mxu0 %v426
    %658 = vmatpush.msra.mxu0 %v414
    %659 = vmatpush.msra.mxu0 %v402
    %660 = vmatmul.f32.gmra.mxu0 %v396
    %v661 = vpop.f32.mrf.mxu0
    %v662 = vadd.f32 %v598, %v661
    %663 = vmatmul.f32.gmra.mxu0 %v397
    %v664 = vpop.f32.mrf.mxu0
    %v665 = vadd.f32 %v598, %v664
    %666 = vdwg.mxu0
    %667 = vmatpush.msra.mxu0 %v583
    %668 = vmatpush.msra.mxu0 %v571
    %669 = vmatpush.msra.mxu0 %v559
    %670 = vmatpush.msra.mxu0 %v547
    %671 = vmatpush.msra.mxu0 %v535
    %672 = vmatpush.msra.mxu0 %v523
    %673 = vmatpush.msra.mxu0 %v511
    %674 = vmatpush.msra.mxu0 %v499
    %675 = vmatpush.msra.mxu0 %v487
    %676 = vmatpush.msra.mxu0 %v475
    %677 = vmatpush.msra.mxu0 %v463
    %678 = vmatpush.msra.mxu0 %v451
    %679 = vmatpush.msra.mxu0 %v439
    %680 = vmatpush.msra.mxu0 %v427
    %681 = vmatpush.msra.mxu0 %v415
    %682 = vmatpush.msra.mxu0 %v403
    %683 = vmatmul.f32.gmra.mxu0 %v396
    %v684 = vpop.f32.mrf.mxu0
    %v685 = vadd.f32 %v599, %v684
    %686 = vmatmul.f32.gmra.mxu0 %v397
    %v687 = vpop.f32.mrf.mxu0
    %v688 = vadd.f32 %v599, %v687
    %689 = vdwg.mxu0
    %690 = vmatpush.msra.mxu0 %v584
    %691 = vmatpush.msra.mxu0 %v572
    %692 = vmatpush.msra.mxu0 %v560
    %693 = vmatpush.msra.mxu0 %v548
    %694 = vmatpush.msra.mxu0 %v536
    %695 = vmatpush.msra.mxu0 %v524
    %696 = vmatpush.msra.mxu0 %v512
    %697 = vmatpush.msra.mxu0 %v500
    %698 = vmatpush.msra.mxu0 %v488
    %699 = vmatpush.msra.mxu0 %v476
    %700 = vmatpush.msra.mxu0 %v464
    %701 = vmatpush.msra.mxu0 %v452
    %702 = vmatpush.msra.mxu0 %v440
    %703 = vmatpush.msra.mxu0 %v428
    %704 = vmatpush.msra.mxu0 %v416
    %705 = vmatpush.msra.mxu0 %v404
    %706 = vmatmul.f32.gmra.mxu0 %v396
    %v707 = vpop.f32.mrf.mxu0
    %v708 = vadd.f32 %v600, %v707
    %709 = vmatmul.f32.gmra.mxu0 %v397
    %v710 = vpop.f32.mrf.mxu0
    %v711 = vadd.f32 %v600, %v710
    %712 = vdwg.mxu0
    %713 = vmatpush.msra.mxu0 %v585
    %714 = vmatpush.msra.mxu0 %v573
    %715 = vmatpush.msra.mxu0 %v561
    %716 = vmatpush.msra.mxu0 %v549
    %717 = vmatpush.msra.mxu0 %v537
    %718 = vmatpush.msra.mxu0 %v525
    %719 = vmatpush.msra.mxu0 %v513
    %720 = vmatpush.msra.mxu0 %v501
    %721 = vmatpush.msra.mxu0 %v489
    %722 = vmatpush.msra.mxu0 %v477
    %723 = vmatpush.msra.mxu0 %v465
    %724 = vmatpush.msra.mxu0 %v453
    %725 = vmatpush.msra.mxu0 %v441
    %726 = vmatpush.msra.mxu0 %v429
    %727 = vmatpush.msra.mxu0 %v417
    %728 = vmatpush.msra.mxu0 %v405
    %729 = vmatmul.f32.gmra.mxu0 %v396
    %v730 = vpop.f32.mrf.mxu0
    %v731 = vadd.f32 %v601, %v730
    %732 = vmatmul.f32.gmra.mxu0 %v397
    %v733 = vpop.f32.mrf.mxu0
    %v734 = vadd.f32 %v601, %v733
    %735 = vdwg.mxu0
    %736 = vmatpush.msra.mxu0 %v586
    %737 = vmatpush.msra.mxu0 %v574
    %738 = vmatpush.msra.mxu0 %v562
    %739 = vmatpush.msra.mxu0 %v550
    %740 = vmatpush.msra.mxu0 %v538
    %741 = vmatpush.msra.mxu0 %v526
    %742 = vmatpush.msra.mxu0 %v514
    %743 = vmatpush.msra.mxu0 %v502
    %744 = vmatpush.msra.mxu0 %v490
    %745 = vmatpush.msra.mxu0 %v478
    %746 = vmatpush.msra.mxu0 %v466
    %747 = vmatpush.msra.mxu0 %v454
    %748 = vmatpush.msra.mxu0 %v442
    %749 = vmatpush.msra.mxu0 %v430
    %750 = vmatpush.msra.mxu0 %v418
    %751 = vmatpush.msra.mxu0 %v406
    %752 = vmatmul.f32.gmra.mxu0 %v396
    %v753 = vpop.f32.mrf.mxu0
    %v754 = vadd.f32 %v602, %v753
    %755 = vmatmul.f32.gmra.mxu0 %v397
    %v756 = vpop.f32.mrf.mxu0
    %v757 = vadd.f32 %v602, %v756
    %758 = vdwg.mxu0
    %759 = vmatpush.msra.mxu0 %v587
    %760 = vmatpush.msra.mxu0 %v575
    %761 = vmatpush.msra.mxu0 %v563
    %762 = vmatpush.msra.mxu0 %v551
    %763 = vmatpush.msra.mxu0 %v539
    %764 = vmatpush.msra.mxu0 %v527
    %765 = vmatpush.msra.mxu0 %v515
    %766 = vmatpush.msra.mxu0 %v503
    %767 = vmatpush.msra.mxu0 %v491
    %768 = vmatpush.msra.mxu0 %v479
    %769 = vmatpush.msra.mxu0 %v467
    %770 = vmatpush.msra.mxu0 %v455
    %771 = vmatpush.msra.mxu0 %v443
    %772 = vmatpush.msra.mxu0 %v431
    %773 = vmatpush.msra.mxu0 %v419
    %774 = vmatpush.msra.mxu0 %v407
    %775 = vmatmul.f32.gmra.mxu0 %v396
    %v776 = vpop.f32.mrf.mxu0
    %v777 = vadd.f32 %v603, %v776
    %778 = vmatmul.f32.gmra.mxu0 %v397
    %v779 = vpop.f32.mrf.mxu0
    %v780 = vadd.f32 %v603, %v779
    %781 = vdwg.mxu0
    %782 = vmatpush.msra.mxu0 %v588
    %783 = vmatpush.msra.mxu0 %v576
    %784 = vmatpush.msra.mxu0 %v564
    %785 = vmatpush.msra.mxu0 %v552
    %786 = vmatpush.msra.mxu0 %v540
    %787 = vmatpush.msra.mxu0 %v528
    %788 = vmatpush.msra.mxu0 %v516
    %789 = vmatpush.msra.mxu0 %v504
    %790 = vmatpush.msra.mxu0 %v492
    %791 = vmatpush.msra.mxu0 %v480
    %792 = vmatpush.msra.mxu0 %v468
    %793 = vmatpush.msra.mxu0 %v456
    %794 = vmatpush.msra.mxu0 %v444
    %795 = vmatpush.msra.mxu0 %v432
    %796 = vmatpush.msra.mxu0 %v420
    %797 = vmatpush.msra.mxu0 %v408
    %798 = vmatmul.f32.gmra.mxu0 %v396
    %v799 = vpop.f32.mrf.mxu0
    %v800 = vadd.f32 %v604, %v799
    %801 = vmatmul.f32.gmra.mxu0 %v397
    %v802 = vpop.f32.mrf.mxu0
    %v803 = vadd.f32 %v604, %v802
    %804 = vdwg.mxu0
    %805 = vmatpush.msra.mxu0 %v589
    %806 = vmatpush.msra.mxu0 %v577
    %807 = vmatpush.msra.mxu0 %v565
    %808 = vmatpush.msra.mxu0 %v553
    %809 = vmatpush.msra.mxu0 %v541
    %810 = vmatpush.msra.mxu0 %v529
    %811 = vmatpush.msra.mxu0 %v517
    %812 = vmatpush.msra.mxu0 %v505
    %813 = vmatpush.msra.mxu0 %v493
    %814 = vmatpush.msra.mxu0 %v481
    %815 = vmatpush.msra.mxu0 %v469
    %816 = vmatpush.msra.mxu0 %v457
    %817 = vmatpush.msra.mxu0 %v445
    %818 = vmatpush.msra.mxu0 %v433
    %819 = vmatpush.msra.mxu0 %v421
    %820 = vmatpush.msra.mxu0 %v409
    %821 = vmatmul.f32.gmra.mxu0 %v396
    %v822 = vpop.f32.mrf.mxu0
    %v823 = vadd.f32 %v605, %v822
    %824 = vmatmul.f32.gmra.mxu0 %v397
    %v825 = vpop.f32.mrf.mxu0
    %v826 = vadd.f32 %v605, %v825
    %827 = vdwg.mxu0
    %828 = vmatpush.msra.mxu0 %v590
    %829 = vmatpush.msra.mxu0 %v578
    %830 = vmatpush.msra.mxu0 %v566
    %831 = vmatpush.msra.mxu0 %v554
    %832 = vmatpush.msra.mxu0 %v542
    %833 = vmatpush.msra.mxu0 %v530
    %834 = vmatpush.msra.mxu0 %v518
    %835 = vmatpush.msra.mxu0 %v506
    %836 = vmatpush.msra.mxu0 %v494
    %837 = vmatpush.msra.mxu0 %v482
    %838 = vmatpush.msra.mxu0 %v470
    %839 = vmatpush.msra.mxu0 %v458
    %840 = vmatpush.msra.mxu0 %v446
    %841 = vmatpush.msra.mxu0 %v434
    %842 = vmatpush.msra.mxu0 %v422
    %843 = vmatpush.msra.mxu0 %v410
    %844 = vmatmul.f32.gmra.mxu0 %v396
    %v845 = vpop.f32.mrf.mxu0
    %v846 = vadd.f32 %v606, %v845
    %847 = vmatmul.f32.gmra.mxu0 %v397
    %v848 = vpop.f32.mrf.mxu0
    %v849 = vadd.f32 %v606, %v848
    %850 = vdwg.mxu0
    %851 = vmatpush.msra.mxu0 %v591
    %852 = vmatpush.msra.mxu0 %v579
    %853 = vmatpush.msra.mxu0 %v567
    %854 = vmatpush.msra.mxu0 %v555
    %855 = vmatpush.msra.mxu0 %v543
    %856 = vmatpush.msra.mxu0 %v531
    %857 = vmatpush.msra.mxu0 %v519
    %858 = vmatpush.msra.mxu0 %v507
    %859 = vmatpush.msra.mxu0 %v495
    %860 = vmatpush.msra.mxu0 %v483
    %861 = vmatpush.msra.mxu0 %v471
    %862 = vmatpush.msra.mxu0 %v459
    %863 = vmatpush.msra.mxu0 %v447
    %864 = vmatpush.msra.mxu0 %v435
    %865 = vmatpush.msra.mxu0 %v423
    %866 = vmatpush.msra.mxu0 %v411
    %867 = vmatmul.f32.gmra.mxu0 %v396
    %v868 = vpop.f32.mrf.mxu0
    %v869 = vadd.f32 %v607, %v868
    %870 = vmatmul.f32.gmra.mxu0 %v397
    %v871 = vpop.f32.mrf.mxu0
    %v872 = vadd.f32 %v607, %v871
    %873 = vdwg.mxu0
    %874 = vmatpush.msra.mxu0 %v592
    %875 = vmatpush.msra.mxu0 %v580
    %876 = vmatpush.msra.mxu0 %v568
    %877 = vmatpush.msra.mxu0 %v556
    %878 = vmatpush.msra.mxu0 %v544
    %879 = vmatpush.msra.mxu0 %v532
    %880 = vmatpush.msra.mxu0 %v520
    %881 = vmatpush.msra.mxu0 %v508
    %882 = vmatpush.msra.mxu0 %v496
    %883 = vmatpush.msra.mxu0 %v484
    %884 = vmatpush.msra.mxu0 %v472
    %885 = vmatpush.msra.mxu0 %v460
    %886 = vmatpush.msra.mxu0 %v448
    %887 = vmatpush.msra.mxu0 %v436
    %888 = vmatpush.msra.mxu0 %v424
    %889 = vmatpush.msra.mxu0 %v412
    %890 = vmatmul.f32.gmra.mxu0 %v396
    %v891 = vpop.f32.mrf.mxu0
    %v892 = vadd.f32 %v608, %v891
    %893 = vmatmul.f32.gmra.mxu0 %v397
    %v894 = vpop.f32.mrf.mxu0
    %v895 = vadd.f32 %v608, %v894
    %896 = vdwg.mxu0
    %897 = vmatpush.xpose.msra.mxu0 0.0
    %898 = vmatpush.xpose.msra.mxu0 0.0
    %899 = vmatpush.xpose.msra.mxu0 0.0
    %900 = vmatpush.xpose.msra.mxu0 0.0
    %901 = vmatpush.xpose.msra.mxu0 0.0
    %902 = vmatpush.xpose.msra.mxu0 0.0
    %903 = vmatpush.xpose.msra.mxu0 0.0
    %904 = vmatpush.xpose.msra.mxu0 0.0
    %905 = vmatpush.xpose.msra.mxu0 0.0
    %906 = vmatpush.xpose.msra.mxu0 0.0
    %907 = vmatpush.xpose.msra.mxu0 0.0
    %908 = vmatpush.xpose.msra.mxu0 0.0
    %909 = vmatpush.xpose.msra.mxu0 0.0
    %910 = vmatpush.xpose.msra.mxu0 0.0
    %911 = vmatpush.xpose.msra.mxu0 0.0
    %912 = vmatpush.xpose.msra.mxu0 %v731
    %913 = vmatmul.f32.gmra.mxu0 %v639
    %v914 = vpop.f32.mrf.mxu0
    %v915 = vadd.f32 0.0, %v914
    %916 = vdwg.mxu0
    %v917 = vmul.f32 %v915, 0.35355338
    %v918 = vperm.slane %v400, 0
    %v919 = vadd.f32 %v917, %v918
    %vm920 = vcmask 64512
    %v921 = vsel %vm920, %v919, -inf
    %922 = vmax.xlane.f32.xlu0 %v921
    %v923 = vpop.xlane.xlu0 %922
    %v924 = vsub.f32 %v919, %v923
    %v925 = vmul.f32 %v924, 1.442695
    %v926 = vpow.pop %v925
    %v927 = vsel %vm920, %v926, 0.0
    %928 = vadd.xlane.f32.xlu0 %v927
    %v929 = vpop.xlane.xlu0 %928
    %v930 = vrcp.pop %v929
    %v931 = vmul.f32 %v929, %v930
    %v932 = vsub.f32 1.0, %v931
    %v933 = vmul.f32 %v930, %v932
    %v934 = vadd.f32 %v930, %v933
    %vm935 = vweird.f32 %v929
    %vm936 = vweird.f32 %v930
    %vm937 = vmor %vm935, %vm936
    %v938 = vsel %vm937, %v930, %v934
    %v939 = vand.u32 2147483647, %v929
    %vm940 = vcmp.eq.f32.partialorder %v939, 8.507059e+37
    %v941 = vand.u32 %v929, 2147483648
    %v942 = vor.u32 1.1754944e-38, %v941
    %v943 = vsel %vm940, %v942, %v938
    %v944 = vmul.f32 %v926, %v943
    %v946 = vsel %vm920, %v944, 0
    %948 = vmatpush.msra.mxu0 0.0
    %949 = vmatpush.msra.mxu0 0.0
    %950 = vmatpush.msra.mxu0 0.0
    %951 = vmatpush.msra.mxu0 0.0
    %952 = vmatpush.msra.mxu0 0.0
    %953 = vmatpush.msra.mxu0 0.0
    %954 = vmatpush.msra.mxu0 0.0
    %955 = vmatpush.msra.mxu0 0.0
    %956 = vmatpush.msra.mxu0 0.0
    %957 = vmatpush.msra.mxu0 0.0
    %958 = vmatpush.msra.mxu0 0.0
    %959 = vmatpush.msra.mxu0 0.0
    %960 = vmatpush.msra.mxu0 0.0
    %961 = vmatpush.msra.mxu0 0.0
    %962 = vmatpush.msra.mxu0 0.0
    %963 = vmatpush.msra.mxu0 %v823
    %964 = vmatmul.f32.gmra.mxu0 %v946
    %v965 = vpop.f32.mrf.mxu0
    %v966 = vadd.f32 0.0, %v965
    %967 = vdwg.mxu0
    %968 = vmatpush.xpose.msra.mxu0 0.0
    %969 = vmatpush.xpose.msra.mxu0 0.0
    %970 = vmatpush.xpose.msra.mxu0 0.0
    %971 = vmatpush.xpose.msra.mxu0 0.0
    %972 = vmatpush.xpose.msra.mxu0 0.0
    %973 = vmatpush.xpose.msra.mxu0 0.0
    %974 = vmatpush.xpose.msra.mxu0 0.0
    %975 = vmatpush.xpose.msra.mxu0 0.0
    %976 = vmatpush.xpose.msra.mxu0 0.0
    %977 = vmatpush.xpose.msra.mxu0 0.0
    %978 = vmatpush.xpose.msra.mxu0 0.0
    %979 = vmatpush.xpose.msra.mxu0 0.0
    %980 = vmatpush.xpose.msra.mxu0 0.0
    %981 = vmatpush.xpose.msra.mxu0 0.0
    %982 = vmatpush.xpose.msra.mxu0 0.0
    %983 = vmatpush.xpose.msra.mxu0 %v754
    %984 = vmatmul.f32.gmra.mxu0 %v662
    %v985 = vpop.f32.mrf.mxu0
    %v986 = vadd.f32 0.0, %v985
    %987 = vdwg.mxu0
    %v988 = vmul.f32 %v986, 0.35355338
    %v989 = vadd.f32 %v988, %v918
    %v990 = vsel %vm920, %v989, -inf
    %991 = vmax.xlane.f32.xlu0 %v990
    %v992 = vpop.xlane.xlu0 %991
    %v993 = vsub.f32 %v989, %v992
    %v994 = vmul.f32 %v993, 1.442695
    %v995 = vpow.pop %v994
    %v996 = vsel %vm920, %v995, 0.0
    %997 = vadd.xlane.f32.xlu0 %v996
    %v998 = vpop.xlane.xlu0 %997
    %v999 = vrcp.pop %v998
    %v1000 = vmul.f32 %v998, %v999
    %v1001 = vsub.f32 1.0, %v1000
    %v1002 = vmul.f32 %v999, %v1001
    %v1003 = vadd.f32 %v999, %v1002
    %vm1004 = vweird.f32 %v998
    %vm1005 = vweird.f32 %v999
    %vm1006 = vmor %vm1004, %vm1005
    %v1007 = vsel %vm1006, %v999, %v1003
    %v1008 = vand.u32 2147483647, %v998
    %vm1009 = vcmp.eq.f32.partialorder %v1008, 8.507059e+37
    %v1010 = vand.u32 %v998, 2147483648
    %v1011 = vor.u32 1.1754944e-38, %v1010
    %v1012 = vsel %vm1009, %v1011, %v1007
    %v1013 = vmul.f32 %v995, %v1012
    %v1015 = vsel %vm920, %v1013, 0
    %1017 = vmatpush.msra.mxu0 0.0
    %1018 = vmatpush.msra.mxu0 0.0
    %1019 = vmatpush.msra.mxu0 0.0
    %1020 = vmatpush.msra.mxu0 0.0
    %1021 = vmatpush.msra.mxu0 0.0
    %1022 = vmatpush.msra.mxu0 0.0
    %1023 = vmatpush.msra.mxu0 0.0
    %1024 = vmatpush.msra.mxu0 0.0
    %1025 = vmatpush.msra.mxu0 0.0
    %1026 = vmatpush.msra.mxu0 0.0
    %1027 = vmatpush.msra.mxu0 0.0
    %1028 = vmatpush.msra.mxu0 0.0
    %1029 = vmatpush.msra.mxu0 0.0
    %1030 = vmatpush.msra.mxu0 0.0
    %1031 = vmatpush.msra.mxu0 0.0
    %1032 = vmatpush.msra.mxu0 %v846
    %1033 = vmatmul.f32.gmra.mxu0 %v1015
    %v1034 = vpop.f32.mrf.mxu0
    %v1035 = vadd.f32 0.0, %v1034
    %1036 = vdwg.mxu0
    %1037 = vmatpush.xpose.msra.mxu0 0.0
    %1038 = vmatpush.xpose.msra.mxu0 0.0
    %1039 = vmatpush.xpose.msra.mxu0 0.0
    %1040 = vmatpush.xpose.msra.mxu0 0.0
    %1041 = vmatpush.xpose.msra.mxu0 0.0
    %1042 = vmatpush.xpose.msra.mxu0 0.0
    %1043 = vmatpush.xpose.msra.mxu0 0.0
    %1044 = vmatpush.xpose.msra.mxu0 0.0
    %1045 = vmatpush.xpose.msra.mxu0 0.0
    %1046 = vmatpush.xpose.msra.mxu0 0.0
    %1047 = vmatpush.xpose.msra.mxu0 0.0
    %1048 = vmatpush.xpose.msra.mxu0 0.0
    %1049 = vmatpush.xpose.msra.mxu0 0.0
    %1050 = vmatpush.xpose.msra.mxu0 0.0
    %1051 = vmatpush.xpose.msra.mxu0 0.0
    %1052 = vmatpush.xpose.msra.mxu0 %v777
    %1053 = vmatmul.f32.gmra.mxu0 %v685
    %v1054 = vpop.f32.mrf.mxu0
    %v1055 = vadd.f32 0.0, %v1054
    %1056 = vdwg.mxu0
    %v1057 = vmul.f32 %v1055, 0.35355338
    %v1058 = vadd.f32 %v1057, %v918
    %v1059 = vsel %vm920, %v1058, -inf
    %1060 = vmax.xlane.f32.xlu0 %v1059
    %v1061 = vpop.xlane.xlu0 %1060
    %v1062 = vsub.f32 %v1058, %v1061
    %v1063 = vmul.f32 %v1062, 1.442695
    %v1064 = vpow.pop %v1063
    %v1065 = vsel %vm920, %v1064, 0.0
    %1066 = vadd.xlane.f32.xlu0 %v1065
    %v1067 = vpop.xlane.xlu0 %1066
    %v1068 = vrcp.pop %v1067
    %v1069 = vmul.f32 %v1067, %v1068
    %v1070 = vsub.f32 1.0, %v1069
    %v1071 = vmul.f32 %v1068, %v1070
    %v1072 = vadd.f32 %v1068, %v1071
    %vm1073 = vweird.f32 %v1067
    %vm1074 = vweird.f32 %v1068
    %vm1075 = vmor %vm1073, %vm1074
    %v1076 = vsel %vm1075, %v1068, %v1072
    %v1077 = vand.u32 2147483647, %v1067
    %vm1078 = vcmp.eq.f32.partialorder %v1077, 8.507059e+37
    %v1079 = vand.u32 %v1067, 2147483648
    %v1080 = vor.u32 1.1754944e-38, %v1079
    %v1081 = vsel %vm1078, %v1080, %v1076
    %v1082 = vmul.f32 %v1064, %v1081
    %v1084 = vsel %vm920, %v1082, 0
    %1086 = vmatpush.msra.mxu0 0.0
    %1087 = vmatpush.msra.mxu0 0.0
    %1088 = vmatpush.msra.mxu0 0.0
    %1089 = vmatpush.msra.mxu0 0.0
    %1090 = vmatpush.msra.mxu0 0.0
    %1091 = vmatpush.msra.mxu0 0.0
    %1092 = vmatpush.msra.mxu0 0.0
    %1093 = vmatpush.msra.mxu0 0.0
    %1094 = vmatpush.msra.mxu0 0.0
    %1095 = vmatpush.msra.mxu0 0.0
    %1096 = vmatpush.msra.mxu0 0.0
    %1097 = vmatpush.msra.mxu0 0.0
    %1098 = vmatpush.msra.mxu0 0.0
    %1099 = vmatpush.msra.mxu0 0.0
    %1100 = vmatpush.msra.mxu0 0.0
    %1101 = vmatpush.msra.mxu0 %v869
    %1102 = vmatmul.f32.gmra.mxu0 %v1084
    %v1103 = vpop.f32.mrf.mxu0
    %v1104 = vadd.f32 0.0, %v1103
    %1105 = vdwg.mxu0
    %1106 = vmatpush.xpose.msra.mxu0 0.0
    %1107 = vmatpush.xpose.msra.mxu0 0.0
    %1108 = vmatpush.xpose.msra.mxu0 0.0
    %1109 = vmatpush.xpose.msra.mxu0 0.0
    %1110 = vmatpush.xpose.msra.mxu0 0.0
    %1111 = vmatpush.xpose.msra.mxu0 0.0
    %1112 = vmatpush.xpose.msra.mxu0 0.0
    %1113 = vmatpush.xpose.msra.mxu0 0.0
    %1114 = vmatpush.xpose.msra.mxu0 0.0
    %1115 = vmatpush.xpose.msra.mxu0 0.0
    %1116 = vmatpush.xpose.msra.mxu0 0.0
    %1117 = vmatpush.xpose.msra.mxu0 0.0
    %1118 = vmatpush.xpose.msra.mxu0 0.0
    %1119 = vmatpush.xpose.msra.mxu0 0.0
    %1120 = vmatpush.xpose.msra.mxu0 0.0
    %1121 = vmatpush.xpose.msra.mxu0 %v800
    %1122 = vmatmul.f32.gmra.mxu0 %v708
    %v1123 = vpop.f32.mrf.mxu0
    %v1124 = vadd.f32 0.0, %v1123
    %1125 = vdwg.mxu0
    %v1126 = vmul.f32 %v1124, 0.35355338
    %v1127 = vadd.f32 %v1126, %v918
    %v1128 = vsel %vm920, %v1127, -inf
    %1129 = vmax.xlane.f32.xlu0 %v1128
    %v1130 = vpop.xlane.xlu0 %1129
    %v1131 = vsub.f32 %v1127, %v1130
    %v1132 = vmul.f32 %v1131, 1.442695
    %v1133 = vpow.pop %v1132
    %v1134 = vsel %vm920, %v1133, 0.0
    %1135 = vadd.xlane.f32.xlu0 %v1134
    %v1136 = vpop.xlane.xlu0 %1135
    %v1137 = vrcp.pop %v1136
    %v1138 = vmul.f32 %v1136, %v1137
    %v1139 = vsub.f32 1.0, %v1138
    %v1140 = vmul.f32 %v1137, %v1139
    %v1141 = vadd.f32 %v1137, %v1140
    %vm1142 = vweird.f32 %v1136
    %vm1143 = vweird.f32 %v1137
    %vm1144 = vmor %vm1142, %vm1143
    %v1145 = vsel %vm1144, %v1137, %v1141
    %v1146 = vand.u32 2147483647, %v1136
    %vm1147 = vcmp.eq.f32.partialorder %v1146, 8.507059e+37
    %v1148 = vand.u32 %v1136, 2147483648
    %v1149 = vor.u32 1.1754944e-38, %v1148
    %v1150 = vsel %vm1147, %v1149, %v1145
    %v1151 = vmul.f32 %v1133, %v1150
    %v1153 = vsel %vm920, %v1151, 0
    %1155 = vmatpush.msra.mxu0 0.0
    %1156 = vmatpush.msra.mxu0 0.0
    %1157 = vmatpush.msra.mxu0 0.0
    %1158 = vmatpush.msra.mxu0 0.0
    %1159 = vmatpush.msra.mxu0 0.0
    %1160 = vmatpush.msra.mxu0 0.0
    %1161 = vmatpush.msra.mxu0 0.0
    %1162 = vmatpush.msra.mxu0 0.0
    %1163 = vmatpush.msra.mxu0 0.0
    %1164 = vmatpush.msra.mxu0 0.0
    %1165 = vmatpush.msra.mxu0 0.0
    %1166 = vmatpush.msra.mxu0 0.0
    %1167 = vmatpush.msra.mxu0 0.0
    %1168 = vmatpush.msra.mxu0 0.0
    %1169 = vmatpush.msra.mxu0 0.0
    %1170 = vmatpush.msra.mxu0 %v892
    %1171 = vmatmul.f32.gmra.mxu0 %v1153
    %v1172 = vpop.f32.mrf.mxu0
    %v1173 = vadd.f32 0.0, %v1172
    %1174 = vdwg.mxu0
    %1175 = vmatpush.xpose.msra.mxu0 0.0
    %1176 = vmatpush.xpose.msra.mxu0 0.0
    %1177 = vmatpush.xpose.msra.mxu0 0.0
    %1178 = vmatpush.xpose.msra.mxu0 0.0
    %1179 = vmatpush.xpose.msra.mxu0 0.0
    %1180 = vmatpush.xpose.msra.mxu0 0.0
    %1181 = vmatpush.xpose.msra.mxu0 0.0
    %1182 = vmatpush.xpose.msra.mxu0 0.0
    %1183 = vmatpush.xpose.msra.mxu0 0.0
    %1184 = vmatpush.xpose.msra.mxu0 0.0
    %1185 = vmatpush.xpose.msra.mxu0 0.0
    %1186 = vmatpush.xpose.msra.mxu0 0.0
    %1187 = vmatpush.xpose.msra.mxu0 0.0
    %1188 = vmatpush.xpose.msra.mxu0 0.0
    %1189 = vmatpush.xpose.msra.mxu0 0.0
    %1190 = vmatpush.xpose.msra.mxu0 %v734
    %1191 = vmatmul.f32.gmra.mxu0 %v642
    %v1192 = vpop.f32.mrf.mxu0
    %v1193 = vadd.f32 0.0, %v1192
    %1194 = vdwg.mxu0
    %v1195 = vmul.f32 %v1193, 0.35355338
    %v1196 = vperm.slane %v400, 1
    %v1197 = vadd.f32 %v1195, %v1196
    %v1198 = vsel %vm920, %v1197, -inf
    %1199 = vmax.xlane.f32.xlu0 %v1198
    %v1200 = vpop.xlane.xlu0 %1199
    %v1201 = vsub.f32 %v1197, %v1200
    %v1202 = vmul.f32 %v1201, 1.442695
    %v1203 = vpow.pop %v1202
    %v1204 = vsel %vm920, %v1203, 0.0
    %1205 = vadd.xlane.f32.xlu0 %v1204
    %v1206 = vpop.xlane.xlu0 %1205
    %v1207 = vrcp.pop %v1206
    %v1208 = vmul.f32 %v1206, %v1207
    %v1209 = vsub.f32 1.0, %v1208
    %v1210 = vmul.f32 %v1207, %v1209
    %v1211 = vadd.f32 %v1207, %v1210
    %vm1212 = vweird.f32 %v1206
    %vm1213 = vweird.f32 %v1207
    %vm1214 = vmor %vm1212, %vm1213
    %v1215 = vsel %vm1214, %v1207, %v1211
    %v1216 = vand.u32 2147483647, %v1206
    %vm1217 = vcmp.eq.f32.partialorder %v1216, 8.507059e+37
    %v1218 = vand.u32 %v1206, 2147483648
    %v1219 = vor.u32 1.1754944e-38, %v1218
    %v1220 = vsel %vm1217, %v1219, %v1215
    %v1221 = vmul.f32 %v1203, %v1220
    %v1223 = vsel %vm920, %v1221, 0
    %1225 = vmatpush.msra.mxu0 0.0
    %1226 = vmatpush.msra.mxu0 0.0
    %1227 = vmatpush.msra.mxu0 0.0
    %1228 = vmatpush.msra.mxu0 0.0
    %1229 = vmatpush.msra.mxu0 0.0
    %1230 = vmatpush.msra.mxu0 0.0
    %1231 = vmatpush.msra.mxu0 0.0
    %1232 = vmatpush.msra.mxu0 0.0
    %1233 = vmatpush.msra.mxu0 0.0
    %1234 = vmatpush.msra.mxu0 0.0
    %1235 = vmatpush.msra.mxu0 0.0
    %1236 = vmatpush.msra.mxu0 0.0
    %1237 = vmatpush.msra.mxu0 0.0
    %1238 = vmatpush.msra.mxu0 0.0
    %1239 = vmatpush.msra.mxu0 0.0
    %1240 = vmatpush.msra.mxu0 %v826
    %1241 = vmatmul.f32.gmra.mxu0 %v1223
    %v1242 = vpop.f32.mrf.mxu0
    %v1243 = vadd.f32 0.0, %v1242
    %1244 = vdwg.mxu0
    %1245 = vmatpush.xpose.msra.mxu0 0.0
    %1246 = vmatpush.xpose.msra.mxu0 0.0
    %1247 = vmatpush.xpose.msra.mxu0 0.0
    %1248 = vmatpush.xpose.msra.mxu0 0.0
    %1249 = vmatpush.xpose.msra.mxu0 0.0
    %1250 = vmatpush.xpose.msra.mxu0 0.0
    %1251 = vmatpush.xpose.msra.mxu0 0.0
    %1252 = vmatpush.xpose.msra.mxu0 0.0
    %1253 = vmatpush.xpose.msra.mxu0 0.0
    %1254 = vmatpush.xpose.msra.mxu0 0.0
    %1255 = vmatpush.xpose.msra.mxu0 0.0
    %1256 = vmatpush.xpose.msra.mxu0 0.0
    %1257 = vmatpush.xpose.msra.mxu0 0.0
    %1258 = vmatpush.xpose.msra.mxu0 0.0
    %1259 = vmatpush.xpose.msra.mxu0 0.0
    %1260 = vmatpush.xpose.msra.mxu0 %v757
    %1261 = vmatmul.f32.gmra.mxu0 %v665
    %v1262 = vpop.f32.mrf.mxu0
    %v1263 = vadd.f32 0.0, %v1262
    %1264 = vdwg.mxu0
    %v1265 = vmul.f32 %v1263, 0.35355338
    %v1266 = vadd.f32 %v1265, %v1196
    %v1267 = vsel %vm920, %v1266, -inf
    %1268 = vmax.xlane.f32.xlu0 %v1267
    %v1269 = vpop.xlane.xlu0 %1268
    %v1270 = vsub.f32 %v1266, %v1269
    %v1271 = vmul.f32 %v1270, 1.442695
    %v1272 = vpow.pop %v1271
    %v1273 = vsel %vm920, %v1272, 0.0
    %1274 = vadd.xlane.f32.xlu0 %v1273
    %v1275 = vpop.xlane.xlu0 %1274
    %v1276 = vrcp.pop %v1275
    %v1277 = vmul.f32 %v1275, %v1276
    %v1278 = vsub.f32 1.0, %v1277
    %v1279 = vmul.f32 %v1276, %v1278
    %v1280 = vadd.f32 %v1276, %v1279
    %vm1281 = vweird.f32 %v1275
    %vm1282 = vweird.f32 %v1276
    %vm1283 = vmor %vm1281, %vm1282
    %v1284 = vsel %vm1283, %v1276, %v1280
    %v1285 = vand.u32 2147483647, %v1275
    %vm1286 = vcmp.eq.f32.partialorder %v1285, 8.507059e+37
    %v1287 = vand.u32 %v1275, 2147483648
    %v1288 = vor.u32 1.1754944e-38, %v1287
    %v1289 = vsel %vm1286, %v1288, %v1284
    %v1290 = vmul.f32 %v1272, %v1289
    %v1292 = vsel %vm920, %v1290, 0
    %1294 = vmatpush.msra.mxu0 0.0
    %1295 = vmatpush.msra.mxu0 0.0
    %1296 = vmatpush.msra.mxu0 0.0
    %1297 = vmatpush.msra.mxu0 0.0
    %1298 = vmatpush.msra.mxu0 0.0
    %1299 = vmatpush.msra.mxu0 0.0
    %1300 = vmatpush.msra.mxu0 0.0
    %1301 = vmatpush.msra.mxu0 0.0
    %1302 = vmatpush.msra.mxu0 0.0
    %1303 = vmatpush.msra.mxu0 0.0
    %1304 = vmatpush.msra.mxu0 0.0
    %1305 = vmatpush.msra.mxu0 0.0
    %1306 = vmatpush.msra.mxu0 0.0
    %1307 = vmatpush.msra.mxu0 0.0
    %1308 = vmatpush.msra.mxu0 0.0
    %1309 = vmatpush.msra.mxu0 %v849
    %1310 = vmatmul.f32.gmra.mxu0 %v1292
    %v1311 = vpop.f32.mrf.mxu0
    %v1312 = vadd.f32 0.0, %v1311
    %1313 = vdwg.mxu0
    %1314 = vmatpush.xpose.msra.mxu0 0.0
    %1315 = vmatpush.xpose.msra.mxu0 0.0
    %1316 = vmatpush.xpose.msra.mxu0 0.0
    %1317 = vmatpush.xpose.msra.mxu0 0.0
    %1318 = vmatpush.xpose.msra.mxu0 0.0
    %1319 = vmatpush.xpose.msra.mxu0 0.0
    %1320 = vmatpush.xpose.msra.mxu0 0.0
    %1321 = vmatpush.xpose.msra.mxu0 0.0
    %1322 = vmatpush.xpose.msra.mxu0 0.0
    %1323 = vmatpush.xpose.msra.mxu0 0.0
    %1324 = vmatpush.xpose.msra.mxu0 0.0
    %1325 = vmatpush.xpose.msra.mxu0 0.0
    %1326 = vmatpush.xpose.msra.mxu0 0.0
    %1327 = vmatpush.xpose.msra.mxu0 0.0
    %1328 = vmatpush.xpose.msra.mxu0 0.0
    %1329 = vmatpush.xpose.msra.mxu0 %v780
    %1330 = vmatmul.f32.gmra.mxu0 %v688
    %v1331 = vpop.f32.mrf.mxu0
    %v1332 = vadd.f32 0.0, %v1331
    %1333 = vdwg.mxu0
    %v1334 = vmul.f32 %v1332, 0.35355338
    %v1335 = vadd.f32 %v1334, %v1196
    %v1336 = vsel %vm920, %v1335, -inf
    %1337 = vmax.xlane.f32.xlu0 %v1336
    %v1338 = vpop.xlane.xlu0 %1337
    %v1339 = vsub.f32 %v1335, %v1338
    %v1340 = vmul.f32 %v1339, 1.442695
    %v1341 = vpow.pop %v1340
    %v1342 = vsel %vm920, %v1341, 0.0
    %1343 = vadd.xlane.f32.xlu0 %v1342
    %v1344 = vpop.xlane.xlu0 %1343
    %v1345 = vrcp.pop %v1344
    %v1346 = vmul.f32 %v1344, %v1345
    %v1347 = vsub.f32 1.0, %v1346
    %v1348 = vmul.f32 %v1345, %v1347
    %v1349 = vadd.f32 %v1345, %v1348
    %vm1350 = vweird.f32 %v1344
    %vm1351 = vweird.f32 %v1345
    %vm1352 = vmor %vm1350, %vm1351
    %v1353 = vsel %vm1352, %v1345, %v1349
    %v1354 = vand.u32 2147483647, %v1344
    %vm1355 = vcmp.eq.f32.partialorder %v1354, 8.507059e+37
    %v1356 = vand.u32 %v1344, 2147483648
    %v1357 = vor.u32 1.1754944e-38, %v1356
    %v1358 = vsel %vm1355, %v1357, %v1353
    %v1359 = vmul.f32 %v1341, %v1358
    %v1361 = vsel %vm920, %v1359, 0
    %1363 = vmatpush.msra.mxu0 0.0
    %1364 = vmatpush.msra.mxu0 0.0
    %1365 = vmatpush.msra.mxu0 0.0
    %1366 = vmatpush.msra.mxu0 0.0
    %1367 = vmatpush.msra.mxu0 0.0
    %1368 = vmatpush.msra.mxu0 0.0
    %1369 = vmatpush.msra.mxu0 0.0
    %1370 = vmatpush.msra.mxu0 0.0
    %1371 = vmatpush.msra.mxu0 0.0
    %1372 = vmatpush.msra.mxu0 0.0
    %1373 = vmatpush.msra.mxu0 0.0
    %1374 = vmatpush.msra.mxu0 0.0
    %1375 = vmatpush.msra.mxu0 0.0
    %1376 = vmatpush.msra.mxu0 0.0
    %1377 = vmatpush.msra.mxu0 0.0
    %1378 = vmatpush.msra.mxu0 %v872
    %1379 = vmatmul.f32.gmra.mxu0 %v1361
    %v1380 = vpop.f32.mrf.mxu0
    %v1381 = vadd.f32 0.0, %v1380
    %1382 = vdwg.mxu0
    %1383 = vmatpush.xpose.msra.mxu0 0.0
    %1384 = vmatpush.xpose.msra.mxu0 0.0
    %1385 = vmatpush.xpose.msra.mxu0 0.0
    %1386 = vmatpush.xpose.msra.mxu0 0.0
    %1387 = vmatpush.xpose.msra.mxu0 0.0
    %1388 = vmatpush.xpose.msra.mxu0 0.0
    %1389 = vmatpush.xpose.msra.mxu0 0.0
    %1390 = vmatpush.xpose.msra.mxu0 0.0
    %1391 = vmatpush.xpose.msra.mxu0 0.0
    %1392 = vmatpush.xpose.msra.mxu0 0.0
    %1393 = vmatpush.xpose.msra.mxu0 0.0
    %1394 = vmatpush.xpose.msra.mxu0 0.0
    %1395 = vmatpush.xpose.msra.mxu0 0.0
    %1396 = vmatpush.xpose.msra.mxu0 0.0
    %1397 = vmatpush.xpose.msra.mxu0 0.0
    %1398 = vmatpush.xpose.msra.mxu0 %v803
    %1399 = vmatmul.f32.gmra.mxu0 %v711
    %v1400 = vpop.f32.mrf.mxu0
    %v1401 = vadd.f32 0.0, %v1400
    %1402 = vdwg.mxu0
    %v1403 = vmul.f32 %v1401, 0.35355338
    %v1404 = vadd.f32 %v1403, %v1196
    %v1405 = vsel %vm920, %v1404, -inf
    %1406 = vmax.xlane.f32.xlu0 %v1405
    %v1407 = vpop.xlane.xlu0 %1406
    %v1408 = vsub.f32 %v1404, %v1407
    %v1409 = vmul.f32 %v1408, 1.442695
    %v1410 = vpow.pop %v1409
    %v1411 = vsel %vm920, %v1410, 0.0
    %1412 = vadd.xlane.f32.xlu0 %v1411
    %v1413 = vpop.xlane.xlu0 %1412
    %v1414 = vrcp.pop %v1413
    %v1415 = vmul.f32 %v1413, %v1414
    %v1416 = vsub.f32 1.0, %v1415
    %v1417 = vmul.f32 %v1414, %v1416
    %v1418 = vadd.f32 %v1414, %v1417
    %vm1419 = vweird.f32 %v1413
    %vm1420 = vweird.f32 %v1414
    %vm1421 = vmor %vm1419, %vm1420
    %v1422 = vsel %vm1421, %v1414, %v1418
    %v1423 = vand.u32 2147483647, %v1413
    %vm1424 = vcmp.eq.f32.partialorder %v1423, 8.507059e+37
    %v1425 = vand.u32 %v1413, 2147483648
    %v1426 = vor.u32 1.1754944e-38, %v1425
    %v1427 = vsel %vm1424, %v1426, %v1422
    %v1428 = vmul.f32 %v1410, %v1427
    %v1430 = vsel %vm920, %v1428, 0
    %1432 = vmatpush.msra.mxu0 0.0
    %1433 = vmatpush.msra.mxu0 0.0
    %1434 = vmatpush.msra.mxu0 0.0
    %1435 = vmatpush.msra.mxu0 0.0
    %1436 = vmatpush.msra.mxu0 0.0
    %1437 = vmatpush.msra.mxu0 0.0
    %1438 = vmatpush.msra.mxu0 0.0
    %1439 = vmatpush.msra.mxu0 0.0
    %1440 = vmatpush.msra.mxu0 0.0
    %1441 = vmatpush.msra.mxu0 0.0
    %1442 = vmatpush.msra.mxu0 0.0
    %1443 = vmatpush.msra.mxu0 0.0
    %1444 = vmatpush.msra.mxu0 0.0
    %1445 = vmatpush.msra.mxu0 0.0
    %1446 = vmatpush.msra.mxu0 0.0
    %1447 = vmatpush.msra.mxu0 %v895
    %1448 = vmatmul.f32.gmra.mxu0 %v1430
    %v1449 = vpop.f32.mrf.mxu0
    %v1450 = vadd.f32 0.0, %v1449
    %1451 = vdwg.mxu0
    %v1452 = vld [vmem:[#allocation13] sm:$0xff]
    %v1453 = vld [vmem:[#allocation13 + $0x8] sm:$0xff]
    %v1454 = vld [vmem:[#allocation13 + $0x10] sm:$0xff]
    %v1455 = vld [vmem:[#allocation13 + $0x18] sm:$0xff]
    %v1456 = vld [vmem:[#allocation13 + $0x20] sm:$0xff]
    %v1457 = vld [vmem:[#allocation13 + $0x28] sm:$0xff]
    %v1458 = vld [vmem:[#allocation13 + $0x30] sm:$0xff]
    %v1459 = vld [vmem:[#allocation13 + $0x38] sm:$0xff]
    %v1460 = vld [vmem:[#allocation13 + $0x40] sm:$0xff]
    %v1461 = vld [vmem:[#allocation13 + $0x48] sm:$0xff]
    %v1462 = vld [vmem:[#allocation13 + $0x50] sm:$0xff]
    %v1463 = vld [vmem:[#allocation13 + $0x58] sm:$0xff]
    %v1464 = vld [vmem:[#allocation13 + $0x60] sm:$0xff]
    %v1465 = vld [vmem:[#allocation13 + $0x68] sm:$0xff]
    %v1466 = vld [vmem:[#allocation13 + $0x70] sm:$0xff]
    %v1467 = vld [vmem:[#allocation13 + $0x78] sm:$0xff]
    %v1468 = vld [vmem:[#allocation13 + $0x80] sm:$0xff]
    %v1469 = vld [vmem:[#allocation13 + $0x88] sm:$0xff]
    %v1470 = vld [vmem:[#allocation13 + $0x90] sm:$0xff]
    %v1471 = vld [vmem:[#allocation13 + $0x98] sm:$0xff]
    %v1472 = vld [vmem:[#allocation13 + $0xa0] sm:$0xff]
    %v1473 = vld [vmem:[#allocation13 + $0xa8] sm:$0xff]
    %v1474 = vld [vmem:[#allocation13 + $0xb0] sm:$0xff]
    %v1475 = vld [vmem:[#allocation13 + $0xb8] sm:$0xff]
    %v1476 = vld [vmem:[#allocation13 + $0xc0] sm:$0xff]
    %v1477 = vld [vmem:[#allocation13 + $0xc8] sm:$0xff]
    %v1478 = vld [vmem:[#allocation13 + $0xd0] sm:$0xff]
    %v1479 = vld [vmem:[#allocation13 + $0xd8] sm:$0xff]
    %v1480 = vld [vmem:[#allocation13 + $0xe0] sm:$0xff]
    %v1481 = vld [vmem:[#allocation13 + $0xe8] sm:$0xff]
    %v1482 = vld [vmem:[#allocation13 + $0xf0] sm:$0xff]
    %v1483 = vld [vmem:[#allocation13 + $0xf8] sm:$0xff]
    %v1484 = vld [vmem:[#allocation13 + $0x100] sm:$0xff]
    %v1485 = vld [vmem:[#allocation13 + $0x108] sm:$0xff]
    %v1486 = vld [vmem:[#allocation13 + $0x110] sm:$0xff]
    %v1487 = vld [vmem:[#allocation13 + $0x118] sm:$0xff]
    %v1488 = vld [vmem:[#allocation13 + $0x120] sm:$0xff]
    %v1489 = vld [vmem:[#allocation13 + $0x128] sm:$0xff]
    %v1490 = vld [vmem:[#allocation13 + $0x130] sm:$0xff]
    %v1491 = vld [vmem:[#allocation13 + $0x138] sm:$0xff]
    %v1492 = vld [vmem:[#allocation13 + $0x140] sm:$0xff]
    %v1493 = vld [vmem:[#allocation13 + $0x148] sm:$0xff]
    %v1494 = vld [vmem:[#allocation13 + $0x150] sm:$0xff]
    %v1495 = vld [vmem:[#allocation13 + $0x158] sm:$0xff]
    %v1496 = vld [vmem:[#allocation13 + $0x160] sm:$0xff]
    %v1497 = vld [vmem:[#allocation13 + $0x168] sm:$0xff]
    %v1498 = vld [vmem:[#allocation13 + $0x170] sm:$0xff]
    %v1499 = vld [vmem:[#allocation13 + $0x178] sm:$0xff]
    %v1500 = vld [vmem:[#allocation13 + $0x180] sm:$0xff]
    %v1501 = vld [vmem:[#allocation13 + $0x188] sm:$0xff]
    %v1502 = vld [vmem:[#allocation13 + $0x190] sm:$0xff]
    %v1503 = vld [vmem:[#allocation13 + $0x198] sm:$0xff]
    %v1504 = vld [vmem:[#allocation13 + $0x1a0] sm:$0xff]
    %v1505 = vld [vmem:[#allocation13 + $0x1a8] sm:$0xff]
    %v1506 = vld [vmem:[#allocation13 + $0x1b0] sm:$0xff]
    %v1507 = vld [vmem:[#allocation13 + $0x1b8] sm:$0xff]
    %v1508 = vld [vmem:[#allocation13 + $0x1c0] sm:$0xff]
    %v1509 = vld [vmem:[#allocation13 + $0x1c8] sm:$0xff]
    %v1510 = vld [vmem:[#allocation13 + $0x1d0] sm:$0xff]
    %v1511 = vld [vmem:[#allocation13 + $0x1d8] sm:$0xff]
    %v1512 = vld [vmem:[#allocation13 + $0x1e0] sm:$0xff]
    %v1513 = vld [vmem:[#allocation13 + $0x1e8] sm:$0xff]
    %v1514 = vld [vmem:[#allocation13 + $0x1f0] sm:$0xff]
    %v1515 = vld [vmem:[#allocation13 + $0x1f8] sm:$0xff]
    %v1516 = vld [vmem:[#allocation14] sm:$0x1]
    %v1518 = vperm.slane %v1516, 0
    %1520 = vmatpush.msra.mxu0 %v1467
    %1521 = vmatpush.msra.mxu0 %v1466
    %1522 = vmatpush.msra.mxu0 %v1465
    %1523 = vmatpush.msra.mxu0 %v1464
    %1524 = vmatpush.msra.mxu0 %v1463
    %1525 = vmatpush.msra.mxu0 %v1462
    %1526 = vmatpush.msra.mxu0 %v1461
    %1527 = vmatpush.msra.mxu0 %v1460
    %1528 = vmatpush.msra.mxu0 %v1459
    %1529 = vmatpush.msra.mxu0 %v1458
    %1530 = vmatpush.msra.mxu0 %v1457
    %1531 = vmatpush.msra.mxu0 %v1456
    %1532 = vmatpush.msra.mxu0 %v1455
    %1533 = vmatpush.msra.mxu0 %v1454
    %1534 = vmatpush.msra.mxu0 %v1453
    %1535 = vmatpush.msra.mxu0 %v1452
    %1536 = vmatmul.f32.gmra.mxu0 %v966
    %v1537 = vpop.f32.mrf.mxu0
    %v1538 = vadd.f32 %v1518, %v1537
    %1539 = vmatmul.f32.gmra.mxu0 %v1243
    %v1540 = vpop.f32.mrf.mxu0
    %v1541 = vadd.f32 %v1518, %v1540
    %1542 = vdwg.mxu0
    %1543 = vmatpush.msra.mxu0 %v1483
    %1544 = vmatpush.msra.mxu0 %v1482
    %1545 = vmatpush.msra.mxu0 %v1481
    %1546 = vmatpush.msra.mxu0 %v1480
    %1547 = vmatpush.msra.mxu0 %v1479
    %1548 = vmatpush.msra.mxu0 %v1478
    %1549 = vmatpush.msra.mxu0 %v1477
    %1550 = vmatpush.msra.mxu0 %v1476
    %1551 = vmatpush.msra.mxu0 %v1475
    %1552 = vmatpush.msra.mxu0 %v1474
    %1553 = vmatpush.msra.mxu0 %v1473
    %1554 = vmatpush.msra.mxu0 %v1472
    %1555 = vmatpush.msra.mxu0 %v1471
    %1556 = vmatpush.msra.mxu0 %v1470
    %1557 = vmatpush.msra.mxu0 %v1469
    %1558 = vmatpush.msra.mxu0 %v1468
    %1559 = vmatmul.f32.gmra.mxu0 %v1035
    %v1560 = vpop.f32.mrf.mxu0
    %v1561 = vadd.f32 %v1538, %v1560
    %1562 = vmatmul.f32.gmra.mxu0 %v1312
    %v1563 = vpop.f32.mrf.mxu0
    %v1564 = vadd.f32 %v1541, %v1563
    %1565 = vdwg.mxu0
    %1566 = vmatpush.msra.mxu0 %v1499
    %1567 = vmatpush.msra.mxu0 %v1498
    %1568 = vmatpush.msra.mxu0 %v1497
    %1569 = vmatpush.msra.mxu0 %v1496
    %1570 = vmatpush.msra.mxu0 %v1495
    %1571 = vmatpush.msra.mxu0 %v1494
    %1572 = vmatpush.msra.mxu0 %v1493
    %1573 = vmatpush.msra.mxu0 %v1492
    %1574 = vmatpush.msra.mxu0 %v1491
    %1575 = vmatpush.msra.mxu0 %v1490
    %1576 = vmatpush.msra.mxu0 %v1489
    %1577 = vmatpush.msra.mxu0 %v1488
    %1578 = vmatpush.msra.mxu0 %v1487
    %1579 = vmatpush.msra.mxu0 %v1486
    %1580 = vmatpush.msra.mxu0 %v1485
    %1581 = vmatpush.msra.mxu0 %v1484
    %1582 = vmatmul.f32.gmra.mxu0 %v1104
    %v1583 = vpop.f32.mrf.mxu0
    %v1584 = vadd.f32 %v1561, %v1583
    %1585 = vmatmul.f32.gmra.mxu0 %v1381
    %v1586 = vpop.f32.mrf.mxu0
    %v1587 = vadd.f32 %v1564, %v1586
    %1588 = vdwg.mxu0
    %1589 = vmatpush.msra.mxu0 %v1515
    %1590 = vmatpush.msra.mxu0 %v1514
    %1591 = vmatpush.msra.mxu0 %v1513
    %1592 = vmatpush.msra.mxu0 %v1512
    %1593 = vmatpush.msra.mxu0 %v1511
    %1594 = vmatpush.msra.mxu0 %v1510
    %1595 = vmatpush.msra.mxu0 %v1509
    %1596 = vmatpush.msra.mxu0 %v1508
    %1597 = vmatpush.msra.mxu0 %v1507
    %1598 = vmatpush.msra.mxu0 %v1506
    %1599 = vmatpush.msra.mxu0 %v1505
    %1600 = vmatpush.msra.mxu0 %v1504
    %1601 = vmatpush.msra.mxu0 %v1503
    %1602 = vmatpush.msra.mxu0 %v1502
    %1603 = vmatpush.msra.mxu0 %v1501
    %1604 = vmatpush.msra.mxu0 %v1500
    %1605 = vmatmul.f32.gmra.mxu0 %v1173
    %v1606 = vpop.f32.mrf.mxu0
    %v1607 = vadd.f32 %v1584, %v1606
    %1608 = vmatmul.f32.gmra.mxu0 %v1450
    %v1609 = vpop.f32.mrf.mxu0
    %v1610 = vadd.f32 %v1587, %v1609
    %1611 = vdwg.mxu0
    %v1612 = vadd.f32 %v396, %v1607
    %v1613 = vadd.f32 %v397, %v1610
    %v1614 = vld [vmem:[#allocation16] sm:$0x1]
    %v1615 = vld [vmem:[#allocation17] sm:$0x1]
    %v1616 = vmul.f32 %v1612, %v339
    %v1617 = vmul.f32 %v1613, %v339
    %1618 = vadd.xlane.f32.xlu0 %v1616
    %v1619 = vpop.xlane.xlu0 %1618
    %1620 = vadd.xlane.f32.xlu0 %v1617
    %v1621 = vpop.xlane.xlu0 %1620
    %v1622 = vmul.f32 %v1619, 0.03125
    %v1623 = vmul.f32 %v1621, 0.03125
    %v1624 = vsub.f32 %v1612, %v1622
    %v1625 = vsub.f32 %v1613, %v1623
    %v1626 = vmul.f32 %v1624, %v339
    %v1627 = vmul.f32 %v1625, %v339
    %v1628 = vmul.f32 %v1626, %v1626
    %v1629 = vmul.f32 %v1627, %v1627
    %1630 = vadd.xlane.f32.xlu0 %v1628
    %v1631 = vpop.xlane.xlu0 %1630
    %1632 = vadd.xlane.f32.xlu0 %v1629
    %v1633 = vpop.xlane.xlu0 %1632
    %v1634 = vmul.f32 %v1631, 0.03125
    %v1635 = vmul.f32 %v1633, 0.03125
    %v1636 = vadd.f32 %v1634, 1e-12
    %v1637 = vadd.f32 %v1635, 1e-12
    %v1638 = vrsqrt.pop %v1636
    %v1639 = vmul.f32 %v1638, %v1636
    %v1640 = vmul.f32 %v1639, %v1638
    %v1641 = vmul.f32 0.5, %v1640
    %v1642 = vsub.f32 1.5, %v1641
    %v1643 = vmul.f32 %v1638, %v1642
    %vm1644 = vweird.f32 %v1636
    %vm1645 = vweird.f32 %v1638
    %vm1646 = vmor %vm1644, %vm1645
    %v1647 = vsel %vm1646, %v1638, %v1643
    %v1648 = vrsqrt.pop %v1637
    %v1649 = vmul.f32 %v1648, %v1637
    %v1650 = vmul.f32 %v1649, %v1648
    %v1651 = vmul.f32 0.5, %v1650
    %v1652 = vsub.f32 1.5, %v1651
    %v1653 = vmul.f32 %v1648, %v1652
    %vm1654 = vweird.f32 %v1637
    %vm1655 = vweird.f32 %v1648
    %vm1656 = vmor %vm1654, %vm1655
    %v1657 = vsel %vm1656, %v1648, %v1653
    %v1658 = vmul.f32 %v1626, %v1647
    %v1659 = vmul.f32 %v1627, %v1657
    %v1661 = vperm.slane %v1614, 0
    %v1663 = vmul.f32 %v1658, %v1661
    %v1664 = vmul.f32 %v1659, %v1661
    %v1666 = vperm.slane %v1615, 0
    %v1668 = vadd.f32 %v1663, %v1666
    %v1669 = vadd.f32 %v1664, %v1666
    %v1670 = vld [vmem:[#allocation19] sm:$0xff]
    %v1671 = vld [vmem:[#allocation19 + $0x8] sm:$0xff]
    %v1672 = vld [vmem:[#allocation19 + $0x10] sm:$0xff]
    %v1673 = vld [vmem:[#allocation19 + $0x18] sm:$0xff]
    %v1674 = vld [vmem:[#allocation19 + $0x20] sm:$0xff]
    %v1675 = vld [vmem:[#allocation19 + $0x28] sm:$0xff]
    %v1676 = vld [vmem:[#allocation19 + $0x30] sm:$0xff]
    %v1677 = vld [vmem:[#allocation19 + $0x38] sm:$0xff]
    %v1678 = vld [vmem:[#allocation19 + $0x40] sm:$0xff]
    %v1679 = vld [vmem:[#allocation19 + $0x48] sm:$0xff]
    %v1680 = vld [vmem:[#allocation19 + $0x50] sm:$0xff]
    %v1681 = vld [vmem:[#allocation19 + $0x58] sm:$0xff]
    %v1682 = vld [vmem:[#allocation19 + $0x60] sm:$0xff]
    %v1683 = vld [vmem:[#allocation19 + $0x68] sm:$0xff]
    %v1684 = vld [vmem:[#allocation19 + $0x70] sm:$0xff]
    %v1685 = vld [vmem:[#allocation19 + $0x78] sm:$0xff]
    %v1686 = vld [vmem:[#allocation20] sm:$0x1]
    %v1688 = vperm.slane %v1686, 0
    %1690 = vmatpush.msra.mxu0 %v1685
    %1691 = vmatpush.msra.mxu0 %v1684
    %1692 = vmatpush.msra.mxu0 %v1683
    %1693 = vmatpush.msra.mxu0 %v1682
    %1694 = vmatpush.msra.mxu0 %v1681
    %1695 = vmatpush.msra.mxu0 %v1680
    %1696 = vmatpush.msra.mxu0 %v1679
    %1697 = vmatpush.msra.mxu0 %v1678
    %1698 = vmatpush.msra.mxu0 %v1677
    %1699 = vmatpush.msra.mxu0 %v1676
    %1700 = vmatpush.msra.mxu0 %v1675
    %1701 = vmatpush.msra.mxu0 %v1674
    %1702 = vmatpush.msra.mxu0 %v1673
    %1703 = vmatpush.msra.mxu0 %v1672
    %1704 = vmatpush.msra.mxu0 %v1671
    %1705 = vmatpush.msra.mxu0 %v1670
    %1706 = vmatmul.f32.gmra.mxu0 %v1668
    %v1707 = vpop.f32.mrf.mxu0
    %v1708 = vadd.f32 %v1688, %v1707
    %1709 = vmatmul.f32.gmra.mxu0 %v1669
    %v1710 = vpop.f32.mrf.mxu0
    %v1711 = vadd.f32 %v1688, %v1710
    %1712 = vdwg.mxu0
    %v1713 = vmul.f32 %v1708, %v1708
    %v1714 = vmul.f32 %v1711, %v1711
    %v1715 = vmul.f32 %v1708, %v1713
    %v1716 = vmul.f32 %v1711, %v1714
    %v1717 = vmul.f32 %v1715, 0.044715
    %v1718 = vmul.f32 %v1716, 0.044715
    %v1719 = vadd.f32 %v1708, %v1717
    %v1720 = vadd.f32 %v1711, %v1718
    %v1721 = vmul.f32 %v1719, 0.7978846
    %v1722 = vmul.f32 %v1720, 0.7978846
    %v1723 = vtanh.pop %v1721
    %v1724 = vtanh.pop %v1722
    %v1725 = vadd.f32 %v1723, 1.0
    %v1726 = vadd.f32 %v1724, 1.0
    %v1727 = vmul.f32 %v1725, 0.5
    %v1728 = vmul.f32 %v1726, 0.5
    %v1729 = vmul.f32 %v1708, %v1727
    %v1730 = vmul.f32 %v1711, %v1728
    %v1731 = vld [vmem:[#allocation22] sm:$0xff]
    %v1732 = vld [vmem:[#allocation22 + $0x8] sm:$0xff]
    %v1733 = vld [vmem:[#allocation22 + $0x10] sm:$0xff]
    %v1734 = vld [vmem:[#allocation22 + $0x18] sm:$0xff]
    %v1735 = vld [vmem:[#allocation22 + $0x20] sm:$0xff]
    %v1736 = vld [vmem:[#allocation22 + $0x28] sm:$0xff]
    %v1737 = vld [vmem:[#allocation22 + $0x30] sm:$0xff]
    %v1738 = vld [vmem:[#allocation22 + $0x38] sm:$0xff]
    %v1739 = vld [vmem:[#allocation22 + $0x40] sm:$0xff]
    %v1740 = vld [vmem:[#allocation22 + $0x48] sm:$0xff]
    %v1741 = vld [vmem:[#allocation22 + $0x50] sm:$0xff]
    %v1742 = vld [vmem:[#allocation22 + $0x58] sm:$0xff]
    %v1743 = vld [vmem:[#allocation22 + $0x60] sm:$0xff]
    %v1744 = vld [vmem:[#allocation22 + $0x68] sm:$0xff]
    %v1745 = vld [vmem:[#allocation22 + $0x70] sm:$0xff]
    %v1746 = vld [vmem:[#allocation22 + $0x78] sm:$0xff]
    %v1747 = vld [vmem:[#allocation23] sm:$0x1]
    %v1749 = vperm.slane %v1747, 0
    %1751 = vmatpush.msra.mxu0 %v1746
    %1752 = vmatpush.msra.mxu0 %v1745
    %1753 = vmatpush.msra.mxu0 %v1744
    %1754 = vmatpush.msra.mxu0 %v1743
    %1755 = vmatpush.msra.mxu0 %v1742
    %1756 = vmatpush.msra.mxu0 %v1741
    %1757 = vmatpush.msra.mxu0 %v1740
    %1758 = vmatpush.msra.mxu0 %v1739
    %1759 = vmatpush.msra.mxu0 %v1738
    %1760 = vmatpush.msra.mxu0 %v1737
    %1761 = vmatpush.msra.mxu0 %v1736
    %1762 = vmatpush.msra.mxu0 %v1735
    %1763 = vmatpush.msra.mxu0 %v1734
    %1764 = vmatpush.msra.mxu0 %v1733
    %1765 = vmatpush.msra.mxu0 %v1732
    %1766 = vmatpush.msra.mxu0 %v1731
    %1767 = vmatmul.f32.gmra.mxu0 %v1729
    %v1768 = vpop.f32.mrf.mxu0
    %v1769 = vadd.f32 %v1749, %v1768
    %1770 = vmatmul.f32.gmra.mxu0 %v1730
    %v1771 = vpop.f32.mrf.mxu0
    %v1772 = vadd.f32 %v1749, %v1771
    %1773 = vdwg.mxu0
    %v1774 = vadd.f32 %v1668, %v1769
    %v1775 = vadd.f32 %v1669, %v1772
    %v1776 = vld [vmem:[#allocation25] sm:$0x1]
    %v1777 = vld [vmem:[#allocation26] sm:$0x1]
    %v1778 = vmul.f32 %v1774, %v339
    %v1779 = vmul.f32 %v1775, %v339
    %1780 = vadd.xlane.f32.xlu0 %v1778
    %v1781 = vpop.xlane.xlu0 %1780
    %1782 = vadd.xlane.f32.xlu0 %v1779
    %v1783 = vpop.xlane.xlu0 %1782
    %v1784 = vmul.f32 %v1781, 0.03125
    %v1785 = vmul.f32 %v1783, 0.03125
    %v1786 = vsub.f32 %v1774, %v1784
    %v1787 = vsub.f32 %v1775, %v1785
    %v1788 = vmul.f32 %v1786, %v339
    %v1789 = vmul.f32 %v1787, %v339
    %v1790 = vmul.f32 %v1788, %v1788
    %v1791 = vmul.f32 %v1789, %v1789
    %1792 = vadd.xlane.f32.xlu0 %v1790
    %v1793 = vpop.xlane.xlu0 %1792
    %1794 = vadd.xlane.f32.xlu0 %v1791
    %v1795 = vpop.xlane.xlu0 %1794
    %v1796 = vmul.f32 %v1793, 0.03125
    %v1797 = vmul.f32 %v1795, 0.03125
    %v1798 = vadd.f32 %v1796, 1e-12
    %v1799 = vadd.f32 %v1797, 1e-12
    %v1800 = vrsqrt.pop %v1798
    %v1801 = vmul.f32 %v1800, %v1798
    %v1802 = vmul.f32 %v1801, %v1800
    %v1803 = vmul.f32 0.5, %v1802
    %v1804 = vsub.f32 1.5, %v1803
    %v1805 = vmul.f32 %v1800, %v1804
    %vm1806 = vweird.f32 %v1798
    %vm1807 = vweird.f32 %v1800
    %vm1808 = vmor %vm1806, %vm1807
    %v1809 = vsel %vm1808, %v1800, %v1805
    %v1810 = vrsqrt.pop %v1799
    %v1811 = vmul.f32 %v1810, %v1799
    %v1812 = vmul.f32 %v1811, %v1810
    %v1813 = vmul.f32 0.5, %v1812
    %v1814 = vsub.f32 1.5, %v1813
    %v1815 = vmul.f32 %v1810, %v1814
    %vm1816 = vweird.f32 %v1799
    %vm1817 = vweird.f32 %v1810
    %vm1818 = vmor %vm1816, %vm1817
    %v1819 = vsel %vm1818, %v1810, %v1815
    %v1820 = vmul.f32 %v1788, %v1809
    %v1821 = vmul.f32 %v1789, %v1819
    %v1823 = vperm.slane %v1776, 0
    %v1825 = vmul.f32 %v1820, %v1823
    %v1826 = vmul.f32 %v1821, %v1823
    %v1828 = vperm.slane %v1777, 0
    %v1830 = vadd.f32 %v1825, %v1828
    %v1831 = vadd.f32 %v1826, %v1828
    %s1832 = scalar_lea.vmem [#allocation10], 1536
    %v1833 = vld [vmem:[%s1832] sm:$0xff]
    %v1834 = vld [vmem:[%s1832 + $0x8] sm:$0xff]
    %v1835 = vld [vmem:[%s1832 + $0x10] sm:$0xff]
    %v1836 = vld [vmem:[%s1832 + $0x18] sm:$0xff]
    %v1837 = vld [vmem:[%s1832 + $0x20] sm:$0xff]
    %v1838 = vld [vmem:[%s1832 + $0x28] sm:$0xff]
    %v1839 = vld [vmem:[%s1832 + $0x30] sm:$0xff]
    %v1840 = vld [vmem:[%s1832 + $0x38] sm:$0xff]
    %v1841 = vld [vmem:[%s1832 + $0x40] sm:$0xff]
    %v1842 = vld [vmem:[%s1832 + $0x48] sm:$0xff]
    %v1843 = vld [vmem:[%s1832 + $0x50] sm:$0xff]
    %v1844 = vld [vmem:[%s1832 + $0x58] sm:$0xff]
    %v1845 = vld [vmem:[%s1832 + $0x60] sm:$0xff]
    %v1846 = vld [vmem:[%s1832 + $0x68] sm:$0xff]
    %v1847 = vld [vmem:[%s1832 + $0x70] sm:$0xff]
    %v1848 = vld [vmem:[%s1832 + $0x78] sm:$0xff]
    %v1849 = vld [vmem:[%s1832 + $0x80] sm:$0xff]
    %v1850 = vld [vmem:[%s1832 + $0x88] sm:$0xff]
    %v1851 = vld [vmem:[%s1832 + $0x90] sm:$0xff]
    %v1852 = vld [vmem:[%s1832 + $0x98] sm:$0xff]
    %v1853 = vld [vmem:[%s1832 + $0xa0] sm:$0xff]
    %v1854 = vld [vmem:[%s1832 + $0xa8] sm:$0xff]
    %v1855 = vld [vmem:[%s1832 + $0xb0] sm:$0xff]
    %v1856 = vld [vmem:[%s1832 + $0xb8] sm:$0xff]
    %v1857 = vld [vmem:[%s1832 + $0xc0] sm:$0xff]
    %v1858 = vld [vmem:[%s1832 + $0xc8] sm:$0xff]
    %v1859 = vld [vmem:[%s1832 + $0xd0] sm:$0xff]
    %v1860 = vld [vmem:[%s1832 + $0xd8] sm:$0xff]
    %v1861 = vld [vmem:[%s1832 + $0xe0] sm:$0xff]
    %v1862 = vld [vmem:[%s1832 + $0xe8] sm:$0xff]
    %v1863 = vld [vmem:[%s1832 + $0xf0] sm:$0xff]
    %v1864 = vld [vmem:[%s1832 + $0xf8] sm:$0xff]
    %v1865 = vld [vmem:[%s1832 + $0x100] sm:$0xff]
    %v1866 = vld [vmem:[%s1832 + $0x108] sm:$0xff]
    %v1867 = vld [vmem:[%s1832 + $0x110] sm:$0xff]
    %v1868 = vld [vmem:[%s1832 + $0x118] sm:$0xff]
    %v1869 = vld [vmem:[%s1832 + $0x120] sm:$0xff]
    %v1870 = vld [vmem:[%s1832 + $0x128] sm:$0xff]
    %v1871 = vld [vmem:[%s1832 + $0x130] sm:$0xff]
    %v1872 = vld [vmem:[%s1832 + $0x138] sm:$0xff]
    %v1873 = vld [vmem:[%s1832 + $0x140] sm:$0xff]
    %v1874 = vld [vmem:[%s1832 + $0x148] sm:$0xff]
    %v1875 = vld [vmem:[%s1832 + $0x150] sm:$0xff]
    %v1876 = vld [vmem:[%s1832 + $0x158] sm:$0xff]
    %v1877 = vld [vmem:[%s1832 + $0x160] sm:$0xff]
    %v1878 = vld [vmem:[%s1832 + $0x168] sm:$0xff]
    %v1879 = vld [vmem:[%s1832 + $0x170] sm:$0xff]
    %v1880 = vld [vmem:[%s1832 + $0x178] sm:$0xff]
    %v1881 = vld [vmem:[%s1832 + $0x180] sm:$0xff]
    %v1882 = vld [vmem:[%s1832 + $0x188] sm:$0xff]
    %v1883 = vld [vmem:[%s1832 + $0x190] sm:$0xff]
    %v1884 = vld [vmem:[%s1832 + $0x198] sm:$0xff]
    %v1885 = vld [vmem:[%s1832 + $0x1a0] sm:$0xff]
    %v1886 = vld [vmem:[%s1832 + $0x1a8] sm:$0xff]
    %v1887 = vld [vmem:[%s1832 + $0x1b0] sm:$0xff]
    %v1888 = vld [vmem:[%s1832 + $0x1b8] sm:$0xff]
    %v1889 = vld [vmem:[%s1832 + $0x1c0] sm:$0xff]
    %v1890 = vld [vmem:[%s1832 + $0x1c8] sm:$0xff]
    %v1891 = vld [vmem:[%s1832 + $0x1d0] sm:$0xff]
    %v1892 = vld [vmem:[%s1832 + $0x1d8] sm:$0xff]
    %v1893 = vld [vmem:[%s1832 + $0x1e0] sm:$0xff]
    %v1894 = vld [vmem:[%s1832 + $0x1e8] sm:$0xff]
    %v1895 = vld [vmem:[%s1832 + $0x1f0] sm:$0xff]
    %v1896 = vld [vmem:[%s1832 + $0x1f8] sm:$0xff]
    %v1897 = vld [vmem:[%s1832 + $0x200] sm:$0xff]
    %v1898 = vld [vmem:[%s1832 + $0x208] sm:$0xff]
    %v1899 = vld [vmem:[%s1832 + $0x210] sm:$0xff]
    %v1900 = vld [vmem:[%s1832 + $0x218] sm:$0xff]
    %v1901 = vld [vmem:[%s1832 + $0x220] sm:$0xff]
    %v1902 = vld [vmem:[%s1832 + $0x228] sm:$0xff]
    %v1903 = vld [vmem:[%s1832 + $0x230] sm:$0xff]
    %v1904 = vld [vmem:[%s1832 + $0x238] sm:$0xff]
    %v1905 = vld [vmem:[%s1832 + $0x240] sm:$0xff]
    %v1906 = vld [vmem:[%s1832 + $0x248] sm:$0xff]
    %v1907 = vld [vmem:[%s1832 + $0x250] sm:$0xff]
    %v1908 = vld [vmem:[%s1832 + $0x258] sm:$0xff]
    %v1909 = vld [vmem:[%s1832 + $0x260] sm:$0xff]
    %v1910 = vld [vmem:[%s1832 + $0x268] sm:$0xff]
    %v1911 = vld [vmem:[%s1832 + $0x270] sm:$0xff]
    %v1912 = vld [vmem:[%s1832 + $0x278] sm:$0xff]
    %v1913 = vld [vmem:[%s1832 + $0x280] sm:$0xff]
    %v1914 = vld [vmem:[%s1832 + $0x288] sm:$0xff]
    %v1915 = vld [vmem:[%s1832 + $0x290] sm:$0xff]
    %v1916 = vld [vmem:[%s1832 + $0x298] sm:$0xff]
    %v1917 = vld [vmem:[%s1832 + $0x2a0] sm:$0xff]
    %v1918 = vld [vmem:[%s1832 + $0x2a8] sm:$0xff]
    %v1919 = vld [vmem:[%s1832 + $0x2b0] sm:$0xff]
    %v1920 = vld [vmem:[%s1832 + $0x2b8] sm:$0xff]
    %v1921 = vld [vmem:[%s1832 + $0x2c0] sm:$0xff]
    %v1922 = vld [vmem:[%s1832 + $0x2c8] sm:$0xff]
    %v1923 = vld [vmem:[%s1832 + $0x2d0] sm:$0xff]
    %v1924 = vld [vmem:[%s1832 + $0x2d8] sm:$0xff]
    %v1925 = vld [vmem:[%s1832 + $0x2e0] sm:$0xff]
    %v1926 = vld [vmem:[%s1832 + $0x2e8] sm:$0xff]
    %v1927 = vld [vmem:[%s1832 + $0x2f0] sm:$0xff]
    %v1928 = vld [vmem:[%s1832 + $0x2f8] sm:$0xff]
    %v1929 = vld [vmem:[%s1832 + $0x300] sm:$0xff]
    %v1930 = vld [vmem:[%s1832 + $0x308] sm:$0xff]
    %v1931 = vld [vmem:[%s1832 + $0x310] sm:$0xff]
    %v1932 = vld [vmem:[%s1832 + $0x318] sm:$0xff]
    %v1933 = vld [vmem:[%s1832 + $0x320] sm:$0xff]
    %v1934 = vld [vmem:[%s1832 + $0x328] sm:$0xff]
    %v1935 = vld [vmem:[%s1832 + $0x330] sm:$0xff]
    %v1936 = vld [vmem:[%s1832 + $0x338] sm:$0xff]
    %v1937 = vld [vmem:[%s1832 + $0x340] sm:$0xff]
    %v1938 = vld [vmem:[%s1832 + $0x348] sm:$0xff]
    %v1939 = vld [vmem:[%s1832 + $0x350] sm:$0xff]
    %v1940 = vld [vmem:[%s1832 + $0x358] sm:$0xff]
    %v1941 = vld [vmem:[%s1832 + $0x360] sm:$0xff]
    %v1942 = vld [vmem:[%s1832 + $0x368] sm:$0xff]
    %v1943 = vld [vmem:[%s1832 + $0x370] sm:$0xff]
    %v1944 = vld [vmem:[%s1832 + $0x378] sm:$0xff]
    %v1945 = vld [vmem:[%s1832 + $0x380] sm:$0xff]
    %v1946 = vld [vmem:[%s1832 + $0x388] sm:$0xff]
    %v1947 = vld [vmem:[%s1832 + $0x390] sm:$0xff]
    %v1948 = vld [vmem:[%s1832 + $0x398] sm:$0xff]
    %v1949 = vld [vmem:[%s1832 + $0x3a0] sm:$0xff]
    %v1950 = vld [vmem:[%s1832 + $0x3a8] sm:$0xff]
    %v1951 = vld [vmem:[%s1832 + $0x3b0] sm:$0xff]
    %v1952 = vld [vmem:[%s1832 + $0x3b8] sm:$0xff]
    %v1953 = vld [vmem:[%s1832 + $0x3c0] sm:$0xff]
    %v1954 = vld [vmem:[%s1832 + $0x3c8] sm:$0xff]
    %v1955 = vld [vmem:[%s1832 + $0x3d0] sm:$0xff]
    %v1956 = vld [vmem:[%s1832 + $0x3d8] sm:$0xff]
    %v1957 = vld [vmem:[%s1832 + $0x3e0] sm:$0xff]
    %v1958 = vld [vmem:[%s1832 + $0x3e8] sm:$0xff]
    %v1959 = vld [vmem:[%s1832 + $0x3f0] sm:$0xff]
    %v1960 = vld [vmem:[%s1832 + $0x3f8] sm:$0xff]
    %v1961 = vld [vmem:[%s1832 + $0x400] sm:$0xff]
    %v1962 = vld [vmem:[%s1832 + $0x408] sm:$0xff]
    %v1963 = vld [vmem:[%s1832 + $0x410] sm:$0xff]
    %v1964 = vld [vmem:[%s1832 + $0x418] sm:$0xff]
    %v1965 = vld [vmem:[%s1832 + $0x420] sm:$0xff]
    %v1966 = vld [vmem:[%s1832 + $0x428] sm:$0xff]
    %v1967 = vld [vmem:[%s1832 + $0x430] sm:$0xff]
    %v1968 = vld [vmem:[%s1832 + $0x438] sm:$0xff]
    %v1969 = vld [vmem:[%s1832 + $0x440] sm:$0xff]
    %v1970 = vld [vmem:[%s1832 + $0x448] sm:$0xff]
    %v1971 = vld [vmem:[%s1832 + $0x450] sm:$0xff]
    %v1972 = vld [vmem:[%s1832 + $0x458] sm:$0xff]
    %v1973 = vld [vmem:[%s1832 + $0x460] sm:$0xff]
    %v1974 = vld [vmem:[%s1832 + $0x468] sm:$0xff]
    %v1975 = vld [vmem:[%s1832 + $0x470] sm:$0xff]
    %v1976 = vld [vmem:[%s1832 + $0x478] sm:$0xff]
    %v1977 = vld [vmem:[%s1832 + $0x480] sm:$0xff]
    %v1978 = vld [vmem:[%s1832 + $0x488] sm:$0xff]
    %v1979 = vld [vmem:[%s1832 + $0x490] sm:$0xff]
    %v1980 = vld [vmem:[%s1832 + $0x498] sm:$0xff]
    %v1981 = vld [vmem:[%s1832 + $0x4a0] sm:$0xff]
    %v1982 = vld [vmem:[%s1832 + $0x4a8] sm:$0xff]
    %v1983 = vld [vmem:[%s1832 + $0x4b0] sm:$0xff]
    %v1984 = vld [vmem:[%s1832 + $0x4b8] sm:$0xff]
    %v1985 = vld [vmem:[%s1832 + $0x4c0] sm:$0xff]
    %v1986 = vld [vmem:[%s1832 + $0x4c8] sm:$0xff]
    %v1987 = vld [vmem:[%s1832 + $0x4d0] sm:$0xff]
    %v1988 = vld [vmem:[%s1832 + $0x4d8] sm:$0xff]
    %v1989 = vld [vmem:[%s1832 + $0x4e0] sm:$0xff]
    %v1990 = vld [vmem:[%s1832 + $0x4e8] sm:$0xff]
    %v1991 = vld [vmem:[%s1832 + $0x4f0] sm:$0xff]
    %v1992 = vld [vmem:[%s1832 + $0x4f8] sm:$0xff]
    %v1993 = vld [vmem:[%s1832 + $0x500] sm:$0xff]
    %v1994 = vld [vmem:[%s1832 + $0x508] sm:$0xff]
    %v1995 = vld [vmem:[%s1832 + $0x510] sm:$0xff]
    %v1996 = vld [vmem:[%s1832 + $0x518] sm:$0xff]
    %v1997 = vld [vmem:[%s1832 + $0x520] sm:$0xff]
    %v1998 = vld [vmem:[%s1832 + $0x528] sm:$0xff]
    %v1999 = vld [vmem:[%s1832 + $0x530] sm:$0xff]
    %v2000 = vld [vmem:[%s1832 + $0x538] sm:$0xff]
    %v2001 = vld [vmem:[%s1832 + $0x540] sm:$0xff]
    %v2002 = vld [vmem:[%s1832 + $0x548] sm:$0xff]
    %v2003 = vld [vmem:[%s1832 + $0x550] sm:$0xff]
    %v2004 = vld [vmem:[%s1832 + $0x558] sm:$0xff]
    %v2005 = vld [vmem:[%s1832 + $0x560] sm:$0xff]
    %v2006 = vld [vmem:[%s1832 + $0x568] sm:$0xff]
    %v2007 = vld [vmem:[%s1832 + $0x570] sm:$0xff]
    %v2008 = vld [vmem:[%s1832 + $0x578] sm:$0xff]
    %v2009 = vld [vmem:[%s1832 + $0x580] sm:$0xff]
    %v2010 = vld [vmem:[%s1832 + $0x588] sm:$0xff]
    %v2011 = vld [vmem:[%s1832 + $0x590] sm:$0xff]
    %v2012 = vld [vmem:[%s1832 + $0x598] sm:$0xff]
    %v2013 = vld [vmem:[%s1832 + $0x5a0] sm:$0xff]
    %v2014 = vld [vmem:[%s1832 + $0x5a8] sm:$0xff]
    %v2015 = vld [vmem:[%s1832 + $0x5b0] sm:$0xff]
    %v2016 = vld [vmem:[%s1832 + $0x5b8] sm:$0xff]
    %v2017 = vld [vmem:[%s1832 + $0x5c0] sm:$0xff]
    %v2018 = vld [vmem:[%s1832 + $0x5c8] sm:$0xff]
    %v2019 = vld [vmem:[%s1832 + $0x5d0] sm:$0xff]
    %v2020 = vld [vmem:[%s1832 + $0x5d8] sm:$0xff]
    %v2021 = vld [vmem:[%s1832 + $0x5e0] sm:$0xff]
    %v2022 = vld [vmem:[%s1832 + $0x5e8] sm:$0xff]
    %v2023 = vld [vmem:[%s1832 + $0x5f0] sm:$0xff]
    %v2024 = vld [vmem:[%s1832 + $0x5f8] sm:$0xff]
    %s2025 = scalar_lea.vmem [#allocation11], 12
    %v2026 = vld [vmem:[%s2025] sm:$0xff]
    %v2027 = vld [vmem:[%s2025 + $0x8] sm:$0xf]
    %v2030 = vperm.slane %v2026, 0
    %v2031 = vperm.slane %v2026, 1
    %v2032 = vperm.slane %v2026, 2
    %v2033 = vperm.slane %v2026, 3
    %v2034 = vperm.slane %v2026, 4
    %v2035 = vperm.slane %v2026, 5
    %v2036 = vperm.slane %v2026, 6
    %v2037 = vperm.slane %v2026, 7
    %v2038 = vperm.slane %v2027, 0
    %v2039 = vperm.slane %v2027, 1
    %v2040 = vperm.slane %v2027, 2
    %v2041 = vperm.slane %v2027, 3
    %2054 = vmatpush.msra.mxu0 %v2013
    %2055 = vmatpush.msra.mxu0 %v2001
    %2056 = vmatpush.msra.mxu0 %v1989
    %2057 = vmatpush.msra.mxu0 %v1977
    %2058 = vmatpush.msra.mxu0 %v1965
    %2059 = vmatpush.msra.mxu0 %v1953
    %2060 = vmatpush.msra.mxu0 %v1941
    %2061 = vmatpush.msra.mxu0 %v1929
    %2062 = vmatpush.msra.mxu0 %v1917
    %2063 = vmatpush.msra.mxu0 %v1905
    %2064 = vmatpush.msra.mxu0 %v1893
    %2065 = vmatpush.msra.mxu0 %v1881
    %2066 = vmatpush.msra.mxu0 %v1869
    %2067 = vmatpush.msra.mxu0 %v1857
    %2068 = vmatpush.msra.mxu0 %v1845
    %2069 = vmatpush.msra.mxu0 %v1833
    %2070 = vmatmul.f32.gmra.mxu0 %v1830
    %v2071 = vpop.f32.mrf.mxu0
    %v2072 = vadd.f32 %v2030, %v2071
    %2073 = vmatmul.f32.gmra.mxu0 %v1831
    %v2074 = vpop.f32.mrf.mxu0
    %v2075 = vadd.f32 %v2030, %v2074
    %2076 = vdwg.mxu0
    %2077 = vmatpush.msra.mxu0 %v2014
    %2078 = vmatpush.msra.mxu0 %v2002
    %2079 = vmatpush.msra.mxu0 %v1990
    %2080 = vmatpush.msra.mxu0 %v1978
    %2081 = vmatpush.msra.mxu0 %v1966
    %2082 = vmatpush.msra.mxu0 %v1954
    %2083 = vmatpush.msra.mxu0 %v1942
    %2084 = vmatpush.msra.mxu0 %v1930
    %2085 = vmatpush.msra.mxu0 %v1918
    %2086 = vmatpush.msra.mxu0 %v1906
    %2087 = vmatpush.msra.mxu0 %v1894
    %2088 = vmatpush.msra.mxu0 %v1882
    %2089 = vmatpush.msra.mxu0 %v1870
    %2090 = vmatpush.msra.mxu0 %v1858
    %2091 = vmatpush.msra.mxu0 %v1846
    %2092 = vmatpush.msra.mxu0 %v1834
    %2093 = vmatmul.f32.gmra.mxu0 %v1830
    %v2094 = vpop.f32.mrf.mxu0
    %v2095 = vadd.f32 %v2031, %v2094
    %2096 = vmatmul.f32.gmra.mxu0 %v1831
    %v2097 = vpop.f32.mrf.mxu0
    %v2098 = vadd.f32 %v2031, %v2097
    %2099 = vdwg.mxu0
    %2100 = vmatpush.msra.mxu0 %v2015
    %2101 = vmatpush.msra.mxu0 %v2003
    %2102 = vmatpush.msra.mxu0 %v1991
    %2103 = vmatpush.msra.mxu0 %v1979
    %2104 = vmatpush.msra.mxu0 %v1967
    %2105 = vmatpush.msra.mxu0 %v1955
    %2106 = vmatpush.msra.mxu0 %v1943
    %2107 = vmatpush.msra.mxu0 %v1931
    %2108 = vmatpush.msra.mxu0 %v1919
    %2109 = vmatpush.msra.mxu0 %v1907
    %2110 = vmatpush.msra.mxu0 %v1895
    %2111 = vmatpush.msra.mxu0 %v1883
    %2112 = vmatpush.msra.mxu0 %v1871
    %2113 = vmatpush.msra.mxu0 %v1859
    %2114 = vmatpush.msra.mxu0 %v1847
    %2115 = vmatpush.msra.mxu0 %v1835
    %2116 = vmatmul.f32.gmra.mxu0 %v1830
    %v2117 = vpop.f32.mrf.mxu0
    %v2118 = vadd.f32 %v2032, %v2117
    %2119 = vmatmul.f32.gmra.mxu0 %v1831
    %v2120 = vpop.f32.mrf.mxu0
    %v2121 = vadd.f32 %v2032, %v2120
    %2122 = vdwg.mxu0
    %2123 = vmatpush.msra.mxu0 %v2016
    %2124 = vmatpush.msra.mxu0 %v2004
    %2125 = vmatpush.msra.mxu0 %v1992
    %2126 = vmatpush.msra.mxu0 %v1980
    %2127 = vmatpush.msra.mxu0 %v1968
    %2128 = vmatpush.msra.mxu0 %v1956
    %2129 = vmatpush.msra.mxu0 %v1944
    %2130 = vmatpush.msra.mxu0 %v1932
    %2131 = vmatpush.msra.mxu0 %v1920
    %2132 = vmatpush.msra.mxu0 %v1908
    %2133 = vmatpush.msra.mxu0 %v1896
    %2134 = vmatpush.msra.mxu0 %v1884
    %2135 = vmatpush.msra.mxu0 %v1872
    %2136 = vmatpush.msra.mxu0 %v1860
    %2137 = vmatpush.msra.mxu0 %v1848
    %2138 = vmatpush.msra.mxu0 %v1836
    %2139 = vmatmul.f32.gmra.mxu0 %v1830
    %v2140 = vpop.f32.mrf.mxu0
    %v2141 = vadd.f32 %v2033, %v2140
    %2142 = vmatmul.f32.gmra.mxu0 %v1831
    %v2143 = vpop.f32.mrf.mxu0
    %v2144 = vadd.f32 %v2033, %v2143
    %2145 = vdwg.mxu0
    %2146 = vmatpush.msra.mxu0 %v2017
    %2147 = vmatpush.msra.mxu0 %v2005
    %2148 = vmatpush.msra.mxu0 %v1993
    %2149 = vmatpush.msra.mxu0 %v1981
    %2150 = vmatpush.msra.mxu0 %v1969
    %2151 = vmatpush.msra.mxu0 %v1957
    %2152 = vmatpush.msra.mxu0 %v1945
    %2153 = vmatpush.msra.mxu0 %v1933
    %2154 = vmatpush.msra.mxu0 %v1921
    %2155 = vmatpush.msra.mxu0 %v1909
    %2156 = vmatpush.msra.mxu0 %v1897
    %2157 = vmatpush.msra.mxu0 %v1885
    %2158 = vmatpush.msra.mxu0 %v1873
    %2159 = vmatpush.msra.mxu0 %v1861
    %2160 = vmatpush.msra.mxu0 %v1849
    %2161 = vmatpush.msra.mxu0 %v1837
    %2162 = vmatmul.f32.gmra.mxu0 %v1830
    %v2163 = vpop.f32.mrf.mxu0
    %v2164 = vadd.f32 %v2034, %v2163
    %2165 = vmatmul.f32.gmra.mxu0 %v1831
    %v2166 = vpop.f32.mrf.mxu0
    %v2167 = vadd.f32 %v2034, %v2166
    %2168 = vdwg.mxu0
    %2169 = vmatpush.msra.mxu0 %v2018
    %2170 = vmatpush.msra.mxu0 %v2006
    %2171 = vmatpush.msra.mxu0 %v1994
    %2172 = vmatpush.msra.mxu0 %v1982
    %2173 = vmatpush.msra.mxu0 %v1970
    %2174 = vmatpush.msra.mxu0 %v1958
    %2175 = vmatpush.msra.mxu0 %v1946
    %2176 = vmatpush.msra.mxu0 %v1934
    %2177 = vmatpush.msra.mxu0 %v1922
    %2178 = vmatpush.msra.mxu0 %v1910
    %2179 = vmatpush.msra.mxu0 %v1898
    %2180 = vmatpush.msra.mxu0 %v1886
    %2181 = vmatpush.msra.mxu0 %v1874
    %2182 = vmatpush.msra.mxu0 %v1862
    %2183 = vmatpush.msra.mxu0 %v1850
    %2184 = vmatpush.msra.mxu0 %v1838
    %2185 = vmatmul.f32.gmra.mxu0 %v1830
    %v2186 = vpop.f32.mrf.mxu0
    %v2187 = vadd.f32 %v2035, %v2186
    %2188 = vmatmul.f32.gmra.mxu0 %v1831
    %v2189 = vpop.f32.mrf.mxu0
    %v2190 = vadd.f32 %v2035, %v2189
    %2191 = vdwg.mxu0
    %2192 = vmatpush.msra.mxu0 %v2019
    %2193 = vmatpush.msra.mxu0 %v2007
    %2194 = vmatpush.msra.mxu0 %v1995
    %2195 = vmatpush.msra.mxu0 %v1983
    %2196 = vmatpush.msra.mxu0 %v1971
    %2197 = vmatpush.msra.mxu0 %v1959
    %2198 = vmatpush.msra.mxu0 %v1947
    %2199 = vmatpush.msra.mxu0 %v1935
    %2200 = vmatpush.msra.mxu0 %v1923
    %2201 = vmatpush.msra.mxu0 %v1911
    %2202 = vmatpush.msra.mxu0 %v1899
    %2203 = vmatpush.msra.mxu0 %v1887
    %2204 = vmatpush.msra.mxu0 %v1875
    %2205 = vmatpush.msra.mxu0 %v1863
    %2206 = vmatpush.msra.mxu0 %v1851
    %2207 = vmatpush.msra.mxu0 %v1839
    %2208 = vmatmul.f32.gmra.mxu0 %v1830
    %v2209 = vpop.f32.mrf.mxu0
    %v2210 = vadd.f32 %v2036, %v2209
    %2211 = vmatmul.f32.gmra.mxu0 %v1831
    %v2212 = vpop.f32.mrf.mxu0
    %v2213 = vadd.f32 %v2036, %v2212
    %2214 = vdwg.mxu0
    %2215 = vmatpush.msra.mxu0 %v2020
    %2216 = vmatpush.msra.mxu0 %v2008
    %2217 = vmatpush.msra.mxu0 %v1996
    %2218 = vmatpush.msra.mxu0 %v1984
    %2219 = vmatpush.msra.mxu0 %v1972
    %2220 = vmatpush.msra.mxu0 %v1960
    %2221 = vmatpush.msra.mxu0 %v1948
    %2222 = vmatpush.msra.mxu0 %v1936
    %2223 = vmatpush.msra.mxu0 %v1924
    %2224 = vmatpush.msra.mxu0 %v1912
    %2225 = vmatpush.msra.mxu0 %v1900
    %2226 = vmatpush.msra.mxu0 %v1888
    %2227 = vmatpush.msra.mxu0 %v1876
    %2228 = vmatpush.msra.mxu0 %v1864
    %2229 = vmatpush.msra.mxu0 %v1852
    %2230 = vmatpush.msra.mxu0 %v1840
    %2231 = vmatmul.f32.gmra.mxu0 %v1830
    %v2232 = vpop.f32.mrf.mxu0
    %v2233 = vadd.f32 %v2037, %v2232
    %2234 = vmatmul.f32.gmra.mxu0 %v1831
    %v2235 = vpop.f32.mrf.mxu0
    %v2236 = vadd.f32 %v2037, %v2235
    %2237 = vdwg.mxu0
    %2238 = vmatpush.msra.mxu0 %v2021
    %2239 = vmatpush.msra.mxu0 %v2009
    %2240 = vmatpush.msra.mxu0 %v1997
    %2241 = vmatpush.msra.mxu0 %v1985
    %2242 = vmatpush.msra.mxu0 %v1973
    %2243 = vmatpush.msra.mxu0 %v1961
    %2244 = vmatpush.msra.mxu0 %v1949
    %2245 = vmatpush.msra.mxu0 %v1937
    %2246 = vmatpush.msra.mxu0 %v1925
    %2247 = vmatpush.msra.mxu0 %v1913
    %2248 = vmatpush.msra.mxu0 %v1901
    %2249 = vmatpush.msra.mxu0 %v1889
    %2250 = vmatpush.msra.mxu0 %v1877
    %2251 = vmatpush.msra.mxu0 %v1865
    %2252 = vmatpush.msra.mxu0 %v1853
    %2253 = vmatpush.msra.mxu0 %v1841
    %2254 = vmatmul.f32.gmra.mxu0 %v1830
    %v2255 = vpop.f32.mrf.mxu0
    %v2256 = vadd.f32 %v2038, %v2255
    %2257 = vmatmul.f32.gmra.mxu0 %v1831
    %v2258 = vpop.f32.mrf.mxu0
    %v2259 = vadd.f32 %v2038, %v2258
    %2260 = vdwg.mxu0
    %2261 = vmatpush.msra.mxu0 %v2022
    %2262 = vmatpush.msra.mxu0 %v2010
    %2263 = vmatpush.msra.mxu0 %v1998
    %2264 = vmatpush.msra.mxu0 %v1986
    %2265 = vmatpush.msra.mxu0 %v1974
    %2266 = vmatpush.msra.mxu0 %v1962
    %2267 = vmatpush.msra.mxu0 %v1950
    %2268 = vmatpush.msra.mxu0 %v1938
    %2269 = vmatpush.msra.mxu0 %v1926
    %2270 = vmatpush.msra.mxu0 %v1914
    %2271 = vmatpush.msra.mxu0 %v1902
    %2272 = vmatpush.msra.mxu0 %v1890
    %2273 = vmatpush.msra.mxu0 %v1878
    %2274 = vmatpush.msra.mxu0 %v1866
    %2275 = vmatpush.msra.mxu0 %v1854
    %2276 = vmatpush.msra.mxu0 %v1842
    %2277 = vmatmul.f32.gmra.mxu0 %v1830
    %v2278 = vpop.f32.mrf.mxu0
    %v2279 = vadd.f32 %v2039, %v2278
    %2280 = vmatmul.f32.gmra.mxu0 %v1831
    %v2281 = vpop.f32.mrf.mxu0
    %v2282 = vadd.f32 %v2039, %v2281
    %2283 = vdwg.mxu0
    %2284 = vmatpush.msra.mxu0 %v2023
    %2285 = vmatpush.msra.mxu0 %v2011
    %2286 = vmatpush.msra.mxu0 %v1999
    %2287 = vmatpush.msra.mxu0 %v1987
    %2288 = vmatpush.msra.mxu0 %v1975
    %2289 = vmatpush.msra.mxu0 %v1963
    %2290 = vmatpush.msra.mxu0 %v1951
    %2291 = vmatpush.msra.mxu0 %v1939
    %2292 = vmatpush.msra.mxu0 %v1927
    %2293 = vmatpush.msra.mxu0 %v1915
    %2294 = vmatpush.msra.mxu0 %v1903
    %2295 = vmatpush.msra.mxu0 %v1891
    %2296 = vmatpush.msra.mxu0 %v1879
    %2297 = vmatpush.msra.mxu0 %v1867
    %2298 = vmatpush.msra.mxu0 %v1855
    %2299 = vmatpush.msra.mxu0 %v1843
    %2300 = vmatmul.f32.gmra.mxu0 %v1830
    %v2301 = vpop.f32.mrf.mxu0
    %v2302 = vadd.f32 %v2040, %v2301
    %2303 = vmatmul.f32.gmra.mxu0 %v1831
    %v2304 = vpop.f32.mrf.mxu0
    %v2305 = vadd.f32 %v2040, %v2304
    %2306 = vdwg.mxu0
    %2307 = vmatpush.msra.mxu0 %v2024
    %2308 = vmatpush.msra.mxu0 %v2012
    %2309 = vmatpush.msra.mxu0 %v2000
    %2310 = vmatpush.msra.mxu0 %v1988
    %2311 = vmatpush.msra.mxu0 %v1976
    %2312 = vmatpush.msra.mxu0 %v1964
    %2313 = vmatpush.msra.mxu0 %v1952
    %2314 = vmatpush.msra.mxu0 %v1940
    %2315 = vmatpush.msra.mxu0 %v1928
    %2316 = vmatpush.msra.mxu0 %v1916
    %2317 = vmatpush.msra.mxu0 %v1904
    %2318 = vmatpush.msra.mxu0 %v1892
    %2319 = vmatpush.msra.mxu0 %v1880
    %2320 = vmatpush.msra.mxu0 %v1868
    %2321 = vmatpush.msra.mxu0 %v1856
    %2322 = vmatpush.msra.mxu0 %v1844
    %2323 = vmatmul.f32.gmra.mxu0 %v1830
    %v2324 = vpop.f32.mrf.mxu0
    %v2325 = vadd.f32 %v2041, %v2324
    %2326 = vmatmul.f32.gmra.mxu0 %v1831
    %v2327 = vpop.f32.mrf.mxu0
    %v2328 = vadd.f32 %v2041, %v2327
    %2329 = vdwg.mxu0
    %2330 = vmatpush.xpose.msra.mxu0 0.0
    %2331 = vmatpush.xpose.msra.mxu0 0.0
    %2332 = vmatpush.xpose.msra.mxu0 0.0
    %2333 = vmatpush.xpose.msra.mxu0 0.0
    %2334 = vmatpush.xpose.msra.mxu0 0.0
    %2335 = vmatpush.xpose.msra.mxu0 0.0
    %2336 = vmatpush.xpose.msra.mxu0 0.0
    %2337 = vmatpush.xpose.msra.mxu0 0.0
    %2338 = vmatpush.xpose.msra.mxu0 0.0
    %2339 = vmatpush.xpose.msra.mxu0 0.0
    %2340 = vmatpush.xpose.msra.mxu0 0.0
    %2341 = vmatpush.xpose.msra.mxu0 0.0
    %2342 = vmatpush.xpose.msra.mxu0 0.0
    %2343 = vmatpush.xpose.msra.mxu0 0.0
    %2344 = vmatpush.xpose.msra.mxu0 0.0
    %2345 = vmatpush.xpose.msra.mxu0 %v2164
    %2346 = vmatmul.f32.gmra.mxu0 %v2072
    %v2347 = vpop.f32.mrf.mxu0
    %v2348 = vadd.f32 0.0, %v2347
    %2349 = vdwg.mxu0
    %v2350 = vmul.f32 %v2348, 0.35355338
    %v2351 = vadd.f32 %v2350, %v918
    %v2352 = vsel %vm920, %v2351, -inf
    %2353 = vmax.xlane.f32.xlu0 %v2352
    %v2354 = vpop.xlane.xlu0 %2353
    %v2355 = vsub.f32 %v2351, %v2354
    %v2356 = vmul.f32 %v2355, 1.442695
    %v2357 = vpow.pop %v2356
    %v2358 = vsel %vm920, %v2357, 0.0
    %2359 = vadd.xlane.f32.xlu0 %v2358
    %v2360 = vpop.xlane.xlu0 %2359
    %v2361 = vrcp.pop %v2360
    %v2362 = vmul.f32 %v2360, %v2361
    %v2363 = vsub.f32 1.0, %v2362
    %v2364 = vmul.f32 %v2361, %v2363
    %v2365 = vadd.f32 %v2361, %v2364
    %vm2366 = vweird.f32 %v2360
    %vm2367 = vweird.f32 %v2361
    %vm2368 = vmor %vm2366, %vm2367
    %v2369 = vsel %vm2368, %v2361, %v2365
    %v2370 = vand.u32 2147483647, %v2360
    %vm2371 = vcmp.eq.f32.partialorder %v2370, 8.507059e+37
    %v2372 = vand.u32 %v2360, 2147483648
    %v2373 = vor.u32 1.1754944e-38, %v2372
    %v2374 = vsel %vm2371, %v2373, %v2369
    %v2375 = vmul.f32 %v2357, %v2374
    %v2377 = vsel %vm920, %v2375, 0
    %2379 = vmatpush.msra.mxu0 0.0
    %2380 = vmatpush.msra.mxu0 0.0
    %2381 = vmatpush.msra.mxu0 0.0
    %2382 = vmatpush.msra.mxu0 0.0
    %2383 = vmatpush.msra.mxu0 0.0
    %2384 = vmatpush.msra.mxu0 0.0
    %2385 = vmatpush.msra.mxu0 0.0
    %2386 = vmatpush.msra.mxu0 0.0
    %2387 = vmatpush.msra.mxu0 0.0
    %2388 = vmatpush.msra.mxu0 0.0
    %2389 = vmatpush.msra.mxu0 0.0
    %2390 = vmatpush.msra.mxu0 0.0
    %2391 = vmatpush.msra.mxu0 0.0
    %2392 = vmatpush.msra.mxu0 0.0
    %2393 = vmatpush.msra.mxu0 0.0
    %2394 = vmatpush.msra.mxu0 %v2256
    %2395 = vmatmul.f32.gmra.mxu0 %v2377
    %v2396 = vpop.f32.mrf.mxu0
    %v2397 = vadd.f32 0.0, %v2396
    %2398 = vdwg.mxu0
    %2399 = vmatpush.xpose.msra.mxu0 0.0
    %2400 = vmatpush.xpose.msra.mxu0 0.0
    %2401 = vmatpush.xpose.msra.mxu0 0.0
    %2402 = vmatpush.xpose.msra.mxu0 0.0
    %2403 = vmatpush.xpose.msra.mxu0 0.0
    %2404 = vmatpush.xpose.msra.mxu0 0.0
    %2405 = vmatpush.xpose.msra.mxu0 0.0
    %2406 = vmatpush.xpose.msra.mxu0 0.0
    %2407 = vmatpush.xpose.msra.mxu0 0.0
    %2408 = vmatpush.xpose.msra.mxu0 0.0
    %2409 = vmatpush.xpose.msra.mxu0 0.0
    %2410 = vmatpush.xpose.msra.mxu0 0.0
    %2411 = vmatpush.xpose.msra.mxu0 0.0
    %2412 = vmatpush.xpose.msra.mxu0 0.0
    %2413 = vmatpush.xpose.msra.mxu0 0.0
    %2414 = vmatpush.xpose.msra.mxu0 %v2187
    %2415 = vmatmul.f32.gmra.mxu0 %v2095
    %v2416 = vpop.f32.mrf.mxu0
    %v2417 = vadd.f32 0.0, %v2416
    %2418 = vdwg.mxu0
    %v2419 = vmul.f32 %v2417, 0.35355338
    %v2420 = vadd.f32 %v2419, %v918
    %v2421 = vsel %vm920, %v2420, -inf
    %2422 = vmax.xlane.f32.xlu0 %v2421
    %v2423 = vpop.xlane.xlu0 %2422
    %v2424 = vsub.f32 %v2420, %v2423
    %v2425 = vmul.f32 %v2424, 1.442695
    %v2426 = vpow.pop %v2425
    %v2427 = vsel %vm920, %v2426, 0.0
    %2428 = vadd.xlane.f32.xlu0 %v2427
    %v2429 = vpop.xlane.xlu0 %2428
    %v2430 = vrcp.pop %v2429
    %v2431 = vmul.f32 %v2429, %v2430
    %v2432 = vsub.f32 1.0, %v2431
    %v2433 = vmul.f32 %v2430, %v2432
    %v2434 = vadd.f32 %v2430, %v2433
    %vm2435 = vweird.f32 %v2429
    %vm2436 = vweird.f32 %v2430
    %vm2437 = vmor %vm2435, %vm2436
    %v2438 = vsel %vm2437, %v2430, %v2434
    %v2439 = vand.u32 2147483647, %v2429
    %vm2440 = vcmp.eq.f32.partialorder %v2439, 8.507059e+37
    %v2441 = vand.u32 %v2429, 2147483648
    %v2442 = vor.u32 1.1754944e-38, %v2441
    %v2443 = vsel %vm2440, %v2442, %v2438
    %v2444 = vmul.f32 %v2426, %v2443
    %v2446 = vsel %vm920, %v2444, 0
    %2448 = vmatpush.msra.mxu0 0.0
    %2449 = vmatpush.msra.mxu0 0.0
    %2450 = vmatpush.msra.mxu0 0.0
    %2451 = vmatpush.msra.mxu0 0.0
    %2452 = vmatpush.msra.mxu0 0.0
    %2453 = vmatpush.msra.mxu0 0.0
    %2454 = vmatpush.msra.mxu0 0.0
    %2455 = vmatpush.msra.mxu0 0.0
    %2456 = vmatpush.msra.mxu0 0.0
    %2457 = vmatpush.msra.mxu0 0.0
    %2458 = vmatpush.msra.mxu0 0.0
    %2459 = vmatpush.msra.mxu0 0.0
    %2460 = vmatpush.msra.mxu0 0.0
    %2461 = vmatpush.msra.mxu0 0.0
    %2462 = vmatpush.msra.mxu0 0.0
    %2463 = vmatpush.msra.mxu0 %v2279
    %2464 = vmatmul.f32.gmra.mxu0 %v2446
    %v2465 = vpop.f32.mrf.mxu0
    %v2466 = vadd.f32 0.0, %v2465
    %2467 = vdwg.mxu0
    %2468 = vmatpush.xpose.msra.mxu0 0.0
    %2469 = vmatpush.xpose.msra.mxu0 0.0
    %2470 = vmatpush.xpose.msra.mxu0 0.0
    %2471 = vmatpush.xpose.msra.mxu0 0.0
    %2472 = vmatpush.xpose.msra.mxu0 0.0
    %2473 = vmatpush.xpose.msra.mxu0 0.0
    %2474 = vmatpush.xpose.msra.mxu0 0.0
    %2475 = vmatpush.xpose.msra.mxu0 0.0
    %2476 = vmatpush.xpose.msra.mxu0 0.0
    %2477 = vmatpush.xpose.msra.mxu0 0.0
    %2478 = vmatpush.xpose.msra.mxu0 0.0
    %2479 = vmatpush.xpose.msra.mxu0 0.0
    %2480 = vmatpush.xpose.msra.mxu0 0.0
    %2481 = vmatpush.xpose.msra.mxu0 0.0
    %2482 = vmatpush.xpose.msra.mxu0 0.0
    %2483 = vmatpush.xpose.msra.mxu0 %v2210
    %2484 = vmatmul.f32.gmra.mxu0 %v2118
    %v2485 = vpop.f32.mrf.mxu0
    %v2486 = vadd.f32 0.0, %v2485
    %2487 = vdwg.mxu0
    %v2488 = vmul.f32 %v2486, 0.35355338
    %v2489 = vadd.f32 %v2488, %v918
    %v2490 = vsel %vm920, %v2489, -inf
    %2491 = vmax.xlane.f32.xlu0 %v2490
    %v2492 = vpop.xlane.xlu0 %2491
    %v2493 = vsub.f32 %v2489, %v2492
    %v2494 = vmul.f32 %v2493, 1.442695
    %v2495 = vpow.pop %v2494
    %v2496 = vsel %vm920, %v2495, 0.0
    %2497 = vadd.xlane.f32.xlu0 %v2496
    %v2498 = vpop.xlane.xlu0 %2497
    %v2499 = vrcp.pop %v2498
    %v2500 = vmul.f32 %v2498, %v2499
    %v2501 = vsub.f32 1.0, %v2500
    %v2502 = vmul.f32 %v2499, %v2501
    %v2503 = vadd.f32 %v2499, %v2502
    %vm2504 = vweird.f32 %v2498
    %vm2505 = vweird.f32 %v2499
    %vm2506 = vmor %vm2504, %vm2505
    %v2507 = vsel %vm2506, %v2499, %v2503
    %v2508 = vand.u32 2147483647, %v2498
    %vm2509 = vcmp.eq.f32.partialorder %v2508, 8.507059e+37
    %v2510 = vand.u32 %v2498, 2147483648
    %v2511 = vor.u32 1.1754944e-38, %v2510
    %v2512 = vsel %vm2509, %v2511, %v2507
    %v2513 = vmul.f32 %v2495, %v2512
    %v2515 = vsel %vm920, %v2513, 0
    %2517 = vmatpush.msra.mxu0 0.0
    %2518 = vmatpush.msra.mxu0 0.0
    %2519 = vmatpush.msra.mxu0 0.0
    %2520 = vmatpush.msra.mxu0 0.0
    %2521 = vmatpush.msra.mxu0 0.0
    %2522 = vmatpush.msra.mxu0 0.0
    %2523 = vmatpush.msra.mxu0 0.0
    %2524 = vmatpush.msra.mxu0 0.0
    %2525 = vmatpush.msra.mxu0 0.0
    %2526 = vmatpush.msra.mxu0 0.0
    %2527 = vmatpush.msra.mxu0 0.0
    %2528 = vmatpush.msra.mxu0 0.0
    %2529 = vmatpush.msra.mxu0 0.0
    %2530 = vmatpush.msra.mxu0 0.0
    %2531 = vmatpush.msra.mxu0 0.0
    %2532 = vmatpush.msra.mxu0 %v2302
    %2533 = vmatmul.f32.gmra.mxu0 %v2515
    %v2534 = vpop.f32.mrf.mxu0
    %v2535 = vadd.f32 0.0, %v2534
    %2536 = vdwg.mxu0
    %2537 = vmatpush.xpose.msra.mxu0 0.0
    %2538 = vmatpush.xpose.msra.mxu0 0.0
    %2539 = vmatpush.xpose.msra.mxu0 0.0
    %2540 = vmatpush.xpose.msra.mxu0 0.0
    %2541 = vmatpush.xpose.msra.mxu0 0.0
    %2542 = vmatpush.xpose.msra.mxu0 0.0
    %2543 = vmatpush.xpose.msra.mxu0 0.0
    %2544 = vmatpush.xpose.msra.mxu0 0.0
    %2545 = vmatpush.xpose.msra.mxu0 0.0
    %2546 = vmatpush.xpose.msra.mxu0 0.0
    %2547 = vmatpush.xpose.msra.mxu0 0.0
    %2548 = vmatpush.xpose.msra.mxu0 0.0
    %2549 = vmatpush.xpose.msra.mxu0 0.0
    %2550 = vmatpush.xpose.msra.mxu0 0.0
    %2551 = vmatpush.xpose.msra.mxu0 0.0
    %2552 = vmatpush.xpose.msra.mxu0 %v2233
    %2553 = vmatmul.f32.gmra.mxu0 %v2141
    %v2554 = vpop.f32.mrf.mxu0
    %v2555 = vadd.f32 0.0, %v2554
    %2556 = vdwg.mxu0
    %v2557 = vmul.f32 %v2555, 0.35355338
    %v2558 = vadd.f32 %v2557, %v918
    %v2559 = vsel %vm920, %v2558, -inf
    %2560 = vmax.xlane.f32.xlu0 %v2559
    %v2561 = vpop.xlane.xlu0 %2560
    %v2562 = vsub.f32 %v2558, %v2561
    %v2563 = vmul.f32 %v2562, 1.442695
    %v2564 = vpow.pop %v2563
    %v2565 = vsel %vm920, %v2564, 0.0
    %2566 = vadd.xlane.f32.xlu0 %v2565
    %v2567 = vpop.xlane.xlu0 %2566
    %v2568 = vrcp.pop %v2567
    %v2569 = vmul.f32 %v2567, %v2568
    %v2570 = vsub.f32 1.0, %v2569
    %v2571 = vmul.f32 %v2568, %v2570
    %v2572 = vadd.f32 %v2568, %v2571
    %vm2573 = vweird.f32 %v2567
    %vm2574 = vweird.f32 %v2568
    %vm2575 = vmor %vm2573, %vm2574
    %v2576 = vsel %vm2575, %v2568, %v2572
    %v2577 = vand.u32 2147483647, %v2567
    %vm2578 = vcmp.eq.f32.partialorder %v2577, 8.507059e+37
    %v2579 = vand.u32 %v2567, 2147483648
    %v2580 = vor.u32 1.1754944e-38, %v2579
    %v2581 = vsel %vm2578, %v2580, %v2576
    %v2582 = vmul.f32 %v2564, %v2581
    %v2584 = vsel %vm920, %v2582, 0
    %2586 = vmatpush.msra.mxu0 0.0
    %2587 = vmatpush.msra.mxu0 0.0
    %2588 = vmatpush.msra.mxu0 0.0
    %2589 = vmatpush.msra.mxu0 0.0
    %2590 = vmatpush.msra.mxu0 0.0
    %2591 = vmatpush.msra.mxu0 0.0
    %2592 = vmatpush.msra.mxu0 0.0
    %2593 = vmatpush.msra.mxu0 0.0
    %2594 = vmatpush.msra.mxu0 0.0
    %2595 = vmatpush.msra.mxu0 0.0
    %2596 = vmatpush.msra.mxu0 0.0
    %2597 = vmatpush.msra.mxu0 0.0
    %2598 = vmatpush.msra.mxu0 0.0
    %2599 = vmatpush.msra.mxu0 0.0
    %2600 = vmatpush.msra.mxu0 0.0
    %2601 = vmatpush.msra.mxu0 %v2325
    %2602 = vmatmul.f32.gmra.mxu0 %v2584
    %v2603 = vpop.f32.mrf.mxu0
    %v2604 = vadd.f32 0.0, %v2603
    %2605 = vdwg.mxu0
    %2606 = vmatpush.xpose.msra.mxu0 0.0
    %2607 = vmatpush.xpose.msra.mxu0 0.0
    %2608 = vmatpush.xpose.msra.mxu0 0.0
    %2609 = vmatpush.xpose.msra.mxu0 0.0
    %2610 = vmatpush.xpose.msra.mxu0 0.0
    %2611 = vmatpush.xpose.msra.mxu0 0.0
    %2612 = vmatpush.xpose.msra.mxu0 0.0
    %2613 = vmatpush.xpose.msra.mxu0 0.0
    %2614 = vmatpush.xpose.msra.mxu0 0.0
    %2615 = vmatpush.xpose.msra.mxu0 0.0
    %2616 = vmatpush.xpose.msra.mxu0 0.0
    %2617 = vmatpush.xpose.msra.mxu0 0.0
    %2618 = vmatpush.xpose.msra.mxu0 0.0
    %2619 = vmatpush.xpose.msra.mxu0 0.0
    %2620 = vmatpush.xpose.msra.mxu0 0.0
    %2621 = vmatpush.xpose.msra.mxu0 %v2167
    %2622 = vmatmul.f32.gmra.mxu0 %v2075
    %v2623 = vpop.f32.mrf.mxu0
    %v2624 = vadd.f32 0.0, %v2623
    %2625 = vdwg.mxu0
    %v2626 = vmul.f32 %v2624, 0.35355338
    %v2627 = vadd.f32 %v2626, %v1196
    %v2628 = vsel %vm920, %v2627, -inf
    %2629 = vmax.xlane.f32.xlu0 %v2628
    %v2630 = vpop.xlane.xlu0 %2629
    %v2631 = vsub.f32 %v2627, %v2630
    %v2632 = vmul.f32 %v2631, 1.442695
    %v2633 = vpow.pop %v2632
    %v2634 = vsel %vm920, %v2633, 0.0
    %2635 = vadd.xlane.f32.xlu0 %v2634
    %v2636 = vpop.xlane.xlu0 %2635
    %v2637 = vrcp.pop %v2636
    %v2638 = vmul.f32 %v2636, %v2637
    %v2639 = vsub.f32 1.0, %v2638
    %v2640 = vmul.f32 %v2637, %v2639
    %v2641 = vadd.f32 %v2637, %v2640
    %vm2642 = vweird.f32 %v2636
    %vm2643 = vweird.f32 %v2637
    %vm2644 = vmor %vm2642, %vm2643
    %v2645 = vsel %vm2644, %v2637, %v2641
    %v2646 = vand.u32 2147483647, %v2636
    %vm2647 = vcmp.eq.f32.partialorder %v2646, 8.507059e+37
    %v2648 = vand.u32 %v2636, 2147483648
    %v2649 = vor.u32 1.1754944e-38, %v2648
    %v2650 = vsel %vm2647, %v2649, %v2645
    %v2651 = vmul.f32 %v2633, %v2650
    %v2653 = vsel %vm920, %v2651, 0
    %2655 = vmatpush.msra.mxu0 0.0
    %2656 = vmatpush.msra.mxu0 0.0
    %2657 = vmatpush.msra.mxu0 0.0
    %2658 = vmatpush.msra.mxu0 0.0
    %2659 = vmatpush.msra.mxu0 0.0
    %2660 = vmatpush.msra.mxu0 0.0
    %2661 = vmatpush.msra.mxu0 0.0
    %2662 = vmatpush.msra.mxu0 0.0
    %2663 = vmatpush.msra.mxu0 0.0
    %2664 = vmatpush.msra.mxu0 0.0
    %2665 = vmatpush.msra.mxu0 0.0
    %2666 = vmatpush.msra.mxu0 0.0
    %2667 = vmatpush.msra.mxu0 0.0
    %2668 = vmatpush.msra.mxu0 0.0
    %2669 = vmatpush.msra.mxu0 0.0
    %2670 = vmatpush.msra.mxu0 %v2259
    %2671 = vmatmul.f32.gmra.mxu0 %v2653
    %v2672 = vpop.f32.mrf.mxu0
    %v2673 = vadd.f32 0.0, %v2672
    %2674 = vdwg.mxu0
    %2675 = vmatpush.xpose.msra.mxu0 0.0
    %2676 = vmatpush.xpose.msra.mxu0 0.0
    %2677 = vmatpush.xpose.msra.mxu0 0.0
    %2678 = vmatpush.xpose.msra.mxu0 0.0
    %2679 = vmatpush.xpose.msra.mxu0 0.0
    %2680 = vmatpush.xpose.msra.mxu0 0.0
    %2681 = vmatpush.xpose.msra.mxu0 0.0
    %2682 = vmatpush.xpose.msra.mxu0 0.0
    %2683 = vmatpush.xpose.msra.mxu0 0.0
    %2684 = vmatpush.xpose.msra.mxu0 0.0
    %2685 = vmatpush.xpose.msra.mxu0 0.0
    %2686 = vmatpush.xpose.msra.mxu0 0.0
    %2687 = vmatpush.xpose.msra.mxu0 0.0
    %2688 = vmatpush.xpose.msra.mxu0 0.0
    %2689 = vmatpush.xpose.msra.mxu0 0.0
    %2690 = vmatpush.xpose.msra.mxu0 %v2190
    %2691 = vmatmul.f32.gmra.mxu0 %v2098
    %v2692 = vpop.f32.mrf.mxu0
    %v2693 = vadd.f32 0.0, %v2692
    %2694 = vdwg.mxu0
    %v2695 = vmul.f32 %v2693, 0.35355338
    %v2696 = vadd.f32 %v2695, %v1196
    %v2697 = vsel %vm920, %v2696, -inf
    %2698 = vmax.xlane.f32.xlu0 %v2697
    %v2699 = vpop.xlane.xlu0 %2698
    %v2700 = vsub.f32 %v2696, %v2699
    %v2701 = vmul.f32 %v2700, 1.442695
    %v2702 = vpow.pop %v2701
    %v2703 = vsel %vm920, %v2702, 0.0
    %2704 = vadd.xlane.f32.xlu0 %v2703
    %v2705 = vpop.xlane.xlu0 %2704
    %v2706 = vrcp.pop %v2705
    %v2707 = vmul.f32 %v2705, %v2706
    %v2708 = vsub.f32 1.0, %v2707
    %v2709 = vmul.f32 %v2706, %v2708
    %v2710 = vadd.f32 %v2706, %v2709
    %vm2711 = vweird.f32 %v2705
    %vm2712 = vweird.f32 %v2706
    %vm2713 = vmor %vm2711, %vm2712
    %v2714 = vsel %vm2713, %v2706, %v2710
    %v2715 = vand.u32 2147483647, %v2705
    %vm2716 = vcmp.eq.f32.partialorder %v2715, 8.507059e+37
    %v2717 = vand.u32 %v2705, 2147483648
    %v2718 = vor.u32 1.1754944e-38, %v2717
    %v2719 = vsel %vm2716, %v2718, %v2714
    %v2720 = vmul.f32 %v2702, %v2719
    %v2722 = vsel %vm920, %v2720, 0
    %2724 = vmatpush.msra.mxu0 0.0
    %2725 = vmatpush.msra.mxu0 0.0
    %2726 = vmatpush.msra.mxu0 0.0
    %2727 = vmatpush.msra.mxu0 0.0
    %2728 = vmatpush.msra.mxu0 0.0
    %2729 = vmatpush.msra.mxu0 0.0
    %2730 = vmatpush.msra.mxu0 0.0
    %2731 = vmatpush.msra.mxu0 0.0
    %2732 = vmatpush.msra.mxu0 0.0
    %2733 = vmatpush.msra.mxu0 0.0
    %2734 = vmatpush.msra.mxu0 0.0
    %2735 = vmatpush.msra.mxu0 0.0
    %2736 = vmatpush.msra.mxu0 0.0
    %2737 = vmatpush.msra.mxu0 0.0
    %2738 = vmatpush.msra.mxu0 0.0
    %2739 = vmatpush.msra.mxu0 %v2282
    %2740 = vmatmul.f32.gmra.mxu0 %v2722
    %v2741 = vpop.f32.mrf.mxu0
    %v2742 = vadd.f32 0.0, %v2741
    %2743 = vdwg.mxu0
    %2744 = vmatpush.xpose.msra.mxu0 0.0
    %2745 = vmatpush.xpose.msra.mxu0 0.0
    %2746 = vmatpush.xpose.msra.mxu0 0.0
    %2747 = vmatpush.xpose.msra.mxu0 0.0
    %2748 = vmatpush.xpose.msra.mxu0 0.0
    %2749 = vmatpush.xpose.msra.mxu0 0.0
    %2750 = vmatpush.xpose.msra.mxu0 0.0
    %2751 = vmatpush.xpose.msra.mxu0 0.0
    %2752 = vmatpush.xpose.msra.mxu0 0.0
    %2753 = vmatpush.xpose.msra.mxu0 0.0
    %2754 = vmatpush.xpose.msra.mxu0 0.0
    %2755 = vmatpush.xpose.msra.mxu0 0.0
    %2756 = vmatpush.xpose.msra.mxu0 0.0
    %2757 = vmatpush.xpose.msra.mxu0 0.0
    %2758 = vmatpush.xpose.msra.mxu0 0.0
    %2759 = vmatpush.xpose.msra.mxu0 %v2213
    %2760 = vmatmul.f32.gmra.mxu0 %v2121
    %v2761 = vpop.f32.mrf.mxu0
    %v2762 = vadd.f32 0.0, %v2761
    %2763 = vdwg.mxu0
    %v2764 = vmul.f32 %v2762, 0.35355338
    %v2765 = vadd.f32 %v2764, %v1196
    %v2766 = vsel %vm920, %v2765, -inf
    %2767 = vmax.xlane.f32.xlu0 %v2766
    %v2768 = vpop.xlane.xlu0 %2767
    %v2769 = vsub.f32 %v2765, %v2768
    %v2770 = vmul.f32 %v2769, 1.442695
    %v2771 = vpow.pop %v2770
    %v2772 = vsel %vm920, %v2771, 0.0
    %2773 = vadd.xlane.f32.xlu0 %v2772
    %v2774 = vpop.xlane.xlu0 %2773
    %v2775 = vrcp.pop %v2774
    %v2776 = vmul.f32 %v2774, %v2775
    %v2777 = vsub.f32 1.0, %v2776
    %v2778 = vmul.f32 %v2775, %v2777
    %v2779 = vadd.f32 %v2775, %v2778
    %vm2780 = vweird.f32 %v2774
    %vm2781 = vweird.f32 %v2775
    %vm2782 = vmor %vm2780, %vm2781
    %v2783 = vsel %vm2782, %v2775, %v2779
    %v2784 = vand.u32 2147483647, %v2774
    %vm2785 = vcmp.eq.f32.partialorder %v2784, 8.507059e+37
    %v2786 = vand.u32 %v2774, 2147483648
    %v2787 = vor.u32 1.1754944e-38, %v2786
    %v2788 = vsel %vm2785, %v2787, %v2783
    %v2789 = vmul.f32 %v2771, %v2788
    %v2791 = vsel %vm920, %v2789, 0
    %2793 = vmatpush.msra.mxu0 0.0
    %2794 = vmatpush.msra.mxu0 0.0
    %2795 = vmatpush.msra.mxu0 0.0
    %2796 = vmatpush.msra.mxu0 0.0
    %2797 = vmatpush.msra.mxu0 0.0
    %2798 = vmatpush.msra.mxu0 0.0
    %2799 = vmatpush.msra.mxu0 0.0
    %2800 = vmatpush.msra.mxu0 0.0
    %2801 = vmatpush.msra.mxu0 0.0
    %2802 = vmatpush.msra.mxu0 0.0
    %2803 = vmatpush.msra.mxu0 0.0
    %2804 = vmatpush.msra.mxu0 0.0
    %2805 = vmatpush.msra.mxu0 0.0
    %2806 = vmatpush.msra.mxu0 0.0
    %2807 = vmatpush.msra.mxu0 0.0
    %2808 = vmatpush.msra.mxu0 %v2305
    %2809 = vmatmul.f32.gmra.mxu0 %v2791
    %v2810 = vpop.f32.mrf.mxu0
    %v2811 = vadd.f32 0.0, %v2810
    %2812 = vdwg.mxu0
    %2813 = vmatpush.xpose.msra.mxu0 0.0
    %2814 = vmatpush.xpose.msra.mxu0 0.0
    %2815 = vmatpush.xpose.msra.mxu0 0.0
    %2816 = vmatpush.xpose.msra.mxu0 0.0
    %2817 = vmatpush.xpose.msra.mxu0 0.0
    %2818 = vmatpush.xpose.msra.mxu0 0.0
    %2819 = vmatpush.xpose.msra.mxu0 0.0
    %2820 = vmatpush.xpose.msra.mxu0 0.0
    %2821 = vmatpush.xpose.msra.mxu0 0.0
    %2822 = vmatpush.xpose.msra.mxu0 0.0
    %2823 = vmatpush.xpose.msra.mxu0 0.0
    %2824 = vmatpush.xpose.msra.mxu0 0.0
    %2825 = vmatpush.xpose.msra.mxu0 0.0
    %2826 = vmatpush.xpose.msra.mxu0 0.0
    %2827 = vmatpush.xpose.msra.mxu0 0.0
    %2828 = vmatpush.xpose.msra.mxu0 %v2236
    %2829 = vmatmul.f32.gmra.mxu0 %v2144
    %v2830 = vpop.f32.mrf.mxu0
    %v2831 = vadd.f32 0.0, %v2830
    %2832 = vdwg.mxu0
    %v2833 = vmul.f32 %v2831, 0.35355338
    %v2834 = vadd.f32 %v2833, %v1196
    %v2835 = vsel %vm920, %v2834, -inf
    %2836 = vmax.xlane.f32.xlu0 %v2835
    %v2837 = vpop.xlane.xlu0 %2836
    %v2838 = vsub.f32 %v2834, %v2837
    %v2839 = vmul.f32 %v2838, 1.442695
    %v2840 = vpow.pop %v2839
    %v2841 = vsel %vm920, %v2840, 0.0
    %2842 = vadd.xlane.f32.xlu0 %v2841
    %v2843 = vpop.xlane.xlu0 %2842
    %v2844 = vrcp.pop %v2843
    %v2845 = vmul.f32 %v2843, %v2844
    %v2846 = vsub.f32 1.0, %v2845
    %v2847 = vmul.f32 %v2844, %v2846
    %v2848 = vadd.f32 %v2844, %v2847
    %vm2849 = vweird.f32 %v2843
    %vm2850 = vweird.f32 %v2844
    %vm2851 = vmor %vm2849, %vm2850
    %v2852 = vsel %vm2851, %v2844, %v2848
    %v2853 = vand.u32 2147483647, %v2843
    %vm2854 = vcmp.eq.f32.partialorder %v2853, 8.507059e+37
    %v2855 = vand.u32 %v2843, 2147483648
    %v2856 = vor.u32 1.1754944e-38, %v2855
    %v2857 = vsel %vm2854, %v2856, %v2852
    %v2858 = vmul.f32 %v2840, %v2857
    %v2860 = vsel %vm920, %v2858, 0
    %2862 = vmatpush.msra.mxu0 0.0
    %2863 = vmatpush.msra.mxu0 0.0
    %2864 = vmatpush.msra.mxu0 0.0
    %2865 = vmatpush.msra.mxu0 0.0
    %2866 = vmatpush.msra.mxu0 0.0
    %2867 = vmatpush.msra.mxu0 0.0
    %2868 = vmatpush.msra.mxu0 0.0
    %2869 = vmatpush.msra.mxu0 0.0
    %2870 = vmatpush.msra.mxu0 0.0
    %2871 = vmatpush.msra.mxu0 0.0
    %2872 = vmatpush.msra.mxu0 0.0
    %2873 = vmatpush.msra.mxu0 0.0
    %2874 = vmatpush.msra.mxu0 0.0
    %2875 = vmatpush.msra.mxu0 0.0
    %2876 = vmatpush.msra.mxu0 0.0
    %2877 = vmatpush.msra.mxu0 %v2328
    %2878 = vmatmul.f32.gmra.mxu0 %v2860
    %v2879 = vpop.f32.mrf.mxu0
    %v2880 = vadd.f32 0.0, %v2879
    %2881 = vdwg.mxu0
    %s2882 = scalar_lea.vmem [#allocation13], 512
    %v2883 = vld [vmem:[%s2882] sm:$0xff]
    %v2884 = vld [vmem:[%s2882 + $0x8] sm:$0xff]
    %v2885 = vld [vmem:[%s2882 + $0x10] sm:$0xff]
    %v2886 = vld [vmem:[%s2882 + $0x18] sm:$0xff]
    %v2887 = vld [vmem:[%s2882 + $0x20] sm:$0xff]
    %v2888 = vld [vmem:[%s2882 + $0x28] sm:$0xff]
    %v2889 = vld [vmem:[%s2882 + $0x30] sm:$0xff]
    %v2890 = vld [vmem:[%s2882 + $0x38] sm:$0xff]
    %v2891 = vld [vmem:[%s2882 + $0x40] sm:$0xff]
    %v2892 = vld [vmem:[%s2882 + $0x48] sm:$0xff]
    %v2893 = vld [vmem:[%s2882 + $0x50] sm:$0xff]
    %v2894 = vld [vmem:[%s2882 + $0x58] sm:$0xff]
    %v2895 = vld [vmem:[%s2882 + $0x60] sm:$0xff]
    %v2896 = vld [vmem:[%s2882 + $0x68] sm:$0xff]
    %v2897 = vld [vmem:[%s2882 + $0x70] sm:$0xff]
    %v2898 = vld [vmem:[%s2882 + $0x78] sm:$0xff]
    %v2899 = vld [vmem:[%s2882 + $0x80] sm:$0xff]
    %v2900 = vld [vmem:[%s2882 + $0x88] sm:$0xff]
    %v2901 = vld [vmem:[%s2882 + $0x90] sm:$0xff]
    %v2902 = vld [vmem:[%s2882 + $0x98] sm:$0xff]
    %v2903 = vld [vmem:[%s2882 + $0xa0] sm:$0xff]
    %v2904 = vld [vmem:[%s2882 + $0xa8] sm:$0xff]
    %v2905 = vld [vmem:[%s2882 + $0xb0] sm:$0xff]
    %v2906 = vld [vmem:[%s2882 + $0xb8] sm:$0xff]
    %v2907 = vld [vmem:[%s2882 + $0xc0] sm:$0xff]
    %v2908 = vld [vmem:[%s2882 + $0xc8] sm:$0xff]
    %v2909 = vld [vmem:[%s2882 + $0xd0] sm:$0xff]
    %v2910 = vld [vmem:[%s2882 + $0xd8] sm:$0xff]
    %v2911 = vld [vmem:[%s2882 + $0xe0] sm:$0xff]
    %v2912 = vld [vmem:[%s2882 + $0xe8] sm:$0xff]
    %v2913 = vld [vmem:[%s2882 + $0xf0] sm:$0xff]
    %v2914 = vld [vmem:[%s2882 + $0xf8] sm:$0xff]
    %v2915 = vld [vmem:[%s2882 + $0x100] sm:$0xff]
    %v2916 = vld [vmem:[%s2882 + $0x108] sm:$0xff]
    %v2917 = vld [vmem:[%s2882 + $0x110] sm:$0xff]
    %v2918 = vld [vmem:[%s2882 + $0x118] sm:$0xff]
    %v2919 = vld [vmem:[%s2882 + $0x120] sm:$0xff]
    %v2920 = vld [vmem:[%s2882 + $0x128] sm:$0xff]
    %v2921 = vld [vmem:[%s2882 + $0x130] sm:$0xff]
    %v2922 = vld [vmem:[%s2882 + $0x138] sm:$0xff]
    %v2923 = vld [vmem:[%s2882 + $0x140] sm:$0xff]
    %v2924 = vld [vmem:[%s2882 + $0x148] sm:$0xff]
    %v2925 = vld [vmem:[%s2882 + $0x150] sm:$0xff]
    %v2926 = vld [vmem:[%s2882 + $0x158] sm:$0xff]
    %v2927 = vld [vmem:[%s2882 + $0x160] sm:$0xff]
    %v2928 = vld [vmem:[%s2882 + $0x168] sm:$0xff]
    %v2929 = vld [vmem:[%s2882 + $0x170] sm:$0xff]
    %v2930 = vld [vmem:[%s2882 + $0x178] sm:$0xff]
    %v2931 = vld [vmem:[%s2882 + $0x180] sm:$0xff]
    %v2932 = vld [vmem:[%s2882 + $0x188] sm:$0xff]
    %v2933 = vld [vmem:[%s2882 + $0x190] sm:$0xff]
    %v2934 = vld [vmem:[%s2882 + $0x198] sm:$0xff]
    %v2935 = vld [vmem:[%s2882 + $0x1a0] sm:$0xff]
    %v2936 = vld [vmem:[%s2882 + $0x1a8] sm:$0xff]
    %v2937 = vld [vmem:[%s2882 + $0x1b0] sm:$0xff]
    %v2938 = vld [vmem:[%s2882 + $0x1b8] sm:$0xff]
    %v2939 = vld [vmem:[%s2882 + $0x1c0] sm:$0xff]
    %v2940 = vld [vmem:[%s2882 + $0x1c8] sm:$0xff]
    %v2941 = vld [vmem:[%s2882 + $0x1d0] sm:$0xff]
    %v2942 = vld [vmem:[%s2882 + $0x1d8] sm:$0xff]
    %v2943 = vld [vmem:[%s2882 + $0x1e0] sm:$0xff]
    %v2944 = vld [vmem:[%s2882 + $0x1e8] sm:$0xff]
    %v2945 = vld [vmem:[%s2882 + $0x1f0] sm:$0xff]
    %v2946 = vld [vmem:[%s2882 + $0x1f8] sm:$0xff]
    %s2947 = scalar_lea.vmem [#allocation14], 1
    %v2948 = vld [vmem:[%s2947] sm:$0x1]
    %v2950 = vperm.slane %v2948, 0
    %2952 = vmatpush.msra.mxu0 %v2898
    %2953 = vmatpush.msra.mxu0 %v2897
    %2954 = vmatpush.msra.mxu0 %v2896
    %2955 = vmatpush.msra.mxu0 %v2895
    %2956 = vmatpush.msra.mxu0 %v2894
    %2957 = vmatpush.msra.mxu0 %v2893
    %2958 = vmatpush.msra.mxu0 %v2892
    %2959 = vmatpush.msra.mxu0 %v2891
    %2960 = vmatpush.msra.mxu0 %v2890
    %2961 = vmatpush.msra.mxu0 %v2889
    %2962 = vmatpush.msra.mxu0 %v2888
    %2963 = vmatpush.msra.mxu0 %v2887
    %2964 = vmatpush.msra.mxu0 %v2886
    %2965 = vmatpush.msra.mxu0 %v2885
    %2966 = vmatpush.msra.mxu0 %v2884
    %2967 = vmatpush.msra.mxu0 %v2883
    %2968 = vmatmul.f32.gmra.mxu0 %v2397
    %v2969 = vpop.f32.mrf.mxu0
    %v2970 = vadd.f32 %v2950, %v2969
    %2971 = vmatmul.f32.gmra.mxu0 %v2673
    %v2972 = vpop.f32.mrf.mxu0
    %v2973 = vadd.f32 %v2950, %v2972
    %2974 = vdwg.mxu0
    %2975 = vmatpush.msra.mxu0 %v2914
    %2976 = vmatpush.msra.mxu0 %v2913
    %2977 = vmatpush.msra.mxu0 %v2912
    %2978 = vmatpush.msra.mxu0 %v2911
    %2979 = vmatpush.msra.mxu0 %v2910
    %2980 = vmatpush.msra.mxu0 %v2909
    %2981 = vmatpush.msra.mxu0 %v2908
    %2982 = vmatpush.msra.mxu0 %v2907
    %2983 = vmatpush.msra.mxu0 %v2906
    %2984 = vmatpush.msra.mxu0 %v2905
    %2985 = vmatpush.msra.mxu0 %v2904
    %2986 = vmatpush.msra.mxu0 %v2903
    %2987 = vmatpush.msra.mxu0 %v2902
    %2988 = vmatpush.msra.mxu0 %v2901
    %2989 = vmatpush.msra.mxu0 %v2900
    %2990 = vmatpush.msra.mxu0 %v2899
    %2991 = vmatmul.f32.gmra.mxu0 %v2466
    %v2992 = vpop.f32.mrf.mxu0
    %v2993 = vadd.f32 %v2970, %v2992
    %2994 = vmatmul.f32.gmra.mxu0 %v2742
    %v2995 = vpop.f32.mrf.mxu0
    %v2996 = vadd.f32 %v2973, %v2995
    %2997 = vdwg.mxu0
    %2998 = vmatpush.msra.mxu0 %v2930
    %2999 = vmatpush.msra.mxu0 %v2929
    %3000 = vmatpush.msra.mxu0 %v2928
    %3001 = vmatpush.msra.mxu0 %v2927
    %3002 = vmatpush.msra.mxu0 %v2926
    %3003 = vmatpush.msra.mxu0 %v2925
    %3004 = vmatpush.msra.mxu0 %v2924
    %3005 = vmatpush.msra.mxu0 %v2923
    %3006 = vmatpush.msra.mxu0 %v2922
    %3007 = vmatpush.msra.mxu0 %v2921
    %3008 = vmatpush.msra.mxu0 %v2920
    %3009 = vmatpush.msra.mxu0 %v2919
    %3010 = vmatpush.msra.mxu0 %v2918
    %3011 = vmatpush.msra.mxu0 %v2917
    %3012 = vmatpush.msra.mxu0 %v2916
    %3013 = vmatpush.msra.mxu0 %v2915
    %3014 = vmatmul.f32.gmra.mxu0 %v2535
    %v3015 = vpop.f32.mrf.mxu0
    %v3016 = vadd.f32 %v2993, %v3015
    %3017 = vmatmul.f32.gmra.mxu0 %v2811
    %v3018 = vpop.f32.mrf.mxu0
    %v3019 = vadd.f32 %v2996, %v3018
    %3020 = vdwg.mxu0
    %3021 = vmatpush.msra.mxu0 %v2946
    %3022 = vmatpush.msra.mxu0 %v2945
    %3023 = vmatpush.msra.mxu0 %v2944
    %3024 = vmatpush.msra.mxu0 %v2943
    %3025 = vmatpush.msra.mxu0 %v2942
    %3026 = vmatpush.msra.mxu0 %v2941
    %3027 = vmatpush.msra.mxu0 %v2940
    %3028 = vmatpush.msra.mxu0 %v2939
    %3029 = vmatpush.msra.mxu0 %v2938
    %3030 = vmatpush.msra.mxu0 %v2937
    %3031 = vmatpush.msra.mxu0 %v2936
    %3032 = vmatpush.msra.mxu0 %v2935
    %3033 = vmatpush.msra.mxu0 %v2934
    %3034 = vmatpush.msra.mxu0 %v2933
    %3035 = vmatpush.msra.mxu0 %v2932
    %3036 = vmatpush.msra.mxu0 %v2931
    %3037 = vmatmul.f32.gmra.mxu0 %v2604
    %v3038 = vpop.f32.mrf.mxu0
    %v3039 = vadd.f32 %v3016, %v3038
    %3040 = vmatmul.f32.gmra.mxu0 %v2880
    %v3041 = vpop.f32.mrf.mxu0
    %v3042 = vadd.f32 %v3019, %v3041
    %3043 = vdwg.mxu0
    %v3044 = vadd.f32 %v1830, %v3039
    %v3045 = vadd.f32 %v1831, %v3042
    %s3046 = scalar_lea.vmem [#allocation16], 1
    %v3047 = vld [vmem:[%s3046] sm:$0x1]
    %s3048 = scalar_lea.vmem [#allocation17], 1
    %v3049 = vld [vmem:[%s3048] sm:$0x1]
    %v3050 = vmul.f32 %v3044, %v339
    %v3051 = vmul.f32 %v3045, %v339
    %3052 = vadd.xlane.f32.xlu0 %v3050
    %v3053 = vpop.xlane.xlu0 %3052
    %3054 = vadd.xlane.f32.xlu0 %v3051
    %v3055 = vpop.xlane.xlu0 %3054
    %v3056 = vmul.f32 %v3053, 0.03125
    %v3057 = vmul.f32 %v3055, 0.03125
    %v3058 = vsub.f32 %v3044, %v3056
    %v3059 = vsub.f32 %v3045, %v3057
    %v3060 = vmul.f32 %v3058, %v339
    %v3061 = vmul.f32 %v3059, %v339
    %v3062 = vmul.f32 %v3060, %v3060
    %v3063 = vmul.f32 %v3061, %v3061
    %3064 = vadd.xlane.f32.xlu0 %v3062
    %v3065 = vpop.xlane.xlu0 %3064
    %3066 = vadd.xlane.f32.xlu0 %v3063
    %v3067 = vpop.xlane.xlu0 %3066
    %v3068 = vmul.f32 %v3065, 0.03125
    %v3069 = vmul.f32 %v3067, 0.03125
    %v3070 = vadd.f32 %v3068, 1e-12
    %v3071 = vadd.f32 %v3069, 1e-12
    %v3072 = vrsqrt.pop %v3070
    %v3073 = vmul.f32 %v3072, %v3070
    %v3074 = vmul.f32 %v3073, %v3072
    %v3075 = vmul.f32 0.5, %v3074
    %v3076 = vsub.f32 1.5, %v3075
    %v3077 = vmul.f32 %v3072, %v3076
    %vm3078 = vweird.f32 %v3070
    %vm3079 = vweird.f32 %v3072
    %vm3080 = vmor %vm3078, %vm3079
    %v3081 = vsel %vm3080, %v3072, %v3077
    %v3082 = vrsqrt.pop %v3071
    %v3083 = vmul.f32 %v3082, %v3071
    %v3084 = vmul.f32 %v3083, %v3082
    %v3085 = vmul.f32 0.5, %v3084
    %v3086 = vsub.f32 1.5, %v3085
    %v3087 = vmul.f32 %v3082, %v3086
    %vm3088 = vweird.f32 %v3071
    %vm3089 = vweird.f32 %v3082
    %vm3090 = vmor %vm3088, %vm3089
    %v3091 = vsel %vm3090, %v3082, %v3087
    %v3092 = vmul.f32 %v3060, %v3081
    %v3093 = vmul.f32 %v3061, %v3091
    %v3095 = vperm.slane %v3047, 0
    %v3097 = vmul.f32 %v3092, %v3095
    %v3098 = vmul.f32 %v3093, %v3095
    %v3100 = vperm.slane %v3049, 0
    %v3102 = vadd.f32 %v3097, %v3100
    %v3103 = vadd.f32 %v3098, %v3100
    %s3104 = scalar_lea.vmem [#allocation19], 128
    %v3105 = vld [vmem:[%s3104] sm:$0xff]
    %v3106 = vld [vmem:[%s3104 + $0x8] sm:$0xff]
    %v3107 = vld [vmem:[%s3104 + $0x10] sm:$0xff]
    %v3108 = vld [vmem:[%s3104 + $0x18] sm:$0xff]
    %v3109 = vld [vmem:[%s3104 + $0x20] sm:$0xff]
    %v3110 = vld [vmem:[%s3104 + $0x28] sm:$0xff]
    %v3111 = vld [vmem:[%s3104 + $0x30] sm:$0xff]
    %v3112 = vld [vmem:[%s3104 + $0x38] sm:$0xff]
    %v3113 = vld [vmem:[%s3104 + $0x40] sm:$0xff]
    %v3114 = vld [vmem:[%s3104 + $0x48] sm:$0xff]
    %v3115 = vld [vmem:[%s3104 + $0x50] sm:$0xff]
    %v3116 = vld [vmem:[%s3104 + $0x58] sm:$0xff]
    %v3117 = vld [vmem:[%s3104 + $0x60] sm:$0xff]
    %v3118 = vld [vmem:[%s3104 + $0x68] sm:$0xff]
    %v3119 = vld [vmem:[%s3104 + $0x70] sm:$0xff]
    %v3120 = vld [vmem:[%s3104 + $0x78] sm:$0xff]
    %s3121 = scalar_lea.vmem [#allocation20], 1
    %v3122 = vld [vmem:[%s3121] sm:$0x1]
    %v3124 = vperm.slane %v3122, 0
    %3126 = vmatpush.msra.mxu0 %v3120
    %3127 = vmatpush.msra.mxu0 %v3119
    %3128 = vmatpush.msra.mxu0 %v3118
    %3129 = vmatpush.msra.mxu0 %v3117
    %3130 = vmatpush.msra.mxu0 %v3116
    %3131 = vmatpush.msra.mxu0 %v3115
    %3132 = vmatpush.msra.mxu0 %v3114
    %3133 = vmatpush.msra.mxu0 %v3113
    %3134 = vmatpush.msra.mxu0 %v3112
    %3135 = vmatpush.msra.mxu0 %v3111
    %3136 = vmatpush.msra.mxu0 %v3110
    %3137 = vmatpush.msra.mxu0 %v3109
    %3138 = vmatpush.msra.mxu0 %v3108
    %3139 = vmatpush.msra.mxu0 %v3107
    %3140 = vmatpush.msra.mxu0 %v3106
    %3141 = vmatpush.msra.mxu0 %v3105
    %3142 = vmatmul.f32.gmra.mxu0 %v3102
    %v3143 = vpop.f32.mrf.mxu0
    %v3144 = vadd.f32 %v3124, %v3143
    %3145 = vmatmul.f32.gmra.mxu0 %v3103
    %v3146 = vpop.f32.mrf.mxu0
    %v3147 = vadd.f32 %v3124, %v3146
    %3148 = vdwg.mxu0
    %v3149 = vmul.f32 %v3144, %v3144
    %v3150 = vmul.f32 %v3147, %v3147
    %v3151 = vmul.f32 %v3144, %v3149
    %v3152 = vmul.f32 %v3147, %v3150
    %v3153 = vmul.f32 %v3151, 0.044715
    %v3154 = vmul.f32 %v3152, 0.044715
    %v3155 = vadd.f32 %v3144, %v3153
    %v3156 = vadd.f32 %v3147, %v3154
    %v3157 = vmul.f32 %v3155, 0.7978846
    %v3158 = vmul.f32 %v3156, 0.7978846
    %v3159 = vtanh.pop %v3157
    %v3160 = vtanh.pop %v3158
    %v3161 = vadd.f32 %v3159, 1.0
    %v3162 = vadd.f32 %v3160, 1.0
    %v3163 = vmul.f32 %v3161, 0.5
    %v3164 = vmul.f32 %v3162, 0.5
    %v3165 = vmul.f32 %v3144, %v3163
    %v3166 = vmul.f32 %v3147, %v3164
    %s3167 = scalar_lea.vmem [#allocation22], 128
    %v3168 = vld [vmem:[%s3167] sm:$0xff]
    %v3169 = vld [vmem:[%s3167 + $0x8] sm:$0xff]
    %v3170 = vld [vmem:[%s3167 + $0x10] sm:$0xff]
    %v3171 = vld [vmem:[%s3167 + $0x18] sm:$0xff]
    %v3172 = vld [vmem:[%s3167 + $0x20] sm:$0xff]
    %v3173 = vld [vmem:[%s3167 + $0x28] sm:$0xff]
    %v3174 = vld [vmem:[%s3167 + $0x30] sm:$0xff]
    %v3175 = vld [vmem:[%s3167 + $0x38] sm:$0xff]
    %v3176 = vld [vmem:[%s3167 + $0x40] sm:$0xff]
    %v3177 = vld [vmem:[%s3167 + $0x48] sm:$0xff]
    %v3178 = vld [vmem:[%s3167 + $0x50] sm:$0xff]
    %v3179 = vld [vmem:[%s3167 + $0x58] sm:$0xff]
    %v3180 = vld [vmem:[%s3167 + $0x60] sm:$0xff]
    %v3181 = vld [vmem:[%s3167 + $0x68] sm:$0xff]
    %v3182 = vld [vmem:[%s3167 + $0x70] sm:$0xff]
    %v3183 = vld [vmem:[%s3167 + $0x78] sm:$0xff]
    %s3184 = scalar_lea.vmem [#allocation23], 1
    %v3185 = vld [vmem:[%s3184] sm:$0x1]
    %v3187 = vperm.slane %v3185, 0
    %3189 = vmatpush.msra.mxu0 %v3183
    %3190 = vmatpush.msra.mxu0 %v3182
    %3191 = vmatpush.msra.mxu0 %v3181
    %3192 = vmatpush.msra.mxu0 %v3180
    %3193 = vmatpush.msra.mxu0 %v3179
    %3194 = vmatpush.msra.mxu0 %v3178
    %3195 = vmatpush.msra.mxu0 %v3177
    %3196 = vmatpush.msra.mxu0 %v3176
    %3197 = vmatpush.msra.mxu0 %v3175
    %3198 = vmatpush.msra.mxu0 %v3174
    %3199 = vmatpush.msra.mxu0 %v3173
    %3200 = vmatpush.msra.mxu0 %v3172
    %3201 = vmatpush.msra.mxu0 %v3171
    %3202 = vmatpush.msra.mxu0 %v3170
    %3203 = vmatpush.msra.mxu0 %v3169
    %3204 = vmatpush.msra.mxu0 %v3168
    %3205 = vmatmul.f32.gmra.mxu0 %v3165
    %v3206 = vpop.f32.mrf.mxu0
    %v3207 = vadd.f32 %v3187, %v3206
    %3208 = vmatmul.f32.gmra.mxu0 %v3166
    %v3209 = vpop.f32.mrf.mxu0
    %v3210 = vadd.f32 %v3187, %v3209
    %3211 = vdwg.mxu0
    %v3212 = vadd.f32 %v3102, %v3207
    %v3213 = vadd.f32 %v3103, %v3210
    %s3214 = scalar_lea.vmem [#allocation25], 1
    %v3215 = vld [vmem:[%s3214] sm:$0x1]
    %s3216 = scalar_lea.vmem [#allocation26], 1
    %v3217 = vld [vmem:[%s3216] sm:$0x1]
    %v3218 = vmul.f32 %v3212, %v339
    %v3219 = vmul.f32 %v3213, %v339
    %3220 = vadd.xlane.f32.xlu0 %v3218
    %v3221 = vpop.xlane.xlu0 %3220
    %3222 = vadd.xlane.f32.xlu0 %v3219
    %v3223 = vpop.xlane.xlu0 %3222
    %v3224 = vmul.f32 %v3221, 0.03125
    %v3225 = vmul.f32 %v3223, 0.03125
    %v3226 = vsub.f32 %v3212, %v3224
    %v3227 = vsub.f32 %v3213, %v3225
    %v3228 = vmul.f32 %v3226, %v339
    %v3229 = vmul.f32 %v3227, %v339
    %v3230 = vmul.f32 %v3228, %v3228
    %v3231 = vmul.f32 %v3229, %v3229
    %3232 = vadd.xlane.f32.xlu0 %v3230
    %v3233 = vpop.xlane.xlu0 %3232
    %3234 = vadd.xlane.f32.xlu0 %v3231
    %v3235 = vpop.xlane.xlu0 %3234
    %v3236 = vmul.f32 %v3233, 0.03125
    %v3237 = vmul.f32 %v3235, 0.03125
    %v3238 = vadd.f32 %v3236, 1e-12
    %v3239 = vadd.f32 %v3237, 1e-12
    %v3240 = vrsqrt.pop %v3238
    %v3241 = vmul.f32 %v3240, %v3238
    %v3242 = vmul.f32 %v3241, %v3240
    %v3243 = vmul.f32 0.5, %v3242
    %v3244 = vsub.f32 1.5, %v3243
    %v3245 = vmul.f32 %v3240, %v3244
    %vm3246 = vweird.f32 %v3238
    %vm3247 = vweird.f32 %v3240
    %vm3248 = vmor %vm3246, %vm3247
    %v3249 = vsel %vm3248, %v3240, %v3245
    %v3250 = vrsqrt.pop %v3239
    %v3251 = vmul.f32 %v3250, %v3239
    %v3252 = vmul.f32 %v3251, %v3250
    %v3253 = vmul.f32 0.5, %v3252
    %v3254 = vsub.f32 1.5, %v3253
    %v3255 = vmul.f32 %v3250, %v3254
    %vm3256 = vweird.f32 %v3239
    %vm3257 = vweird.f32 %v3250
    %vm3258 = vmor %vm3256, %vm3257
    %v3259 = vsel %vm3258, %v3250, %v3255
    %v3260 = vmul.f32 %v3228, %v3249
    %v3261 = vmul.f32 %v3229, %v3259
    %v3263 = vperm.slane %v3215, 0
    %v3265 = vmul.f32 %v3260, %v3263
    %v3266 = vmul.f32 %v3261, %v3263
    %v3268 = vperm.slane %v3217, 0
    %v3270 = vadd.f32 %v3265, %v3268
    %v3271 = vadd.f32 %v3266, %v3268
    %3272 = vst [vmem:[#allocation31] sm:$0xff] %v3270
    %3273 = vst [vmem:[#allocation31 + $0x8] sm:$0xff] %v3271
    %v3275 = vrot.slane %v3271, 7
    %vm3277 = vcmask 1040384
    %v3278 = vsel %vm3277, %v3270, %v3275
    %v3279 = vld [vmem:[#allocation28] sm:$0xff]
    %v3280 = vld [vmem:[#allocation28 + $0x8] sm:$0xff]
    %v3281 = vld [vmem:[#allocation28 + $0x10] sm:$0xff]
    %v3282 = vld [vmem:[#allocation28 + $0x18] sm:$0xff]
    %v3283 = vld [vmem:[#allocation28 + $0x20] sm:$0xff]
    %v3284 = vld [vmem:[#allocation28 + $0x28] sm:$0xff]
    %v3285 = vld [vmem:[#allocation28 + $0x30] sm:$0xff]
    %v3286 = vld [vmem:[#allocation28 + $0x38] sm:$0xff]
    %v3287 = vld [vmem:[#allocation28 + $0x40] sm:$0xff]
    %v3288 = vld [vmem:[#allocation28 + $0x48] sm:$0xff]
    %v3289 = vld [vmem:[#allocation28 + $0x50] sm:$0xff]
    %v3290 = vld [vmem:[#allocation28 + $0x58] sm:$0xff]
    %v3291 = vld [vmem:[#allocation28 + $0x60] sm:$0xff]
    %v3292 = vld [vmem:[#allocation28 + $0x68] sm:$0xff]
    %v3293 = vld [vmem:[#allocation28 + $0x70] sm:$0xff]
    %v3294 = vld [vmem:[#allocation28 + $0x78] sm:$0xff]
    %v3295 = vld [vmem:[#allocation29] sm:$0x1]
    %v3297 = vperm.slane %v3295, 0
    %3299 = vmatpush.msra.mxu0 %v3294
    %3300 = vmatpush.msra.mxu0 %v3293
    %3301 = vmatpush.msra.mxu0 %v3292
    %3302 = vmatpush.msra.mxu0 %v3291
    %3303 = vmatpush.msra.mxu0 %v3290
    %3304 = vmatpush.msra.mxu0 %v3289
    %3305 = vmatpush.msra.mxu0 %v3288
    %3306 = vmatpush.msra.mxu0 %v3287
    %3307 = vmatpush.msra.mxu0 %v3286
    %3308 = vmatpush.msra.mxu0 %v3285
    %3309 = vmatpush.msra.mxu0 %v3284
    %3310 = vmatpush.msra.mxu0 %v3283
    %3311 = vmatpush.msra.mxu0 %v3282
    %3312 = vmatpush.msra.mxu0 %v3281
    %3313 = vmatpush.msra.mxu0 %v3280
    %3314 = vmatpush.msra.mxu0 %v3279
    %3315 = vmatmul.f32.gmra.mxu0 %v3278
    %v3316 = vpop.f32.mrf.mxu0
    %v3317 = vadd.f32 %v3297, %v3316
    %3318 = vdwg.mxu0
    %v3319 = vtanh.pop %v3317
    %3320 = vst [vmem:[#allocation32] sm:$0x3] %v3319
    // Predicated region
    $region146: #{tpu_custom_call.1} parent=1 // pred_check
      _
    $region147: #{tpu_custom_call.1} parent=1 // pred_check_branch
      %3322 = sbr.rel (0) target = $region149
    $region148: #{tpu_custom_call.1} parent=1 // pred_region
      %3324 = vsyncadd [#allocation4], 0
      %s3325 = sshll.u32 [#allocation31], 4
      %s3326 = int_to_ptr.vmem [resolvable:$true] %s3325
      %s3327 = sshll.u32 %s18, 4
      %s3328 = int_to_ptr.hbm [resolvable:$true] %s3327
      %3333 = dma.vmem_to_hbm [thread:$0]  %s3326, 256, %s3328, [#allocation4], 128, 128, 8
    $region149: #{tpu_custom_call.1} parent=1 // pred_fallthru
      _
    // Predicated region
    $region150: #{tpu_custom_call.1} parent=1 // pred_check
      _
    $region151: #{tpu_custom_call.1} parent=1 // pred_check_branch
      %3335 = sbr.rel (0) target = $region153
    $region152: #{tpu_custom_call.1} parent=1 // pred_region
      %3337 = vsyncadd [#allocation33], 0
      %s3339 = sshll.u32 [#allocation32], 4
      %s3340 = int_to_ptr.vmem [resolvable:$true] %s3339
      %s3341 = sshll.u32 %s19, 4
      %s3342 = int_to_ptr.hbm [resolvable:$true] %s3341
      %3344 = dma.vmem_to_hbm [thread:$0]  %s3340, 32, %s3342, [#allocation33]
    $region153: #{tpu_custom_call.1} parent=1 // pred_fallthru
      _
    // Predicated region
    $region154: #{tpu_custom_call.1} parent=1 // pred_check
      _
    $region155: #{tpu_custom_call.1} parent=1 // pred_check_branch
      %3346 = sbr.rel (0) target = $region157
    $region156: #{tpu_custom_call.1} parent=1 // pred_region
      %3348 = dma.done [#allocation4], 256
    $region157: #{tpu_custom_call.1} parent=1 // pred_fallthru
      _
    // Predicated region
    $region158: #{tpu_custom_call.1} parent=1 // pred_check
      _
    $region159: #{tpu_custom_call.1} parent=1 // pred_check_branch
      %3350 = sbr.rel (0) target = $region161
    $region160: #{tpu_custom_call.1} parent=1 // pred_region
      %3352 = dma.done [#allocation33], 32
    $region161: #{tpu_custom_call.1} parent=1 // pred_fallthru
      _
    %3353 = vsyncpa [#allocation3], 1
    %3354 = vsyncpa [#allocation6], 1
    %3355 = vsyncpa [#allocation9], 1
    %3356 = vsyncpa [#allocation12], 1
    %3357 = vsyncpa [#allocation15], 1
    %3358 = vsyncpa [#allocation18], 1
    %3359 = vsyncpa [#allocation21], 1
    %3360 = vsyncpa [#allocation24], 1
    %3361 = vsyncpa [#allocation27], 1
    %3362 = vsyncpa [#allocation30], 1
    %3363 = vsyncpa [#allocation4], 1
    %3364 = vsyncpa [#allocation33], 1

</llo_original>
